<compile_context>
chip_gen: v7x
topology: tpu7x:2x2x1
jax: 0.10.0
libtpu: 0.0.40
codegen_flags: <defaults>
</compile_context>

<pallas_src>
import functools

import jax
import jax.numpy as jnp
from jax import lax
from jax.experimental import pallas as pl
from jax.experimental.pallas import tpu as pltpu

NUM_CLUSTERS = 10      # the PyTorch code loops `for i in range(10)`
TOPK_FRAC = 0.7
BN_EPS = 1e-5
DIST_EPS = 1e-9


def _round_up(n, m):
    return ((n + m - 1) // m) * m


def _vmem_limit_bytes():
    """Per-chip VMEM budget: ~60% of physical, capped at 96 MiB, floored at 32 MiB."""
    cap = 128 * 1024 * 1024
    try:
        cap = int(getattr(pltpu.get_tpu_info(), "vmem_capacity_bytes", cap))
    except Exception:
        pass
    return int(min(max(cap * 6 // 10, 32 * 1024 * 1024), 96 * 1024 * 1024))


def _bf16_elementwise_ok():
    """bf16 VPU/EUP elementwise pays off on v6e/v7x; v5-and-older chips stay f32."""
    try:
        kind = jax.devices()[0].device_kind.lower()
    except Exception:
        return True
    return not any(tag in kind for tag in ("v2", "v3", "v4", "v5"))


# --------------------------------------------------------------------------------------
# Kernel 1: pairwise distance -> folded MLP -> sigmoid -> lane-dense grouping-matrix tile
# --------------------------------------------------------------------------------------
def _gm_mlp_kernel(xr_ref, xc_ref, w1_ref, shift_ref, w2_ref, out_ref, *, use_abs_dist):
    # xr_ref: (1, tT, Rp)  xc_ref: (1, cT, Rp)   (f32 on v5e and older, bf16 on v6e/v7x)
    # w1_ref: (Rp, Hp) bf16   shift_ref/w2_ref: (1, Hp) f32
    # out_ref: (1, tT, cT) f32  -- lane-dense tile of the grouping matrix
    tT, cT = out_ref.shape[1], out_ref.shape[2]
    row0 = pl.program_id(2) * tT
    col0 = pl.program_id(1) * cT

    xr = xr_ref[0]                                              # (tT, Rp)
    xc = xc_ref[0]                                              # (cT, Rp)

    # Pairwise distance; relu(diff^2) == diff^2, so the explicit relu is dropped.
    diff = xr[:, None, :] - xc[None, :, :]                      # (tT, cT, Rp)
    if use_abs_dist:
        # TODO(synk): deviates from sqrt(d^2 + 1e-9) by <= 3.2e-5 per feature (removes
        # the B*T*T*Rp EUP sqrts); disabled by default to preserve torch semantics.
        dist = jnp.abs(diff)
    else:
        dist = jnp.sqrt(diff * diff + DIST_EPS)

    # Linear(R->H) with eval-mode BatchNorm + bias folded into bf16 weights / f32 shift.
    feats = dist.reshape(tT * cT, dist.shape[-1]).astype(jnp.bfloat16)
    h = jnp.dot(feats, w1_ref[...], preferred_element_type=jnp.float32)
    h = jnp.maximum(h + shift_ref[...], 0.0)                    # (tT*cT, Hp)

    # Linear(H->1) + bias (bias lives in a spare padded hidden column): VPU mul + lane
    # reduce keeps the MXU free for the next tile's big matmul.
    y = jnp.sum(h * w2_ref[...], axis=-1, keepdims=True)        # (tT*cT, 1)
    y = jax.nn.sigmoid(y).reshape(tT, cT)                       # lane-dense tile

    row = lax.broadcasted_iota(jnp.int32, (tT, cT), 0) + row0
    col = lax.broadcasted_iota(jnp.int32, (tT, cT), 1) + col0
    out_ref[0] = jnp.where(row == col, 1.0, y)                  # diagonal := 1


def _pick_gm_tiles(T, r_pad, h_pad, x_bytes, vmem_limit, row_tile=None, col_tile=None):
    # Column tile: largest multiple of 128 (<= 512) dividing T, else the full axis.
    if col_tile is None:
        cT = T
        for cand in (512, 256, 128):
            if T % cand == 0:
                cT = cand
                break
    else:
        cT = col_tile
    assert T % cT == 0 and (cT % 128 == 0 or cT == T), (T, cT)

    if row_tile is None:
        if T % 8 != 0:
            tT = T
        else:
            # Live intermediates per output element: diff+dist, bf16 feats, f32 h, out.
            per_elem = r_pad * (2 * x_bytes + 2) + 4 * h_pad + 16
            budget = vmem_limit // 2 - 2 * cT * r_pad * x_bytes
            max_rows = max(8, budget // (cT * per_elem))
            tT = min(T, 256, (max_rows // 8) * 8)
            while tT > 8 and T % tT != 0:
                tT -= 8
            tT = max(tT, 8)
    else:
        tT = row_tile
    assert T % tT == 0 and (tT % 8 == 0 or tT == T), (T, tT)
    return tT, cT


def grouping_matrix(x, w1, b1, gamma, beta, run_mean, run_var, w2, b2, *,
                    row_tile=None, col_tile=None, use_abs_dist=False,
                    bf16_elementwise=None):
    B, T, R = x.shape
    H = w1.shape[1]
    r_pad = _round_up(R, 128)       # minimal padding: kernel 1 is VPU/EUP-bound, so do
    h_pad = _round_up(H + 1, 128)   # not inflate beyond 128; +1 carries the H->1 bias.

    if bf16_elementwise is None:
        bf16_elementwise = _bf16_elementwise_ok()
    x_dtype = jnp.bfloat16 if bf16_elementwise else jnp.float32
    x_bytes = 2 if bf16_elementwise else 4

    # Fold eval-mode BatchNorm1d and the first Linear bias into weights / shift.
    # TODO(synk): train-mode BatchNorm1d (batch stats over all B*T*T rows) would need a
    # separate global reduction pass; eval-mode running-stat semantics are used here.
    s = gamma / jnp.sqrt(run_var + BN_EPS)
    shift = (b1 - run_mean) * s + beta
    w1s = w1 * s[None, :]

    # Zero padding is exact: padded dist features hit zero weight rows, and padded hidden
    # columns have shift 0 (except the bias column: w1=0, shift=1, w2=b2).
    x_p = jnp.zeros((B, T, r_pad), jnp.float32).at[:, :, :R].set(x).astype(x_dtype)
    w1_p = jnp.zeros((r_pad, h_pad), jnp.float32).at[:R, :H].set(w1s).astype(jnp.bfloat16)
    shift_p = jnp.zeros((1, h_pad), jnp.float32).at[0, :H].set(shift).at[0, H].set(1.0)
    w2_p = jnp.zeros((1, h_pad), jnp.float32).at[0, :H].set(w2[:, 0]).at[0, H].set(b2[0])

    vmem_limit = _vmem_limit_bytes()
    tT, cT = _pick_gm_tiles(T, r_pad, h_pad, x_bytes, vmem_limit, row_tile, col_tile)

    cost = pl.CostEstimate(
        flops=int(2 * B * T * T * r_pad * h_pad + 6 * B * T * T * r_pad),
        transcendentals=int(B * T * T * ((0 if use_abs_dist else r_pad) + 1)),
        bytes_accessed=int(x_bytes * B * T * r_pad * (1 + T // cT)
                           + 2 * r_pad * h_pad + 8 * h_pad + 4 * B * T * T),
    )
    kernel = functools.partial(_gm_mlp_kernel, use_abs_dist=use_abs_dist)
    return pl.pallas_call(
        kernel,
        out_shape=jax.ShapeDtypeStruct((B, T, T), jnp.float32),
        # Row tiles innermost: the larger column slab's block index is constant across
        # the innermost axis, so only the small row tile is re-fetched per grid step.
        grid=(B, T // cT, T // tT),
        in_specs=[
            pl.BlockSpec((1, tT, r_pad), lambda b, c, t: (b, t, 0)),
            pl.BlockSpec((1, cT, r_pad), lambda b, c, t: (b, c, 0)),
            pl.BlockSpec((r_pad, h_pad), lambda b, c, t: (0, 0)),
            pl.BlockSpec((1, h_pad), lambda b, c, t: (0, 0)),
            pl.BlockSpec((1, h_pad), lambda b, c, t: (0, 0)),
        ],
        out_specs=pl.BlockSpec((1, tT, cT), lambda b, c, t: (b, t, c)),
        compiler_params=pltpu.CompilerParams(
            dimension_semantics=("parallel", "parallel", "parallel"),
            vmem_limit_bytes=vmem_limit),
        cost_estimate=cost,
    )(x_p, x_p, w1_p, shift_p, w2_p)


# --------------------------------------------------------------------------------------
# Kernel 2: masked correlation matrices for the eigenvector masks
# --------------------------------------------------------------------------------------
def _masked_corr_kernel(x_ref, mask_ref, o_ref):
    # x_ref: (1, T, Rp) f32   mask_ref: (1, 1, ncs, T) f32   o_ref: (1, 1, ncs, Rp, Rp)
    x = x_ref[0]                                          # (T, Rp)
    m = mask_ref[0, 0]                                    # (ncs, T), lane-dense masks

    # data_masked^T: time-mask applied to the (T, Rp) series (zero-filled, like torch).
    xt = m[:, :, None] * x[None, :, :]                    # (ncs, T, Rp)
    xc = xt - jnp.mean(xt, axis=1, keepdims=True)

    # Normalize each ROI column by rsqrt(sum of squares) BEFORE the Gram matmul: the
    # Gram matrix of the normalized columns is already the correlation (the 1/(T-1)
    # factors cancel). The rsqrt is guarded so padded (all-zero) ROI columns yield 0
    # instead of NaN. Note: a real zero-variance ROI would give 0 here where torch's
    # corrcoef would produce NaN.
    ss = jnp.sum(xc * xc, axis=1, keepdims=True)          # (ncs, 1, Rp)
    inv = jnp.where(ss > 0.0, lax.rsqrt(ss), 0.0)
    xn = (xc * inv).astype(jnp.bfloat16)                  # bf16 MXU operands, f32 accum

    c = lax.dot_general(
        xn, xn,
        dimension_numbers=(((1,), (1,)), ((0,), (0,))),
        preferred_element_type=jnp.float32)               # (ncs, Rp, Rp)
    o_ref[0, 0] = jnp.clip(c, -1.0, 1.0)


def _pick_cluster_split(NC, B, T, r_pad, vmem_limit):
    """Smallest split of the cluster axis whose intermediates fit the VMEM budget."""
    budget = vmem_limit // 2
    per_cluster = T * r_pad * 12 + r_pad * r_pad * 12     # xt/xc f32 + xn bf16 + gram/out
    fixed = 2 * T * r_pad * 4 + 2 * NC * T * 4            # double-buffered x + mask blocks
    nsplit = NC
    for cand in range(1, NC + 1):
        if NC % cand:
            continue
        if fixed + (NC // cand) * per_cluster <= budget:
            nsplit = cand
            break
    if B == 1 and nsplit == 1 and NC % 2 == 0:
        nsplit = 2                                        # keep both TensorCores busy
    return nsplit


def masked_corrcoef(x, masks):
    # x: (B, T, R) f32   masks: (B, NC, T) binary {0,1}, lane-dense (no trailing 1 dim)
    B, T, R = x.shape
    NC = masks.shape[1]
    r_pad = _round_up(R, 128)
    vmem_limit = _vmem_limit_bytes()
    nsplit = _pick_cluster_split(NC, B, T, r_pad, vmem_limit)
    ncs = NC // nsplit

    # Zero-pad the ROI axis so the Gram operands fill MXU lanes and the (ncs, Rp, Rp)
    # output tile is lane-dense (unmasked stores); padded columns are killed by the
    # guarded rsqrt and sliced away below.
    x_p = jnp.zeros((B, T, r_pad), jnp.float32).at[:, :, :R].set(x)
    masks4 = masks.reshape(B, nsplit, ncs, T)

    cost = pl.CostEstimate(
        flops=int(2 * B * NC * T * r_pad * r_pad + 8 * B * NC * T * r_pad),
        transcendentals=int(B * NC * r_pad),
        bytes_accessed=int(4 * (B * T * r_pad * nsplit + B * NC * T
                                + B * NC * r_pad * r_pad)),
    )
    out = pl.pallas_call(
        _masked_corr_kernel,
        out_shape=jax.ShapeDtypeStruct((B, nsplit, ncs, r_pad, r_pad), jnp.float32),
        grid=(B, nsplit),
        in_specs=[
            pl.BlockSpec((1, T, r_pad), lambda b, s: (b, 0, 0)),
            pl.BlockSpec((1, 1, ncs, T), lambda b, s: (b, s, 0, 0)),
        ],
        out_specs=pl.BlockSpec((1, 1, ncs, r_pad, r_pad), lambda b, s: (b, s, 0, 0, 0)),
        compiler_params=pltpu.CompilerParams(
            dimension_semantics=("parallel", "parallel"),
            vmem_limit_bytes=vmem_limit),
        cost_estimate=cost,
    )(x_p, masks4)
    return out.reshape(B, NC, r_pad, r_pad)[:, :, :R, :R]


# --------------------------------------------------------------------------------------
# Full forward (Pallas kernels + plain-JAX glue for eigh / sort / top-k / triu flatten)
# --------------------------------------------------------------------------------------
def gmpool_masking_fc_forward(x, w1, b1, gamma, beta, run_mean, run_var, w2, b2, *,
                              row_tile=None, col_tile=None, use_abs_dist=False,
                              bf16_elementwise=None):
    B, T, R = x.shape

    # 1) Grouping matrix via the fused Pallas kernel (symmetric, unit diagonal).
    M = grouping_matrix(x, w1, b1, gamma, beta, run_mean, run_var, w2, b2,
                        row_tile=row_tile, col_tile=col_tile,
                        use_abs_dist=use_abs_dist,
                        bf16_elementwise=bf16_elementwise)     # (B, T, T)

    # 2) Eigendecomposition + descending sort + top-70% binary masks (plain JAX glue).
    # TODO(synk): eigh / sort / topk have no clean Pallas equivalent; kept in XLA.
    vals, vecs = jnp.linalg.eigh(M)                            # ascending eigenvalues
    order = jnp.argsort(-vals, axis=1)                         # descending order indices
    vecs_sorted = jnp.take_along_axis(vecs, order[:, None, :], axis=2)
    sel = jnp.abs(jnp.transpose(vecs_sorted[:, :, :NUM_CLUSTERS], (0, 2, 1)))  # (B,NC,T)
    k_top = int(T * TOPK_FRAC)
    top_vals, _ = lax.top_k(sel, k_top)
    thr = top_vals[:, :, k_top - 1:k_top]                      # (B, NC, 1)
    masks = (sel >= thr).astype(jnp.float32)                   # (B, NC, T), lane-dense

    # 3) Masked correlation matrices via the Pallas kernel.
    corr = masked_corrcoef(x, masks)                           # (B, NC, R, R)

    # 4) Flatten strict upper triangle (row-major, matching torch boolean masking).
    iu0, iu1 = jnp.triu_indices(R, k=1)
    return corr[:, :, iu0, iu1]                                # (B, NC, R*(R-1)//2)


if __name__ == "__main__":
    B, T, R, H = 2, 16, 8, 32                                  # batch, timepoints, roi, hidden
    key = jax.random.PRNGKey(0)
    ks = jax.random.split(key, 8)

    x = jax.random.normal(ks[0], (B, T, R), jnp.float32)

    # Deterministic synthetic parameters (shapes per nn.Linear / nn.BatchNorm1d).
    w1 = jax.random.normal(ks[1], (R, H), jnp.float32) / jnp.sqrt(R)
    b1 = 0.01 * jax.random.normal(ks[2], (H,), jnp.float32)
    gamma = 1.0 + 0.1 * jax.random.normal(ks[3], (H,), jnp.float32)
    beta = 0.1 * jax.random.normal(ks[4], (H,), jnp.float32)
    run_mean = 0.1 * jax.random.normal(ks[5], (H,), jnp.float32)
    run_var = jnp.ones((H,), jnp.float32)
    w2 = jax.random.normal(ks[6], (H, 1), jnp.float32) / jnp.sqrt(H)
    b2 = 0.01 * jax.random.normal(ks[7], (1,), jnp.float32)

    # row_tile=8 exercises the tiled (B, T//cT, T//tT) grid path of kernel 1.
    fwd = jax.jit(functools.partial(gmpool_masking_fc_forward, row_tile=8))
    out = jax.block_until_ready(fwd(x, w1, b1, gamma, beta, run_mean, run_var, w2, b2))

    assert out.shape == (B, NUM_CLUSTERS, R * (R - 1) // 2), out.shape
    assert bool(jnp.all(jnp.isfinite(out)))
    assert bool(jnp.all(jnp.abs(out) <= 1.0 + 1e-6))
    print("KERNEL_OK")
</pallas_src>

<mosaic_0001>
module attributes {stable_mosaic.version = 11 : i64} {
  func.func private @main(%arg0: i32) attributes {dimension_semantics = [#tpu.dimension_semantics<core_parallel>], iteration_bounds = array<i64: 2>, tpu.core_type = #tpu.core_type<sc_scalar_subcore>, window_params = []} {
    return
  }
}

module attributes {stable_mosaic.version = 11 : i64} {
  func.func private @main(%arg0: i32) attributes {dimension_semantics = [#tpu.dimension_semantics<core_parallel>], iteration_bounds = array<i64: 2>, tpu.core_type = #tpu.core_type<sc_scalar_subcore>, window_params = []} {
    return
  }
}

module attributes {stable_mosaic.version = 11 : i64} {
  func.func @_gm_mlp_kernel(%arg0: i32, %arg1: i32, %arg2: i32, %arg3: memref<1x8x128xbf16, #tpu.memory_space<vmem>>, %arg4: memref<1x16x128xbf16, #tpu.memory_space<vmem>>, %arg5: memref<128x128xbf16, #tpu.memory_space<vmem>>, %arg6: memref<1x128xf32, #tpu.memory_space<vmem>>, %arg7: memref<1x128xf32, #tpu.memory_space<vmem>>, %arg8: memref<1x8x16xf32, #tpu.memory_space<vmem>>) attributes {dimension_semantics = [#tpu.dimension_semantics<parallel>, #tpu.dimension_semantics<parallel>, #tpu.dimension_semantics<parallel>], iteration_bounds = array<i64: 2, 1, 2>, scalar_prefetch = 0 : i64, scratch_operands = 0 : i64, tpu.core_type = #tpu.core_type<tc>, window_params = [{transform_indices = @transform_0, window_bounds = array<i64: 1, 8, 128>}, {transform_indices = @transform_1, window_bounds = array<i64: 1, 16, 128>}, {pipeline_mode = #tpu.pipeline_mode<synchronous>, transform_indices = @transform_2, window_bounds = array<i64: 128, 128>}, {pipeline_mode = #tpu.pipeline_mode<synchronous>, transform_indices = @transform_3, window_bounds = array<i64: 1, 128>}, {pipeline_mode = #tpu.pipeline_mode<synchronous>, transform_indices = @transform_4, window_bounds = array<i64: 1, 128>}, {transform_indices = @transform_5, window_bounds = array<i64: 1, 8, 16>}]} {
    %c8_i32 = arith.constant 8 : i32
    %0 = arith.muli %arg2, %c8_i32 : i32
    %c16_i32 = arith.constant 16 : i32
    %1 = arith.muli %arg1, %c16_i32 : i32
    %c0 = arith.constant 0 : index
    %c0_0 = arith.constant 0 : index
    %c0_1 = arith.constant 0 : index
    %2 = vector.load %arg3[%c0, %c0_0, %c0_1] : memref<1x8x128xbf16, #tpu.memory_space<vmem>>, vector<1x8x128xbf16>
    %3 = vector.shape_cast %2 : vector<1x8x128xbf16> to vector<8x128xbf16>
    %c0_2 = arith.constant 0 : index
    %c0_3 = arith.constant 0 : index
    %c0_4 = arith.constant 0 : index
    %4 = vector.load %arg4[%c0_2, %c0_3, %c0_4] : memref<1x16x128xbf16, #tpu.memory_space<vmem>>, vector<1x16x128xbf16>
    %5 = vector.shape_cast %4 : vector<1x16x128xbf16> to vector<16x128xbf16>
    %6 = vector.shape_cast %3 : vector<8x128xbf16> to vector<8x1x128xbf16>
    %7 = vector.shape_cast %5 : vector<16x128xbf16> to vector<1x16x128xbf16>
    %8 = vector.broadcast %6 : vector<8x1x128xbf16> to vector<8x16x128xbf16>
    %9 = vector.broadcast %7 : vector<1x16x128xbf16> to vector<8x16x128xbf16>
    %10 = arith.subf %8, %9 : vector<8x16x128xbf16>
    %11 = arith.mulf %10, %10 : vector<8x16x128xbf16>
    %cst = arith.constant 9.968060e-10 : bf16
    %12 = vector.broadcast %cst : bf16 to vector<8x16x128xbf16>
    %13 = arith.addf %11, %12 : vector<8x16x128xbf16>
    %14 = math.sqrt %13 : vector<8x16x128xbf16>
    %15 = vector.shape_cast %14 : vector<8x16x128xbf16> to vector<128x128xbf16>
    %c0_5 = arith.constant 0 : index
    %c0_6 = arith.constant 0 : index
    %16 = vector.load %arg5[%c0_5, %c0_6] : memref<128x128xbf16, #tpu.memory_space<vmem>>, vector<128x128xbf16>
    %cst_7 = arith.constant dense<0.000000e+00> : vector<128x128xf32>
    %17 = tpu.matmul %15, %16, %cst_7 {dimension_numbers = #tpu.dot_dimension_numbers<[1], [0], [0], [1], [0, 0, 1, 1], [], []>} : vector<128x128xbf16>, vector<128x128xbf16>, vector<128x128xf32> -> vector<128x128xf32>
    %c0_8 = arith.constant 0 : index
    %c0_9 = arith.constant 0 : index
    %18 = vector.load %arg6[%c0_8, %c0_9] : memref<1x128xf32, #tpu.memory_space<vmem>>, vector<1x128xf32>
    %19 = vector.broadcast %18 : vector<1x128xf32> to vector<128x128xf32>
    %20 = arith.addf %17, %19 : vector<128x128xf32>
    %cst_10 = arith.constant 0.000000e+00 : f32
    %21 = vector.broadcast %cst_10 : f32 to vector<128x128xf32>
    %22 = arith.maximumf %20, %21 : vector<128x128xf32>
    %c0_11 = arith.constant 0 : index
    %c0_12 = arith.constant 0 : index
    %23 = vector.load %arg7[%c0_11, %c0_12] : memref<1x128xf32, #tpu.memory_space<vmem>>, vector<1x128xf32>
    %24 = vector.broadcast %23 : vector<1x128xf32> to vector<128x128xf32>
    %25 = arith.mulf %22, %24 : vector<128x128xf32>
    %cst_13 = arith.constant dense<0.000000e+00> : vector<128xf32>
    %26 = vector.multi_reduction <add>, %25, %cst_13 [1] : vector<128x128xf32> to vector<128xf32>
    %27 = vector.shape_cast %26 : vector<128xf32> to vector<128x1xf32>
    %28 = arith.negf %27 : vector<128x1xf32>
    %29 = math.exp %28 : vector<128x1xf32>
    %cst_14 = arith.constant 1.000000e+00 : f32
    %30 = vector.broadcast %cst_14 : f32 to vector<128x1xf32>
    %31 = arith.addf %30, %29 : vector<128x1xf32>
    %32 = arith.divf %30, %31 : vector<128x1xf32>
    %33 = vector.shape_cast %32 : vector<128x1xf32> to vector<8x16xf32>
    %34 = tpu.iota {dimensions = array<i32: 0>} : vector<8x16xi32>
    %35 = vector.broadcast %0 : i32 to vector<8x16xi32>
    %36 = arith.addi %34, %35 : vector<8x16xi32>
    %37 = tpu.iota {dimensions = array<i32: 1>} : vector<8x16xi32>
    %38 = vector.broadcast %1 : i32 to vector<8x16xi32>
    %39 = arith.addi %37, %38 : vector<8x16xi32>
    %40 = arith.cmpi eq, %36, %39 : vector<8x16xi32>
    %cst_15 = arith.constant 1.000000e+00 : f32
    %41 = vector.broadcast %cst_15 : f32 to vector<8x16xf32>
    %42 = arith.select %40, %41, %33 : vector<8x16xi1>, vector<8x16xf32>
    %c0_16 = arith.constant 0 : index
    %c0_17 = arith.constant 0 : index
    %c0_18 = arith.constant 0 : index
    %43 = vector.load %arg8[%c0_16, %c0_17, %c0_18] : memref<1x8x16xf32, #tpu.memory_space<vmem>>, vector<1x8x16xf32>
    %44 = vector.shape_cast %43 : vector<1x8x16xf32> to vector<8x16xf32>
    %45 = vector.shape_cast %42 : vector<8x16xf32> to vector<1x8x16xf32>
    tpu.vector_store %arg8[%c0_16, %c0_17, %c0_18], %45 {strides = array<i32>} : memref<1x8x16xf32, #tpu.memory_space<vmem>>, vector<1x8x16xf32>,
    return
  }
  func.func @transform_0(%arg0: i32, %arg1: i32, %arg2: i32) -> (i32, i32, i32) {
    %c0_i32 = arith.constant 0 : i32
    %c0_i32_0 = arith.constant 0 : i32
    return %arg0, %arg2, %c0_i32 : i32, i32, i32
  }
  func.func @transform_1(%arg0: i32, %arg1: i32, %arg2: i32) -> (i32, i32, i32) {
    %c0_i32 = arith.constant 0 : i32
    %c0_i32_0 = arith.constant 0 : i32
    return %arg0, %arg1, %c0_i32 : i32, i32, i32
  }
  func.func @transform_2(%arg0: i32, %arg1: i32, %arg2: i32) -> (i32, i32) {
    %c0_i32 = arith.constant 0 : i32
    %c0_i32_0 = arith.constant 0 : i32
    %c0_i32_1 = arith.constant 0 : i32
    return %c0_i32, %c0_i32_0 : i32, i32
  }
  func.func @transform_3(%arg0: i32, %arg1: i32, %arg2: i32) -> (i32, i32) {
    %c0_i32 = arith.constant 0 : i32
    %c0_i32_0 = arith.constant 0 : i32
    %c0_i32_1 = arith.constant 0 : i32
    return %c0_i32, %c0_i32_0 : i32, i32
  }
  func.func @transform_4(%arg0: i32, %arg1: i32, %arg2: i32) -> (i32, i32) {
    %c0_i32 = arith.constant 0 : i32
    %c0_i32_0 = arith.constant 0 : i32
    %c0_i32_1 = arith.constant 0 : i32
    return %c0_i32, %c0_i32_0 : i32, i32
  }
  func.func @transform_5(%arg0: i32, %arg1: i32, %arg2: i32) -> (i32, i32, i32) {
    %c0_i32 = arith.constant 0 : i32
    return %arg0, %arg2, %arg1 : i32, i32, i32
  }
}

module attributes {stable_mosaic.version = 11 : i64} {
  func.func @_masked_corr_kernel(%arg0: i32, %arg1: i32, %arg2: memref<1x16x128xf32, #tpu.memory_space<vmem>>, %arg3: memref<1x1x10x16xf32, #tpu.memory_space<vmem>>, %arg4: memref<1x1x10x128x128xf32, #tpu.memory_space<vmem>>) attributes {dimension_semantics = [#tpu.dimension_semantics<parallel>, #tpu.dimension_semantics<parallel>], iteration_bounds = array<i64: 2, 1>, scalar_prefetch = 0 : i64, scratch_operands = 0 : i64, tpu.core_type = #tpu.core_type<tc>, window_params = [{transform_indices = @transform_0, window_bounds = array<i64: 1, 16, 128>}, {transform_indices = @transform_1, window_bounds = array<i64: 1, 1, 10, 16>}, {transform_indices = @transform_2, window_bounds = array<i64: 1, 1, 10, 128, 128>}]} {
    %c0 = arith.constant 0 : index
    %c0_0 = arith.constant 0 : index
    %c0_1 = arith.constant 0 : index
    %0 = vector.load %arg2[%c0, %c0_0, %c0_1] : memref<1x16x128xf32, #tpu.memory_space<vmem>>, vector<1x16x128xf32>
    %1 = vector.shape_cast %0 : vector<1x16x128xf32> to vector<16x128xf32>
    %c0_2 = arith.constant 0 : index
    %c0_3 = arith.constant 0 : index
    %c0_4 = arith.constant 0 : index
    %c0_5 = arith.constant 0 : index
    %2 = vector.load %arg3[%c0_2, %c0_3, %c0_4, %c0_5] : memref<1x1x10x16xf32, #tpu.memory_space<vmem>>, vector<1x1x10x16xf32>
    %3 = vector.shape_cast %2 : vector<1x1x10x16xf32> to vector<10x16xf32>
    %4 = vector.shape_cast %3 : vector<10x16xf32> to vector<10x16x1xf32>
    %5 = vector.shape_cast %1 : vector<16x128xf32> to vector<1x16x128xf32>
    %6 = vector.broadcast %4 : vector<10x16x1xf32> to vector<10x16x128xf32>
    %7 = vector.broadcast %5 : vector<1x16x128xf32> to vector<10x16x128xf32>
    %8 = arith.mulf %6, %7 : vector<10x16x128xf32>
    %cst = arith.constant dense<0.000000e+00> : vector<10x128xf32>
    %9 = vector.multi_reduction <add>, %8, %cst [1] : vector<10x16x128xf32> to vector<10x128xf32>
    %10 = vector.shape_cast %9 : vector<10x128xf32> to vector<10x1x128xf32>
    %cst_6 = arith.constant 1.600000e+01 : f32
    %11 = vector.broadcast %cst_6 : f32 to vector<10x1x128xf32>
    %12 = arith.divf %10, %11 : vector<10x1x128xf32>
    %13 = vector.broadcast %12 : vector<10x1x128xf32> to vector<10x16x128xf32>
    %14 = arith.subf %8, %13 : vector<10x16x128xf32>
    %15 = arith.mulf %14, %14 : vector<10x16x128xf32>
    %cst_7 = arith.constant dense<0.000000e+00> : vector<10x128xf32>
    %16 = vector.multi_reduction <add>, %15, %cst_7 [1] : vector<10x16x128xf32> to vector<10x128xf32>
    %17 = vector.shape_cast %16 : vector<10x128xf32> to vector<10x1x128xf32>
    %cst_8 = arith.constant 0.000000e+00 : f32
    %18 = vector.broadcast %cst_8 : f32 to vector<10x1x128xf32>
    %19 = arith.cmpf ogt, %17, %18 : vector<10x1x128xf32>
    %20 = math.rsqrt %17 : vector<10x1x128xf32>
    %cst_9 = arith.constant 0.000000e+00 : f32
    %21 = vector.broadcast %cst_9 : f32 to vector<10x1x128xf32>
    %22 = arith.select %19, %20, %21 : vector<10x1x128xi1>, vector<10x1x128xf32>
    %23 = vector.broadcast %22 : vector<10x1x128xf32> to vector<10x16x128xf32>
    %24 = arith.mulf %14, %23 : vector<10x16x128xf32>
    %25 = arith.truncf %24 : vector<10x16x128xf32> to vector<10x16x128xbf16>
    %cst_10 = arith.constant dense<0.000000e+00> : vector<10x128x128xf32>
    %26 = tpu.matmul %25, %25, %cst_10 {dimension_numbers = #tpu.dot_dimension_numbers<[1], [1], [2], [2], [0, 0, 0, 2, 1, 2], [0], [0]>} : vector<10x16x128xbf16>, vector<10x16x128xbf16>, vector<10x128x128xf32> -> vector<10x128x128xf32>
    %cst_11 = arith.constant -1.000000e+00 : f32
    %cst_12 = arith.constant 1.000000e+00 : f32
    %27 = vector.broadcast %cst_11 : f32 to vector<10x128x128xf32>
    %28 = arith.maximumf %27, %26 : vector<10x128x128xf32>
    %29 = vector.broadcast %cst_12 : f32 to vector<10x128x128xf32>
    %30 = arith.minimumf %29, %28 : vector<10x128x128xf32>
    %c0_13 = arith.constant 0 : index
    %c0_14 = arith.constant 0 : index
    %c0_15 = arith.constant 0 : index
    %c0_16 = arith.constant 0 : index
    %c0_17 = arith.constant 0 : index
    %31 = vector.load %arg4[%c0_13, %c0_14, %c0_15, %c0_16, %c0_17] : memref<1x1x10x128x128xf32, #tpu.memory_space<vmem>>, vector<1x1x10x128x128xf32>
    %32 = vector.shape_cast %31 : vector<1x1x10x128x128xf32> to vector<10x128x128xf32>
    %33 = vector.shape_cast %30 : vector<10x128x128xf32> to vector<1x1x10x128x128xf32>
    tpu.vector_store %arg4[%c0_13, %c0_14, %c0_15, %c0_16, %c0_17], %33 {strides = array<i32>} : memref<1x1x10x128x128xf32, #tpu.memory_space<vmem>>, vector<1x1x10x128x128xf32>,
    return
  }
  func.func @transform_0(%arg0: i32, %arg1: i32) -> (i32, i32, i32) {
    %c0_i32 = arith.constant 0 : i32
    %c0_i32_0 = arith.constant 0 : i32
    %c0_i32_1 = arith.constant 0 : i32
    return %arg0, %c0_i32, %c0_i32_0 : i32, i32, i32
  }
  func.func @transform_1(%arg0: i32, %arg1: i32) -> (i32, i32, i32, i32) {
    %c0_i32 = arith.constant 0 : i32
    %c0_i32_0 = arith.constant 0 : i32
    %c0_i32_1 = arith.constant 0 : i32
    return %arg0, %arg1, %c0_i32, %c0_i32_0 : i32, i32, i32, i32
  }
  func.func @transform_2(%arg0: i32, %arg1: i32) -> (i32, i32, i32, i32, i32) {
    %c0_i32 = arith.constant 0 : i32
    %c0_i32_0 = arith.constant 0 : i32
    %c0_i32_1 = arith.constant 0 : i32
    %c0_i32_2 = arith.constant 0 : i32
    return %arg0, %arg1, %c0_i32, %c0_i32_0, %c0_i32_1 : i32, i32, i32, i32, i32
  }
}

</mosaic_0001>

<llo_original>
// kernel: custom-call.2
$region0: #{custom-call.2}
  %s0 = inlined_call_operand.vmem [shape: f32[2,8,8], index: 0, kind: input, shape index: {}]
  %s1 = inlined_call_operand.vmem [shape: f32[2,8,8], index: 1, kind: input, shape index: {}]
  %s2 = inlined_call_operand.vmem [shape: f32[2,8,8], index: 2, kind: input, shape index: {}]
  %s3 = inlined_call_operand.vmem [shape: f32[2,8,8], index: 3, kind: input, shape index: {}]
  %s4 = inlined_call_operand.vmem [shape: f32[2,8], index: 4, kind: output, shape index: {0}]
  %s5 = inlined_call_operand.vmem [shape: f32[2,8], index: 5, kind: output, shape index: {1}]
  %s6 = inlined_call_operand.vmem [shape: f32[2,8,8], index: 6, kind: output, shape index: {2}]
  %s7 = inlined_call_operand.vmem [shape: f32[2,8,8], index: 7, kind: output, shape index: {3}]
  %s8 = inlined_call_operand.vmem [shape: f32[2,8,8], index: 8, kind: output, shape index: {4}]
  %s9 = inlined_call_operand.vmem [shape: f32[2,8,8], index: 9, kind: output, shape index: {5}]
  %10 = xla_tuple %s4, %s5, %s6, %s7, %s8, %s9
  $region1: #{custom-call.2} parent=0
    #allocation0 [shape = 'u8[8192]{0}', space=vmem, size = 0x2000, scoped, tag = 'operand span for operand 0']
    #allocation1 [shape = 'u8[8192]{0}', space=vmem, size = 0x2000, scoped, tag = 'operand span for operand 1']
    #allocation2 [shape = 'u8[8192]{0}', space=vmem, size = 0x2000, scoped, tag = 'operand span for operand 2']
    #allocation3 [shape = 'u8[8192]{0}', space=vmem, size = 0x2000, scoped, tag = 'operand span for operand 3']
    #allocation4 [shape = 'u8[4096]{0}', space=vmem, size = 0x1000, scoped, tag = 'operand span for operand 4']
    #allocation5 [shape = 'u8[2048]{0}', space=vmem, size = 0x800, scoped, tag = 'packed  for operand 4']
    #allocation6 [shape = 'u8[4096]{0}', space=vmem, size = 0x1000, scoped, tag = 'operand span for operand 5']
    #allocation7 [shape = 'u8[2048]{0}', space=vmem, size = 0x800, scoped, tag = 'packed  for operand 5']
    #allocation8 [shape = 'u8[8192]{0}', space=vmem, size = 0x2000, scoped, tag = 'operand span for operand 6']
    #allocation9 [shape = 'u8[8192]{0}', space=vmem, size = 0x2000, scoped, tag = 'operand span for operand 7']
    #allocation10 [shape = 'u8[8192]{0}', space=vmem, size = 0x2000, scoped, tag = 'operand span for operand 8']
    #allocation11 [shape = 'u8[8192]{0}', space=vmem, size = 0x2000, scoped, tag = 'operand span for operand 9']
    loop: start=0, step=1, limit=4
    $region2: #{custom-call.2} parent=1 // loop_pre_header
      _
    $region3: #{custom-call.2} parent=1 // loop_header
      %s12 = sphi 0, %s16
      %p13 = scmp.ge.s32.totalorder %s12, 4
      %s24 = sphi 0, %s26
      %s27 = sphi 0, %s24
      %s28 = sphi 0, %s27
      %s44 = sphi 0, %s28
      %s52 = sphi 0, %s54
      %s55 = sphi 0, %s52
      %s56 = sphi 0, %s55
      %s72 = sphi 0, %s56
    $region4: #{custom-call.2} parent=1 // loop_header_branch
      %15 = sbr.rel (%p13) target = $region8
    $region5: #{custom-call.2} parent=1 // loop_body
      %s17 = ssub.s32 %s12, 1
      %s18 = ssub.s32 %s12, 2
      %s19 = sadd.s32 %s12, 1
      %s20 = sshrl.u32 %s12, 3
      %s21 = sshrl.u32 %s19, 3
      %s22 = ssub.s32 %s20, %s21
      %p23 = scmp.eq.s32.totalorder %s22, 0
      %s25 = sadd.s32 %s24, 1
      %s26 = scalar_select %p23, %s24, %s25
      %p29 = pneg %p23
      %p30 = scmp.eq.s32.totalorder %s12, 1
      %p31 = por %p29, %p30
      %p32 = scmp.ne.s32.totalorder %s24, %s27
      %p33 = scmp.eq.s32.totalorder %s12, 0
      %p34 = por %p32, %p33
      %p35 = scmp.ne.s32.totalorder %s24, %s27
      %p36 = scmp.eq.s32.totalorder %s17, 1
      %p37 = por %p35, %p36
      %p38 = scmp.ne.s32.totalorder %s27, %s28
      %p39 = scmp.eq.s32.totalorder %s17, 0
      %p40 = por %p38, %p39
      %p41 = scmp.ne.s32.totalorder %s27, %s28
      %p42 = scmp.eq.s32.totalorder %s18, 1
      %p43 = por %p41, %p42
      %p45 = scmp.ne.s32.totalorder %s28, %s44
      %p46 = scmp.eq.s32.totalorder %s18, 0
      %p47 = por %p45, %p46
      %s48 = sshrl.u32 %s12, 3
      %s49 = sshrl.u32 %s19, 3
      %s50 = ssub.s32 %s48, %s49
      %p51 = scmp.eq.s32.totalorder %s50, 0
      %s53 = sadd.s32 %s52, 1
      %s54 = scalar_select %p51, %s52, %s53
      %p57 = pneg %p51
      %p58 = scmp.eq.s32.totalorder %s12, 1
      %p59 = por %p57, %p58
      %p60 = scmp.ne.s32.totalorder %s52, %s55
      %p61 = scmp.eq.s32.totalorder %s12, 0
      %p62 = por %p60, %p61
      %p63 = scmp.ne.s32.totalorder %s52, %s55
      %p64 = scmp.eq.s32.totalorder %s17, 1
      %p65 = por %p63, %p64
      %p66 = scmp.ne.s32.totalorder %s55, %s56
      %p67 = scmp.eq.s32.totalorder %s17, 0
      %p68 = por %p66, %p67
      %p69 = scmp.ne.s32.totalorder %s55, %s56
      %p70 = scmp.eq.s32.totalorder %s18, 1
      %p71 = por %p69, %p70
      %p73 = scmp.ne.s32.totalorder %s56, %s72
      %p74 = scmp.eq.s32.totalorder %s18, 0
      %p75 = por %p73, %p74
      %p76 = scmp.le.s32.totalorder 1, %s12
      %p77 = scmp.lt.s32.totalorder %s12, 3
      %p78 = pnand %p76, %p77
      %p79 = pneg %p78
      // Predicated region
      $region9: #{custom-call.2} parent=5 // pred_check
        _
      $region10: #{custom-call.2} parent=5 // pred_check_branch
        %81 = sbr.rel (%p78) target = $region12
      $region11: #{custom-call.2} parent=5 // pred_region
        %s82 = ssub.s32 %s12, 1
      $region12: #{custom-call.2} parent=5 // pred_fallthru
        _
      %p83 = scmp.lt.s32.totalorder %s12, 2
      // Predicated region
      $region13: #{custom-call.2} parent=5 // pred_check
        %p84 = pneg %p83
      $region14: #{custom-call.2} parent=5 // pred_check_branch
        %86 = sbr.rel (%p84) target = $region16
      $region15: #{custom-call.2} parent=5 // pred_region
        %s87 = sand.u32 %s12, 1
        %s88 = sand.u32 %s12, 1
        %s89 = smul.addr %s88, 8
        %s90 = scalar_lea.vmem [#allocation0], %s89
        %s91 = smul.addr %s12, 8
        %s92 = scalar_lea.vmem %s0, %s91
        // Predicated region
        $region17: #{custom-call.2} parent=15 // pred_check
          _
        $region18: #{custom-call.2} parent=15 // pred_check_branch
          %94 = sbr.rel (0) target = $region20
        $region19: #{custom-call.2} parent=15 // pred_region
          // Predicated region
          $region21: #{custom-call.2} parent=19 // pred_check
            _
          $region22: #{custom-call.2} parent=19 // pred_check_branch
            %96 = sbr.rel (0) target = $region24
          $region23: #{custom-call.2} parent=19 // pred_region
            // Predicated region
            $region36: #{custom-call.2} parent=23 // pred_check
              _
            $region37: #{custom-call.2} parent=23 // pred_check_branch
              %111 = sbr.rel (0) target = $region39
            $region38: #{custom-call.2} parent=23 // pred_region
              loop: start=0, step=1, limit=1
              $region40: #{custom-call.2} parent=38 // loop_pre_header
                _
              $region41: #{custom-call.2} parent=38 // loop_header
                %s113 = sphi 0, %s117
                %p114 = scmp.ge.s32.totalorder %s113, 1
                %s118 = sphi %s92, %s92
                %s119 = sphi %s90, %s90
              $region42: #{custom-call.2} parent=38 // loop_header_branch
                %116 = sbr.rel (%p114) target = $region46
              $region43: #{custom-call.2} parent=38 // loop_body
                %v120 = vld [vmem:[%s118] sm:$0xff]
                %121 = vst [vmem:[%s119] sm:$0xff] %v120
              $region44: #{custom-call.2} parent=38 // loop_footer
                %s117 = sadd.s32 1, %s113
              $region45: #{custom-call.2} parent=38 // loop_footer_branch
                %112 = sbr.rel target = $region41
              $region46: #{custom-call.2} parent=38 // loop_exit
                _
            $region39: #{custom-call.2} parent=23 // pred_fallthru
              _
            // Predicated region
            $region47: #{custom-call.2} parent=23 // pred_check
              _
            $region48: #{custom-call.2} parent=23 // pred_check_branch
              %123 = sbr.rel target = $region50
            $region49: #{custom-call.2} parent=23 // pred_region
              _
            $region50: #{custom-call.2} parent=23 // pred_fallthru
              _
          $region24: #{custom-call.2} parent=19 // pred_fallthru
            _
          // Predicated region
          $region25: #{custom-call.2} parent=19 // pred_check
            _
          $region26: #{custom-call.2} parent=19 // pred_check_branch
            %98 = sbr.rel target = $region28
          $region27: #{custom-call.2} parent=19 // pred_region
            loop: start=0, step=1, limit=1
            $region29: #{custom-call.2} parent=27 // loop_pre_header
              _
            $region30: #{custom-call.2} parent=27 // loop_header
              %s101 = sphi 0, %s105
              %p102 = scmp.ge.s32.totalorder %s101, 1
              %s106 = sphi %s92, %s92
              %s107 = sphi %s90, %s90
            $region31: #{custom-call.2} parent=27 // loop_header_branch
              %104 = sbr.rel (%p102) target = $region35
            $region32: #{custom-call.2} parent=27 // loop_body
              %v108 = vld [vmem:[%s106] sm:$0xff]
              %109 = vst [vmem:[%s107] sm:$0xff] %v108
            $region33: #{custom-call.2} parent=27 // loop_footer
              %s105 = sadd.s32 1, %s101
            $region34: #{custom-call.2} parent=27 // loop_footer_branch
              %100 = sbr.rel target = $region30
            $region35: #{custom-call.2} parent=27 // loop_exit
              _
          $region28: #{custom-call.2} parent=19 // pred_fallthru
            _
        $region20: #{custom-call.2} parent=15 // pred_fallthru
          _
        %124 = vnop
        %s125 = sand.u32 %s12, 1
        %s126 = sand.u32 %s12, 1
        %s127 = smul.addr %s126, 8
        %s128 = scalar_lea.vmem [#allocation1], %s127
        %s129 = smul.addr %s12, 8
        %s130 = scalar_lea.vmem %s1, %s129
        // Predicated region
        $region51: #{custom-call.2} parent=15 // pred_check
          _
        $region52: #{custom-call.2} parent=15 // pred_check_branch
          %132 = sbr.rel (0) target = $region54
        $region53: #{custom-call.2} parent=15 // pred_region
          // Predicated region
          $region55: #{custom-call.2} parent=53 // pred_check
            _
          $region56: #{custom-call.2} parent=53 // pred_check_branch
            %134 = sbr.rel (0) target = $region58
          $region57: #{custom-call.2} parent=53 // pred_region
            // Predicated region
            $region70: #{custom-call.2} parent=57 // pred_check
              _
            $region71: #{custom-call.2} parent=57 // pred_check_branch
              %149 = sbr.rel (0) target = $region73
            $region72: #{custom-call.2} parent=57 // pred_region
              loop: start=0, step=1, limit=1
              $region74: #{custom-call.2} parent=72 // loop_pre_header
                _
              $region75: #{custom-call.2} parent=72 // loop_header
                %s151 = sphi 0, %s155
                %p152 = scmp.ge.s32.totalorder %s151, 1
                %s156 = sphi %s130, %s130
                %s157 = sphi %s128, %s128
              $region76: #{custom-call.2} parent=72 // loop_header_branch
                %154 = sbr.rel (%p152) target = $region80
              $region77: #{custom-call.2} parent=72 // loop_body
                %v158 = vld [vmem:[%s156] sm:$0xff]
                %159 = vst [vmem:[%s157] sm:$0xff] %v158
              $region78: #{custom-call.2} parent=72 // loop_footer
                %s155 = sadd.s32 1, %s151
              $region79: #{custom-call.2} parent=72 // loop_footer_branch
                %150 = sbr.rel target = $region75
              $region80: #{custom-call.2} parent=72 // loop_exit
                _
            $region73: #{custom-call.2} parent=57 // pred_fallthru
              _
            // Predicated region
            $region81: #{custom-call.2} parent=57 // pred_check
              _
            $region82: #{custom-call.2} parent=57 // pred_check_branch
              %161 = sbr.rel target = $region84
            $region83: #{custom-call.2} parent=57 // pred_region
              _
            $region84: #{custom-call.2} parent=57 // pred_fallthru
              _
          $region58: #{custom-call.2} parent=53 // pred_fallthru
            _
          // Predicated region
          $region59: #{custom-call.2} parent=53 // pred_check
            _
          $region60: #{custom-call.2} parent=53 // pred_check_branch
            %136 = sbr.rel target = $region62
          $region61: #{custom-call.2} parent=53 // pred_region
            loop: start=0, step=1, limit=1
            $region63: #{custom-call.2} parent=61 // loop_pre_header
              _
            $region64: #{custom-call.2} parent=61 // loop_header
              %s139 = sphi 0, %s143
              %p140 = scmp.ge.s32.totalorder %s139, 1
              %s144 = sphi %s130, %s130
              %s145 = sphi %s128, %s128
            $region65: #{custom-call.2} parent=61 // loop_header_branch
              %142 = sbr.rel (%p140) target = $region69
            $region66: #{custom-call.2} parent=61 // loop_body
              %v146 = vld [vmem:[%s144] sm:$0xff]
              %147 = vst [vmem:[%s145] sm:$0xff] %v146
            $region67: #{custom-call.2} parent=61 // loop_footer
              %s143 = sadd.s32 1, %s139
            $region68: #{custom-call.2} parent=61 // loop_footer_branch
              %138 = sbr.rel target = $region64
            $region69: #{custom-call.2} parent=61 // loop_exit
              _
          $region62: #{custom-call.2} parent=53 // pred_fallthru
            _
        $region54: #{custom-call.2} parent=15 // pred_fallthru
          _
        %162 = vnop
        %s163 = sand.u32 %s12, 1
        %s164 = sand.u32 %s12, 1
        %s165 = smul.addr %s164, 8
        %s166 = scalar_lea.vmem [#allocation2], %s165
        %s167 = smul.addr %s12, 8
        %s168 = scalar_lea.vmem %s2, %s167
        // Predicated region
        $region85: #{custom-call.2} parent=15 // pred_check
          _
        $region86: #{custom-call.2} parent=15 // pred_check_branch
          %170 = sbr.rel (0) target = $region88
        $region87: #{custom-call.2} parent=15 // pred_region
          // Predicated region
          $region89: #{custom-call.2} parent=87 // pred_check
            _
          $region90: #{custom-call.2} parent=87 // pred_check_branch
            %172 = sbr.rel (0) target = $region92
          $region91: #{custom-call.2} parent=87 // pred_region
            // Predicated region
            $region104: #{custom-call.2} parent=91 // pred_check
              _
            $region105: #{custom-call.2} parent=91 // pred_check_branch
              %187 = sbr.rel (0) target = $region107
            $region106: #{custom-call.2} parent=91 // pred_region
              loop: start=0, step=1, limit=1
              $region108: #{custom-call.2} parent=106 // loop_pre_header
                _
              $region109: #{custom-call.2} parent=106 // loop_header
                %s189 = sphi 0, %s193
                %p190 = scmp.ge.s32.totalorder %s189, 1
                %s194 = sphi %s168, %s168
                %s195 = sphi %s166, %s166
              $region110: #{custom-call.2} parent=106 // loop_header_branch
                %192 = sbr.rel (%p190) target = $region114
              $region111: #{custom-call.2} parent=106 // loop_body
                %v196 = vld [vmem:[%s194] sm:$0xff]
                %197 = vst [vmem:[%s195] sm:$0xff] %v196
              $region112: #{custom-call.2} parent=106 // loop_footer
                %s193 = sadd.s32 1, %s189
              $region113: #{custom-call.2} parent=106 // loop_footer_branch
                %188 = sbr.rel target = $region109
              $region114: #{custom-call.2} parent=106 // loop_exit
                _
            $region107: #{custom-call.2} parent=91 // pred_fallthru
              _
            // Predicated region
            $region115: #{custom-call.2} parent=91 // pred_check
              _
            $region116: #{custom-call.2} parent=91 // pred_check_branch
              %199 = sbr.rel target = $region118
            $region117: #{custom-call.2} parent=91 // pred_region
              _
            $region118: #{custom-call.2} parent=91 // pred_fallthru
              _
          $region92: #{custom-call.2} parent=87 // pred_fallthru
            _
          // Predicated region
          $region93: #{custom-call.2} parent=87 // pred_check
            _
          $region94: #{custom-call.2} parent=87 // pred_check_branch
            %174 = sbr.rel target = $region96
          $region95: #{custom-call.2} parent=87 // pred_region
            loop: start=0, step=1, limit=1
            $region97: #{custom-call.2} parent=95 // loop_pre_header
              _
            $region98: #{custom-call.2} parent=95 // loop_header
              %s177 = sphi 0, %s181
              %p178 = scmp.ge.s32.totalorder %s177, 1
              %s182 = sphi %s168, %s168
              %s183 = sphi %s166, %s166
            $region99: #{custom-call.2} parent=95 // loop_header_branch
              %180 = sbr.rel (%p178) target = $region103
            $region100: #{custom-call.2} parent=95 // loop_body
              %v184 = vld [vmem:[%s182] sm:$0xff]
              %185 = vst [vmem:[%s183] sm:$0xff] %v184
            $region101: #{custom-call.2} parent=95 // loop_footer
              %s181 = sadd.s32 1, %s177
            $region102: #{custom-call.2} parent=95 // loop_footer_branch
              %176 = sbr.rel target = $region98
            $region103: #{custom-call.2} parent=95 // loop_exit
              _
          $region96: #{custom-call.2} parent=87 // pred_fallthru
            _
        $region88: #{custom-call.2} parent=15 // pred_fallthru
          _
        %200 = vnop
        %s201 = sand.u32 %s12, 1
        %s202 = sand.u32 %s12, 1
        %s203 = smul.addr %s202, 8
        %s204 = scalar_lea.vmem [#allocation3], %s203
        %s205 = smul.addr %s12, 8
        %s206 = scalar_lea.vmem %s3, %s205
        // Predicated region
        $region119: #{custom-call.2} parent=15 // pred_check
          _
        $region120: #{custom-call.2} parent=15 // pred_check_branch
          %208 = sbr.rel (0) target = $region122
        $region121: #{custom-call.2} parent=15 // pred_region
          // Predicated region
          $region123: #{custom-call.2} parent=121 // pred_check
            _
          $region124: #{custom-call.2} parent=121 // pred_check_branch
            %210 = sbr.rel (0) target = $region126
          $region125: #{custom-call.2} parent=121 // pred_region
            // Predicated region
            $region138: #{custom-call.2} parent=125 // pred_check
              _
            $region139: #{custom-call.2} parent=125 // pred_check_branch
              %225 = sbr.rel (0) target = $region141
            $region140: #{custom-call.2} parent=125 // pred_region
              loop: start=0, step=1, limit=1
              $region142: #{custom-call.2} parent=140 // loop_pre_header
                _
              $region143: #{custom-call.2} parent=140 // loop_header
                %s227 = sphi 0, %s231
                %p228 = scmp.ge.s32.totalorder %s227, 1
                %s232 = sphi %s206, %s206
                %s233 = sphi %s204, %s204
              $region144: #{custom-call.2} parent=140 // loop_header_branch
                %230 = sbr.rel (%p228) target = $region148
              $region145: #{custom-call.2} parent=140 // loop_body
                %v234 = vld [vmem:[%s232] sm:$0xff]
                %235 = vst [vmem:[%s233] sm:$0xff] %v234
              $region146: #{custom-call.2} parent=140 // loop_footer
                %s231 = sadd.s32 1, %s227
              $region147: #{custom-call.2} parent=140 // loop_footer_branch
                %226 = sbr.rel target = $region143
              $region148: #{custom-call.2} parent=140 // loop_exit
                _
            $region141: #{custom-call.2} parent=125 // pred_fallthru
              _
            // Predicated region
            $region149: #{custom-call.2} parent=125 // pred_check
              _
            $region150: #{custom-call.2} parent=125 // pred_check_branch
              %237 = sbr.rel target = $region152
            $region151: #{custom-call.2} parent=125 // pred_region
              _
            $region152: #{custom-call.2} parent=125 // pred_fallthru
              _
          $region126: #{custom-call.2} parent=121 // pred_fallthru
            _
          // Predicated region
          $region127: #{custom-call.2} parent=121 // pred_check
            _
          $region128: #{custom-call.2} parent=121 // pred_check_branch
            %212 = sbr.rel target = $region130
          $region129: #{custom-call.2} parent=121 // pred_region
            loop: start=0, step=1, limit=1
            $region131: #{custom-call.2} parent=129 // loop_pre_header
              _
            $region132: #{custom-call.2} parent=129 // loop_header
              %s215 = sphi 0, %s219
              %p216 = scmp.ge.s32.totalorder %s215, 1
              %s220 = sphi %s206, %s206
              %s221 = sphi %s204, %s204
            $region133: #{custom-call.2} parent=129 // loop_header_branch
              %218 = sbr.rel (%p216) target = $region137
            $region134: #{custom-call.2} parent=129 // loop_body
              %v222 = vld [vmem:[%s220] sm:$0xff]
              %223 = vst [vmem:[%s221] sm:$0xff] %v222
            $region135: #{custom-call.2} parent=129 // loop_footer
              %s219 = sadd.s32 1, %s215
            $region136: #{custom-call.2} parent=129 // loop_footer_branch
              %214 = sbr.rel target = $region132
            $region137: #{custom-call.2} parent=129 // loop_exit
              _
          $region130: #{custom-call.2} parent=121 // pred_fallthru
            _
        $region122: #{custom-call.2} parent=15 // pred_fallthru
          _
        %238 = vnop
      $region16: #{custom-call.2} parent=5 // pred_fallthru
        _
      %p239 = scmp.le.s32.totalorder 1, %s12
      %p240 = scmp.lt.s32.totalorder %s12, 3
      %p241 = pnand %p239, %p240
      %p242 = pneg %p241
      // Predicated region
      $region153: #{custom-call.2} parent=5 // pred_check
        _
      $region154: #{custom-call.2} parent=5 // pred_check_branch
        %244 = sbr.rel (%p241) target = $region156
      $region155: #{custom-call.2} parent=5 // pred_region
        #allocation12 [shape = 'f32[8,8]{1,0}', space=vmem, size = 0x1000, scoped, tag = 'a top-left matrix']
        #allocation13 [shape = 'f32[8,8]{1,0}', space=vmem, size = 0x1000, scoped, tag = 'a top-right matrix']
        #allocation14 [shape = 'f32[8,8]{1,0}', space=vmem, size = 0x1000, scoped, tag = 'a bottom-left matrix']
        #allocation15 [shape = 'f32[8,8]{1,0}', space=vmem, size = 0x1000, scoped, tag = 'a bottom-right matrix']
        %s245 = ssub.s32 %s12, 1
        %s246 = sand.u32 %s17, 1
        %s247 = sand.u32 %s17, 1
        %s248 = smul.addr %s247, 8
        %s249 = scalar_lea.vmem [#allocation0], %s248
        %s250 = sand.u32 %s17, 1
        %s251 = sand.u32 %s17, 1
        %s252 = smul.addr %s251, 8
        %s253 = scalar_lea.vmem [#allocation1], %s252
        %s254 = sand.u32 %s17, 1
        %s255 = sand.u32 %s17, 1
        %s256 = smul.addr %s255, 8
        %s257 = scalar_lea.vmem [#allocation2], %s256
        %s258 = sand.u32 %s17, 1
        %s259 = sand.u32 %s17, 1
        %s260 = smul.addr %s259, 8
        %s261 = scalar_lea.vmem [#allocation3], %s260
        %s262 = sand.u32 %s17, 1
        %s263 = sand.u32 %s17, 1
        %s264 = smul.addr %s263, 8
        %s265 = scalar_lea.vmem [#allocation0], %s264
        %s266 = sand.u32 %s17, 1
        %s267 = sand.u32 %s17, 1
        %s268 = smul.addr %s267, 8
        %s269 = scalar_lea.vmem [#allocation1], %s268
        %s270 = sand.u32 %s17, 1
        %s271 = sand.u32 %s17, 1
        %s272 = smul.addr %s271, 8
        %s273 = scalar_lea.vmem [#allocation2], %s272
        %s274 = sand.u32 %s17, 1
        %s275 = sand.u32 %s17, 1
        %s276 = smul.addr %s275, 8
        %s277 = scalar_lea.vmem [#allocation3], %s276
        %p278 = pneg %p40
        %p279 = pneg %p37
        %s280 = sand.u32 %s27, 1
        %s281 = sand.u32 %s27, 1
        %s282 = smul.addr %s281, 2
        %s283 = scalar_lea.vmem [#allocation5], %s282
        %p284 = pneg %p68
        %p285 = pneg %p65
        %s286 = sand.u32 %s55, 1
        %s287 = sand.u32 %s55, 1
        %s288 = smul.addr %s287, 2
        %s289 = scalar_lea.vmem [#allocation7], %s288
        %s290 = sand.u32 %s17, 1
        %s291 = sand.u32 %s17, 1
        %s292 = smul.addr %s291, 8
        %s293 = scalar_lea.vmem [#allocation8], %s292
        %s294 = sand.u32 %s17, 1
        %s295 = sand.u32 %s17, 1
        %s296 = smul.addr %s295, 8
        %s297 = scalar_lea.vmem [#allocation9], %s296
        %s298 = sand.u32 %s17, 1
        %s299 = sand.u32 %s17, 1
        %s300 = smul.addr %s299, 8
        %s301 = scalar_lea.vmem [#allocation10], %s300
        %s302 = sand.u32 %s17, 1
        %s303 = sand.u32 %s17, 1
        %s304 = smul.addr %s303, 8
        %s305 = scalar_lea.vmem [#allocation11], %s304
        %s306 = sshrl.u32 %s17, 3
        %s307 = sshrl.u32 %s17, 3
        %s308 = smov [#allocation12]
        %v309 = vld [vmem:[%s249] sm:$0xff]
        %310 = vst [vmem:[%s308] sm:$0xff] %v309
        %s311 = smov [#allocation13]
        %v312 = vld [vmem:[%s253] sm:$0xff]
        %313 = vst [vmem:[%s311] sm:$0xff] %v312
        %s314 = smov [#allocation14]
        %v315 = vld [vmem:[%s257] sm:$0xff]
        %316 = vst [vmem:[%s314] sm:$0xff] %v315
        %s317 = smov [#allocation15]
        %v318 = vld [vmem:[%s261] sm:$0xff]
        %319 = vst [vmem:[%s317] sm:$0xff] %v318
        %320 = vst [vmem:[%s293] sm:$0xff] 0.0
        %321 = vst [vmem:[%s297] sm:$0xff] 0.0
        %322 = vst [vmem:[%s301] sm:$0xff] 0.0
        %323 = vst [vmem:[%s305] sm:$0xff] 0.0
        %s324 = smov %s293
        %v325 = vlaneseq
        %v326 = vand.u32 %v325, 127
        %v327 = vmov %v326
        %v328 = vlaneseq
        %v329 = vshrl.u32 %v328, 7
        %v330 = vmov %v329
        %v331 = vld [vmem:[%s324] sm:$0xff]
        %vm334 = vcmp.eq.s32.totalorder %v330, %v327
        %v335 = vsel %vm334, 1.0, %v331
        %336 = vst [vmem:[%s324] sm:$0xff] %v335
        %s337 = smov %s305
        %v338 = vlaneseq
        %v339 = vand.u32 %v338, 127
        %v340 = vmov %v339
        %v341 = vlaneseq
        %v342 = vshrl.u32 %v341, 7
        %v343 = vmov %v342
        %v344 = vld [vmem:[%s337] sm:$0xff]
        %vm347 = vcmp.eq.s32.totalorder %v343, %v340
        %v348 = vsel %vm347, 1.0, %v344
        %349 = vst [vmem:[%s337] sm:$0xff] %v348
        // While loop
        $region157: #{custom-call.2} parent=155 // loop_pre_header
          _
        $region158: #{custom-call.2} parent=155 // loop_header
          %s351 = sphi 0, %s893
          %v352 = vlaneseq
          %v353 = vand.u32 %v352, 127
          %v354 = vmov %v353
          %v355 = vlaneseq
          %v356 = vshrl.u32 %v355, 7
          %v357 = vmov %v356
          %s358 = smov [#allocation12]
          %v359 = vlaneseq
          %v360 = vand.u32 %v359, 127
          %vm361 = vcmp.ge.s32.totalorder %v360, 0
          %vm362 = vcmp.lt.s32.totalorder %v360, 8
          %vm363 = vmand %vm361, %vm362
          %v364 = vld [vmem:[%s358] sm:$0xff]
          %v365 = vsel %vm363, %v364, 0.0
          %v366 = vmul.f32 %v365, %v365
          %vm369 = vcmp.eq.s32.totalorder %v357, %v354
          %v370 = vsel %vm369, 0.0, %v366
          %v371 = vlaneseq
          %v372 = vand.u32 %v371, 127
          %v373 = vmov %v372
          %v374 = vlaneseq
          %v375 = vshrl.u32 %v374, 7
          %v376 = vmov %v375
          %s377 = smov [#allocation13]
          %v378 = vlaneseq
          %v379 = vand.u32 %v378, 127
          %vm380 = vcmp.ge.s32.totalorder %v379, 0
          %vm381 = vcmp.lt.s32.totalorder %v379, 8
          %vm382 = vmand %vm380, %vm381
          %v383 = vld [vmem:[%s377] sm:$0xff]
          %v384 = vsel %vm382, %v383, 0.0
          %v385 = vmul.f32 %v384, %v384
          %v386 = vadd.f32 %v370, %v385
          %v387 = vadd.f32 %v366, %v385
          %v388 = vlaneseq
          %v389 = vand.u32 %v388, 127
          %v390 = vmov %v389
          %v391 = vlaneseq
          %v392 = vshrl.u32 %v391, 7
          %v393 = vmov %v392
          %s394 = smov [#allocation14]
          %v395 = vlaneseq
          %v396 = vand.u32 %v395, 127
          %vm397 = vcmp.ge.s32.totalorder %v396, 0
          %vm398 = vcmp.lt.s32.totalorder %v396, 8
          %vm399 = vmand %vm397, %vm398
          %v400 = vld [vmem:[%s394] sm:$0xff]
          %v401 = vsel %vm399, %v400, 0.0
          %v402 = vmul.f32 %v401, %v401
          %v403 = vadd.f32 %v386, %v402
          %v404 = vadd.f32 %v387, %v402
          %v405 = vlaneseq
          %v406 = vand.u32 %v405, 127
          %v407 = vmov %v406
          %v408 = vlaneseq
          %v409 = vshrl.u32 %v408, 7
          %v410 = vmov %v409
          %s411 = smov [#allocation15]
          %v412 = vlaneseq
          %v413 = vand.u32 %v412, 127
          %vm414 = vcmp.ge.s32.totalorder %v413, 0
          %vm415 = vcmp.lt.s32.totalorder %v413, 8
          %vm416 = vmand %vm414, %vm415
          %v417 = vld [vmem:[%s411] sm:$0xff]
          %v418 = vsel %vm416, %v417, 0.0
          %v419 = vmul.f32 %v418, %v418
          %vm422 = vcmp.eq.s32.totalorder %v410, %v407
          %v423 = vsel %vm422, 0.0, %v419
          %v424 = vadd.f32 %v403, %v423
          %v425 = vadd.f32 %v404, %v419
          %426 = vadd.xlane.f32.xlu0 %v425
          %v427 = vpop.xlane.xlu0 %426
          %v428 = vrot.slane %v427, 4
          %v429 = vadd.f32 %v427, %v428
          %v430 = vrot.slane %v429, 2
          %v431 = vadd.f32 %v429, %v430
          %v432 = vrot.slane %v431, 1
          %v433 = vadd.f32 %v431, %v432
          %434 = vadd.xlane.f32.xlu0 %v424
          %v435 = vpop.xlane.xlu0 %434
          %v436 = vrot.slane %v435, 4
          %v437 = vadd.f32 %v435, %v436
          %v438 = vrot.slane %v437, 2
          %v439 = vadd.f32 %v437, %v438
          %v440 = vrot.slane %v439, 1
          %v441 = vadd.f32 %v439, %v440
          %s442 = vtos %v441
          %s443 = vtos %v433
          %s444 = smul.f32 1e-10, %s443
          %p445 = scmp.le.f32.partialorder %s442, %s444
          %p446 = scmp.ge.s32.totalorder %s351, 15
          %p447 = por %p445, %p446
        $region159: #{custom-call.2} parent=155 // loop_header_branch
          %895 = sbr.rel (%p447) target = $region163
        $region160: #{custom-call.2} parent=155 // loop_body
          loop: start=0, step=1, limit=15
          $region164: #{custom-call.2} parent=160 // loop_pre_header
            _
          $region165: #{custom-call.2} parent=160 // loop_header
            %s449 = sphi 0, %s453
            %p450 = scmp.ge.s32.totalorder %s449, 15
          $region166: #{custom-call.2} parent=160 // loop_header_branch
            %452 = sbr.rel (%p450) target = $region170
          $region167: #{custom-call.2} parent=160 // loop_body
            #allocation16 [shape = 'f32[1024]{0}', space=vmem, size = 0x1000, scoped, tag = 'a_tl_diag vmem']
            #allocation17 [shape = 'f32[1024]{0}', space=vmem, size = 0x1000, scoped, tag = 'a_tr_diag vmem']
            #allocation18 [shape = 'f32[1024]{0}', space=vmem, size = 0x1000, scoped, tag = 'a_br_diag vmem']
            #allocation19 [shape = 'f32[1024]{0}', space=vmem, size = 0x1000, scoped, tag = 'rt1 vmem']
            #allocation20 [shape = 'f32[1024]{0}', space=vmem, size = 0x1000, scoped, tag = 'rt2 vmem']
            #allocation21 [shape = 'f32[1024]{0}', space=vmem, size = 0x1000, scoped, tag = 'c vmem']
            #allocation22 [shape = 'f32[1024]{0}', space=vmem, size = 0x1000, scoped, tag = 's vmem']
            #allocation23 [shape = 'f32[4096]{0}', space=vmem, size = 0x4000, scoped, tag = 'c broadcast']
            #allocation24 [shape = 'f32[4096]{0}', space=vmem, size = 0x4000, scoped, tag = 's broadcast']
            %s454 = smov [#allocation12]
            %s455 = smov [#allocation16]
            %v456 = vlaneseq
            %v457 = vand.u32 %v456, 127
            %v458 = vmov %v457
            %v459 = vlaneseq
            %v460 = vshrl.u32 %v459, 7
            %v461 = vmov %v460
            %v462 = vld [vmem:[%s454] sm:$0xff]
            %vm465 = vcmp.eq.s32.totalorder %v461, %v458
            %v466 = vsel %vm465, %v462, 0.0
            %v467 = vrot.slane %v466, 4
            %v468 = vadd.f32 %v466, %v467
            %v469 = vrot.slane %v468, 2
            %v470 = vadd.f32 %v468, %v469
            %v471 = vrot.slane %v470, 1
            %v472 = vadd.f32 %v470, %v471
            %473 = vst [vmem:[%s455] sm:$0x1] %v472
            %s474 = smov [#allocation13]
            %s475 = smov [#allocation17]
            %v476 = vlaneseq
            %v477 = vand.u32 %v476, 127
            %v478 = vmov %v477
            %v479 = vlaneseq
            %v480 = vshrl.u32 %v479, 7
            %v481 = vmov %v480
            %v482 = vld [vmem:[%s474] sm:$0xff]
            %vm485 = vcmp.eq.s32.totalorder %v481, %v478
            %v486 = vsel %vm485, %v482, 0.0
            %v487 = vrot.slane %v486, 4
            %v488 = vadd.f32 %v486, %v487
            %v489 = vrot.slane %v488, 2
            %v490 = vadd.f32 %v488, %v489
            %v491 = vrot.slane %v490, 1
            %v492 = vadd.f32 %v490, %v491
            %493 = vst [vmem:[%s475] sm:$0x1] %v492
            %s494 = smov [#allocation15]
            %s495 = smov [#allocation18]
            %v496 = vlaneseq
            %v497 = vand.u32 %v496, 127
            %v498 = vmov %v497
            %v499 = vlaneseq
            %v500 = vshrl.u32 %v499, 7
            %v501 = vmov %v500
            %v502 = vld [vmem:[%s494] sm:$0xff]
            %vm505 = vcmp.eq.s32.totalorder %v501, %v498
            %v506 = vsel %vm505, %v502, 0.0
            %v507 = vrot.slane %v506, 4
            %v508 = vadd.f32 %v506, %v507
            %v509 = vrot.slane %v508, 2
            %v510 = vadd.f32 %v508, %v509
            %v511 = vrot.slane %v510, 1
            %v512 = vadd.f32 %v510, %v511
            %513 = vst [vmem:[%s495] sm:$0x1] %v512
            %s514 = smov [#allocation21]
            %s515 = smov [#allocation22]
            %s516 = smov [#allocation16]
            %v517 = vld [vmem:[%s516] sm:$0xff]
            %s518 = smov [#allocation17]
            %v519 = vld [vmem:[%s518] sm:$0xff]
            %s520 = smov [#allocation18]
            %v521 = vld [vmem:[%s520] sm:$0xff]
            %v522 = vsub.f32 %v521, %v517
            %v523 = vmul.f32 2.0, %v519
            %v524 = vrcp.pop %v523
            %v525 = vmul.f32 %v522, %v524
            %vm526 = vcmp.ge.f32.partialorder %v525, 0.0
            %v527 = vmul.f32 %v525, %v525
            %v528 = vadd.f32 1.0, %v527
            %v529 = vrsqrt.pop %v528
            %v530 = vmul.f32 %v528, %v529
            %vm531 = vcmp.eq.f32.partialorder %v528, inf
            %v532 = vsel %vm531, %v528, %v530
            %vm533 = vcmp.eq.f32.partialorder %v528, 0.0
            %v534 = vand.u32 %v528, 2147483648
            %v535 = vsel %vm533, %v534, %v532
            %v536 = vxor.u32 %v535, 2147483648
            %v537 = vsel %vm526, %v535, %v536
            %v538 = vadd.f32 %v525, %v537
            %v539 = vrcp.pop %v538
            %v540 = vand.u32 2147483647, %v517
            %v541 = vand.u32 2147483647, %v519
            %v542 = vand.u32 2147483647, %v521
            %v543 = vmin.f32 %v540, %v542
            %v544 = vmul.f32 1.1920929e-08, %v543
            %vm545 = vcmp.le.f32.partialorder %v541, %v544
            %v546 = vsel %vm545, 0.0, %v539
            %v547 = vmul.f32 %v546, %v546
            %v548 = vadd.f32 1.0, %v547
            %v549 = vrsqrt.pop %v548
            %v550 = vmul.f32 %v546, %v549
            %v551 = vmul.f32 %v546, %v519
            %v552 = vsub.f32 %v517, %v551
            %v553 = vmul.f32 %v546, %v519
            %v554 = vadd.f32 %v521, %v553
            %s555 = smov [#allocation19]
            %556 = vst [vmem:[%s555] sm:$0xff] %v552
            %s557 = smov [#allocation20]
            %558 = vst [vmem:[%s557] sm:$0xff] %v554
            %s559 = smov %s514
            %560 = vst [vmem:[%s559] sm:$0xff] %v549
            %s561 = smov %s515
            %562 = vst [vmem:[%s561] sm:$0xff] %v550
            %s563 = smov [#allocation21]
            %v564 = vld [vmem:[%s563] ss:$0 sm:$0xff]
            %v565 = vlaneseq
            %v566 = vand.u32 %v565, 127
            %v567 = vmov %v566
            %v568 = vlaneseq
            %v569 = vshrl.u32 %v568, 7
            %v570 = vmov %v569
            %vm572 = vcmp.eq.s32.totalorder %v570, %v567
            %v573 = vsel %vm572, %v564, 0.0
            %574 = vadd.xlane.f32.xlu0 %v573
            %v575 = vpop.xlane.xlu0 %574
            %s576 = smov [#allocation23]
            %577 = vst [vmem:[%s576] sm:$0xff] %v575
            %s578 = smov [#allocation22]
            %v579 = vld [vmem:[%s578] ss:$0 sm:$0xff]
            %v580 = vlaneseq
            %v581 = vand.u32 %v580, 127
            %v582 = vmov %v581
            %v583 = vlaneseq
            %v584 = vshrl.u32 %v583, 7
            %v585 = vmov %v584
            %vm587 = vcmp.eq.s32.totalorder %v585, %v582
            %v588 = vsel %vm587, %v579, 0.0
            %589 = vadd.xlane.f32.xlu0 %v588
            %v590 = vpop.xlane.xlu0 %589
            %s591 = smov [#allocation24]
            %592 = vst [vmem:[%s591] sm:$0xff] %v590
            %s593 = smov [#allocation23]
            %v594 = vld [vmem:[%s593] sm:$0xff]
            %s595 = smov [#allocation24]
            %v596 = vld [vmem:[%s595] sm:$0xff]
            %s597 = smov [#allocation12]
            %s598 = smov [#allocation13]
            %s599 = smov [#allocation14]
            %s600 = smov [#allocation15]
            %v601 = vld [vmem:[%s597] sm:$0xff]
            %v602 = vld [vmem:[%s598] sm:$0xff]
            %v603 = vld [vmem:[%s599] sm:$0xff]
            %v604 = vld [vmem:[%s600] sm:$0xff]
            %v605 = vmul.f32 %v594, %v601
            %v606 = vmul.f32 %v596, %v603
            %v607 = vsub.f32 %v605, %v606
            %v608 = vmul.f32 %v594, %v602
            %v609 = vmul.f32 %v596, %v604
            %v610 = vsub.f32 %v608, %v609
            %v611 = vmul.f32 %v596, %v601
            %v612 = vmul.f32 %v594, %v603
            %v613 = vadd.f32 %v611, %v612
            %v614 = vmul.f32 %v596, %v602
            %v615 = vmul.f32 %v594, %v604
            %v616 = vadd.f32 %v614, %v615
            %617 = vst [vmem:[%s597] sm:$0xff] %v607
            %618 = vst [vmem:[%s598] sm:$0xff] %v610
            %619 = vst [vmem:[%s599] sm:$0xff] %v613
            %620 = vst [vmem:[%s600] sm:$0xff] %v616
            %s621 = smov [#allocation21]
            %v622 = vld [vmem:[%s621] ss:$0 sm:$0xff]
            %s623 = smov [#allocation22]
            %v624 = vld [vmem:[%s623] ss:$0 sm:$0xff]
            %s625 = smov [#allocation12]
            %s626 = smov [#allocation13]
            %s627 = smov [#allocation14]
            %s628 = smov [#allocation15]
            %v629 = vld [vmem:[%s625] sm:$0xff]
            %v630 = vld [vmem:[%s626] sm:$0xff]
            %v631 = vld [vmem:[%s627] sm:$0xff]
            %v632 = vld [vmem:[%s628] sm:$0xff]
            %v633 = vmul.f32 %v622, %v629
            %v634 = vmul.f32 %v624, %v630
            %v635 = vsub.f32 %v633, %v634
            %v636 = vmul.f32 %v624, %v629
            %v637 = vmul.f32 %v622, %v630
            %v638 = vadd.f32 %v636, %v637
            %v639 = vmul.f32 %v622, %v631
            %v640 = vmul.f32 %v624, %v632
            %v641 = vsub.f32 %v639, %v640
            %v642 = vmul.f32 %v624, %v631
            %v643 = vmul.f32 %v622, %v632
            %v644 = vadd.f32 %v642, %v643
            %645 = vst [vmem:[%s625] sm:$0xff] %v635
            %646 = vst [vmem:[%s626] sm:$0xff] %v638
            %647 = vst [vmem:[%s627] sm:$0xff] %v641
            %648 = vst [vmem:[%s628] sm:$0xff] %v644
            %s649 = smov [#allocation12]
            %s650 = smov [#allocation19]
            %v651 = vlaneseq
            %v652 = vand.u32 %v651, 127
            %v653 = vmov %v652
            %v654 = vlaneseq
            %v655 = vshrl.u32 %v654, 7
            %v656 = vmov %v655
            %v657 = vld [vmem:[%s650] ss:$0 sm:$0xff]
            %v658 = vld [vmem:[%s649] sm:$0xff]
            %vm661 = vcmp.eq.s32.totalorder %v656, %v653
            %v662 = vsel %vm661, %v657, %v658
            %663 = vst [vmem:[%s649] sm:$0xff] %v662
            %s664 = smov [#allocation13]
            %v665 = vlaneseq
            %v666 = vand.u32 %v665, 127
            %v667 = vmov %v666
            %v668 = vlaneseq
            %v669 = vshrl.u32 %v668, 7
            %v670 = vmov %v669
            %v671 = vld [vmem:[%s664] sm:$0xff]
            %vm674 = vcmp.eq.s32.totalorder %v670, %v667
            %v675 = vsel %vm674, 0.0, %v671
            %676 = vst [vmem:[%s664] sm:$0xff] %v675
            %s677 = smov [#allocation14]
            %v678 = vlaneseq
            %v679 = vand.u32 %v678, 127
            %v680 = vmov %v679
            %v681 = vlaneseq
            %v682 = vshrl.u32 %v681, 7
            %v683 = vmov %v682
            %v684 = vld [vmem:[%s677] sm:$0xff]
            %vm687 = vcmp.eq.s32.totalorder %v683, %v680
            %v688 = vsel %vm687, 0.0, %v684
            %689 = vst [vmem:[%s677] sm:$0xff] %v688
            %s690 = smov [#allocation15]
            %s691 = smov [#allocation20]
            %v692 = vlaneseq
            %v693 = vand.u32 %v692, 127
            %v694 = vmov %v693
            %v695 = vlaneseq
            %v696 = vshrl.u32 %v695, 7
            %v697 = vmov %v696
            %v698 = vld [vmem:[%s691] ss:$0 sm:$0xff]
            %v699 = vld [vmem:[%s690] sm:$0xff]
            %vm702 = vcmp.eq.s32.totalorder %v697, %v694
            %v703 = vsel %vm702, %v698, %v699
            %704 = vst [vmem:[%s690] sm:$0xff] %v703
            %s705 = smov [#allocation12]
            %s706 = smov [#allocation13]
            %v707 = vld [vmem:[%s706] sm:$0xff]
            %708 = vrot.lane.b32.xlu0 %v707, 1
            %v709 = vpop.permute.xlu0 %708
            %v710 = vld [vmem:[%s705] sm:$0xff]
            %v711 = vld [vmem:[%s705] sm:$0xff]
            %712 = vrot.lane.b32.xlu0 %v711, 1
            %v713 = vpop.permute.xlu0 %712
            %v714 = vlaneseq
            %v715 = vand.u32 %v714, 127
            %vm716 = vcmp.eq.s32.totalorder %v715, 0
            %v717 = vsel %vm716, %v711, %v713
            %v718 = vlaneseq
            %v719 = vand.u32 %v718, 127
            %vm720 = vcmp.eq.s32.totalorder %v719, 1
            %v721 = vsel %vm720, %v709, %v717
            %v722 = vlaneseq
            %v723 = vand.u32 %v722, 127
            %vm724 = vcmp.ge.s32.totalorder %v723, 0
            %vm725 = vcmp.lt.s32.totalorder %v723, 8
            %vm726 = vmand %vm724, %vm725
            %v727 = vsel %vm726, %v721, 0.0
            %v728 = vld [vmem:[%s706] sm:$0xff]
            %729 = vrot.lane.b32.xlu0 %v728, 127
            %v730 = vpop.permute.xlu0 %729
            %v731 = vlaneseq
            %v732 = vand.u32 %v731, 127
            %vm733 = vcmp.eq.s32.totalorder %v732, 7
            %v734 = vsel %vm733, %v710, %v730
            %735 = vst [vmem:[%s705] sm:$0xff] %v727
            %736 = vst [vmem:[%s706] sm:$0xff] %v734
            %s737 = smov [#allocation14]
            %s738 = smov [#allocation15]
            %v739 = vld [vmem:[%s738] sm:$0xff]
            %740 = vrot.lane.b32.xlu0 %v739, 1
            %v741 = vpop.permute.xlu0 %740
            %v742 = vld [vmem:[%s737] sm:$0xff]
            %v743 = vld [vmem:[%s737] sm:$0xff]
            %744 = vrot.lane.b32.xlu0 %v743, 1
            %v745 = vpop.permute.xlu0 %744
            %v746 = vlaneseq
            %v747 = vand.u32 %v746, 127
            %vm748 = vcmp.eq.s32.totalorder %v747, 0
            %v749 = vsel %vm748, %v743, %v745
            %v750 = vlaneseq
            %v751 = vand.u32 %v750, 127
            %vm752 = vcmp.eq.s32.totalorder %v751, 1
            %v753 = vsel %vm752, %v741, %v749
            %v754 = vlaneseq
            %v755 = vand.u32 %v754, 127
            %vm756 = vcmp.ge.s32.totalorder %v755, 0
            %vm757 = vcmp.lt.s32.totalorder %v755, 8
            %vm758 = vmand %vm756, %vm757
            %v759 = vsel %vm758, %v753, 0.0
            %v760 = vld [vmem:[%s738] sm:$0xff]
            %761 = vrot.lane.b32.xlu0 %v760, 127
            %v762 = vpop.permute.xlu0 %761
            %v763 = vlaneseq
            %v764 = vand.u32 %v763, 127
            %vm765 = vcmp.eq.s32.totalorder %v764, 7
            %v766 = vsel %vm765, %v742, %v762
            %767 = vst [vmem:[%s737] sm:$0xff] %v759
            %768 = vst [vmem:[%s738] sm:$0xff] %v766
            %s769 = smov [#allocation12]
            %s770 = smov [#allocation14]
            %v771 = vld [vmem:[%s769] ss:$0 sm:$0xff]
            %s773 = scalar_lea.vmem %s769, 4294967295
            %v774 = vld [vmem:[%s773] sm:$0xfe]
            %v775 = vlaneseq
            %v776 = vshrl.u32 %v775, 7
            %vm777 = vcmp.eq.s32.totalorder %v776, 0
            %v778 = vsel %vm777, %v771, %v774
            %s779 = scalar_lea.vmem %s769, 7
            %v780 = vld [vmem:[%s779] ss:$0 sm:$0xff]
            %781 = vst [vmem:[%s769] sm:$0xff] %v778
            %v782 = vld [vmem:[%s770] ss:$0 sm:$0xff]
            %s783 = scalar_lea.vmem %s769, 1
            %784 = vst [vmem:[%s783] sm:$0x1] %v782
            %s785 = scalar_lea.vmem %s770, 1
            %v786 = vld [vmem:[%s785] sm:$0x7f]
            %v787 = vlaneseq
            %v788 = vshrl.u32 %v787, 7
            %vm789 = vcmp.eq.s32.totalorder %v788, 7
            %v790 = vsel %vm789, %v780, %v786
            %v791 = vld [vmem:[%s770] ss:$0 sm:$0xff]
            %792 = vst [vmem:[%s770] sm:$0xff] %v790
            %s793 = smov [#allocation13]
            %s794 = smov [#allocation15]
            %v795 = vld [vmem:[%s793] ss:$0 sm:$0xff]
            %s797 = scalar_lea.vmem %s793, 4294967295
            %v798 = vld [vmem:[%s797] sm:$0xfe]
            %v799 = vlaneseq
            %v800 = vshrl.u32 %v799, 7
            %vm801 = vcmp.eq.s32.totalorder %v800, 0
            %v802 = vsel %vm801, %v795, %v798
            %s803 = scalar_lea.vmem %s793, 7
            %v804 = vld [vmem:[%s803] ss:$0 sm:$0xff]
            %805 = vst [vmem:[%s793] sm:$0xff] %v802
            %v806 = vld [vmem:[%s794] ss:$0 sm:$0xff]
            %s807 = scalar_lea.vmem %s793, 1
            %808 = vst [vmem:[%s807] sm:$0x1] %v806
            %s809 = scalar_lea.vmem %s794, 1
            %v810 = vld [vmem:[%s809] sm:$0x7f]
            %v811 = vlaneseq
            %v812 = vshrl.u32 %v811, 7
            %vm813 = vcmp.eq.s32.totalorder %v812, 7
            %v814 = vsel %vm813, %v804, %v810
            %v815 = vld [vmem:[%s794] ss:$0 sm:$0xff]
            %816 = vst [vmem:[%s794] sm:$0xff] %v814
            %s817 = smov [#allocation23]
            %v818 = vld [vmem:[%s817] sm:$0xff]
            %s819 = smov [#allocation24]
            %v820 = vld [vmem:[%s819] sm:$0xff]
            %s821 = smov %s293
            %s822 = smov %s297
            %s823 = smov %s301
            %s824 = smov %s305
            %v825 = vld [vmem:[%s821] sm:$0xff]
            %v826 = vld [vmem:[%s822] sm:$0xff]
            %v827 = vld [vmem:[%s823] sm:$0xff]
            %v828 = vld [vmem:[%s824] sm:$0xff]
            %v829 = vmul.f32 %v818, %v825
            %v830 = vmul.f32 %v820, %v827
            %v831 = vsub.f32 %v829, %v830
            %v832 = vmul.f32 %v818, %v826
            %v833 = vmul.f32 %v820, %v828
            %v834 = vsub.f32 %v832, %v833
            %v835 = vmul.f32 %v820, %v825
            %v836 = vmul.f32 %v818, %v827
            %v837 = vadd.f32 %v835, %v836
            %v838 = vmul.f32 %v820, %v826
            %v839 = vmul.f32 %v818, %v828
            %v840 = vadd.f32 %v838, %v839
            %841 = vst [vmem:[%s821] sm:$0xff] %v831
            %842 = vst [vmem:[%s822] sm:$0xff] %v834
            %843 = vst [vmem:[%s823] sm:$0xff] %v837
            %844 = vst [vmem:[%s824] sm:$0xff] %v840
            %s845 = smov %s293
            %s846 = smov %s301
            %v847 = vld [vmem:[%s845] ss:$0 sm:$0xff]
            %s849 = scalar_lea.vmem %s845, 4294967295
            %v850 = vld [vmem:[%s849] sm:$0xfe]
            %v851 = vlaneseq
            %v852 = vshrl.u32 %v851, 7
            %vm853 = vcmp.eq.s32.totalorder %v852, 0
            %v854 = vsel %vm853, %v847, %v850
            %s855 = scalar_lea.vmem %s845, 7
            %v856 = vld [vmem:[%s855] ss:$0 sm:$0xff]
            %857 = vst [vmem:[%s845] sm:$0xff] %v854
            %v858 = vld [vmem:[%s846] ss:$0 sm:$0xff]
            %s859 = scalar_lea.vmem %s845, 1
            %860 = vst [vmem:[%s859] sm:$0x1] %v858
            %s861 = scalar_lea.vmem %s846, 1
            %v862 = vld [vmem:[%s861] sm:$0x7f]
            %v863 = vlaneseq
            %v864 = vshrl.u32 %v863, 7
            %vm865 = vcmp.eq.s32.totalorder %v864, 7
            %v866 = vsel %vm865, %v856, %v862
            %v867 = vld [vmem:[%s846] ss:$0 sm:$0xff]
            %868 = vst [vmem:[%s846] sm:$0xff] %v866
            %s869 = smov %s297
            %s870 = smov %s305
            %v871 = vld [vmem:[%s869] ss:$0 sm:$0xff]
            %s873 = scalar_lea.vmem %s869, 4294967295
            %v874 = vld [vmem:[%s873] sm:$0xfe]
            %v875 = vlaneseq
            %v876 = vshrl.u32 %v875, 7
            %vm877 = vcmp.eq.s32.totalorder %v876, 0
            %v878 = vsel %vm877, %v871, %v874
            %s879 = scalar_lea.vmem %s869, 7
            %v880 = vld [vmem:[%s879] ss:$0 sm:$0xff]
            %881 = vst [vmem:[%s869] sm:$0xff] %v878
            %v882 = vld [vmem:[%s870] ss:$0 sm:$0xff]
            %s883 = scalar_lea.vmem %s869, 1
            %884 = vst [vmem:[%s883] sm:$0x1] %v882
            %s885 = scalar_lea.vmem %s870, 1
            %v886 = vld [vmem:[%s885] sm:$0x7f]
            %v887 = vlaneseq
            %v888 = vshrl.u32 %v887, 7
            %vm889 = vcmp.eq.s32.totalorder %v888, 7
            %v890 = vsel %vm889, %v880, %v886
            %v891 = vld [vmem:[%s870] ss:$0 sm:$0xff]
            %892 = vst [vmem:[%s870] sm:$0xff] %v890
          $region168: #{custom-call.2} parent=160 // loop_footer
            %s453 = sadd.s32 1, %s449
          $region169: #{custom-call.2} parent=160 // loop_footer_branch
            %448 = sbr.rel target = $region165
          $region170: #{custom-call.2} parent=160 // loop_exit
            _
          %s893 = sadd.s32 %s351, 1
        $region161: #{custom-call.2} parent=155 // loop_footer
          _
        $region162: #{custom-call.2} parent=155 // loop_footer_branch
          %350 = sbr.rel target = $region158
        $region163: #{custom-call.2} parent=155 // loop_exit
          _
        %s896 = sand.u32 %s17, 7
        %s897 = scalar_lea.vmem [#allocation4], %s896
        %s898 = sand.u32 %s17, 7
        %s899 = scalar_lea.vmem [#allocation6], %s898
        %s900 = smov [#allocation12]
        %s901 = smov %s897
        %v902 = vlaneseq
        %v903 = vand.u32 %v902, 127
        %v904 = vmov %v903
        %v905 = vlaneseq
        %v906 = vshrl.u32 %v905, 7
        %v907 = vmov %v906
        %v908 = vld [vmem:[%s900] sm:$0xff]
        %vm911 = vcmp.eq.s32.totalorder %v907, %v904
        %v912 = vsel %vm911, %v908, 0.0
        %v913 = vrot.slane %v912, 4
        %v914 = vadd.f32 %v912, %v913
        %v915 = vrot.slane %v914, 2
        %v916 = vadd.f32 %v914, %v915
        %v917 = vrot.slane %v916, 1
        %v918 = vadd.f32 %v916, %v917
        %919 = vst [vmem:[%s901] sm:$0x1] %v918
        %s920 = smov [#allocation15]
        %s921 = smov %s899
        %v922 = vlaneseq
        %v923 = vand.u32 %v922, 127
        %v924 = vmov %v923
        %v925 = vlaneseq
        %v926 = vshrl.u32 %v925, 7
        %v927 = vmov %v926
        %v928 = vld [vmem:[%s920] sm:$0xff]
        %vm931 = vcmp.eq.s32.totalorder %v927, %v924
        %v932 = vsel %vm931, %v928, 0.0
        %v933 = vrot.slane %v932, 4
        %v934 = vadd.f32 %v932, %v933
        %v935 = vrot.slane %v934, 2
        %v936 = vadd.f32 %v934, %v935
        %v937 = vrot.slane %v936, 1
        %v938 = vadd.f32 %v936, %v937
        %939 = vst [vmem:[%s921] sm:$0x1] %v938
        %s941 = sshllo.u32 0, 2
        %v943 = vld [vmem:[#allocation4] sm:%s941]
        %s944 = sshllo.u32 0, 2
        %945 = vst [vmem:[%s283] sm:%s944] %v943
        %s947 = sshllo.u32 0, 2
        %v949 = vld [vmem:[#allocation6] sm:%s947]
        %s950 = sshllo.u32 0, 2
        %951 = vst [vmem:[%s289] sm:%s950] %v949
        %s952 = sand.u32 %s27, 1
        %s953 = sand.u32 %s27, 1
        %s954 = smul.addr %s953, 2
        %s955 = scalar_lea.vmem [#allocation5], %s954
        %s956 = sand.u32 %s55, 1
        %s957 = sand.u32 %s55, 1
        %s958 = smul.addr %s957, 2
        %s959 = scalar_lea.vmem [#allocation7], %s958
        %s960 = sand.u32 %s17, 1
        %s961 = sand.u32 %s17, 1
        %s962 = smul.addr %s961, 8
        %s963 = scalar_lea.vmem [#allocation8], %s962
        %s964 = sand.u32 %s17, 1
        %s965 = sand.u32 %s17, 1
        %s966 = smul.addr %s965, 8
        %s967 = scalar_lea.vmem [#allocation9], %s966
        %s968 = sand.u32 %s17, 1
        %s969 = sand.u32 %s17, 1
        %s970 = smul.addr %s969, 8
        %s971 = scalar_lea.vmem [#allocation10], %s970
        %s972 = sand.u32 %s17, 1
        %s973 = sand.u32 %s17, 1
        %s974 = smul.addr %s973, 8
        %s975 = scalar_lea.vmem [#allocation11], %s974
        // Predicated region
        $region171: #{custom-call.2} parent=155 // pred_check
          %p976 = pneg %p37
        $region172: #{custom-call.2} parent=155 // pred_check_branch
          %978 = sbr.rel (%p976) target = $region174
        $region173: #{custom-call.2} parent=155 // pred_region
          %s979 = sshrl.u32 %s17, 3
          %s980 = smul.addr %s979, 2
          %s981 = scalar_lea.vmem %s4, %s980
          // Predicated region
          $region175: #{custom-call.2} parent=173 // pred_check
            _
          $region176: #{custom-call.2} parent=173 // pred_check_branch
            %983 = sbr.rel (0) target = $region178
          $region177: #{custom-call.2} parent=173 // pred_region
            // Predicated region
            $region179: #{custom-call.2} parent=177 // pred_check
              _
            $region180: #{custom-call.2} parent=177 // pred_check_branch
              %985 = sbr.rel target = $region182
            $region181: #{custom-call.2} parent=177 // pred_region
              // Predicated region
              $region194: #{custom-call.2} parent=181 // pred_check
                _
              $region195: #{custom-call.2} parent=181 // pred_check_branch
                %1000 = sbr.rel (0) target = $region197
              $region196: #{custom-call.2} parent=181 // pred_region
                loop: start=0, step=1, limit=1
                $region198: #{custom-call.2} parent=196 // loop_pre_header
                  _
                $region199: #{custom-call.2} parent=196 // loop_header
                  %s1003 = sphi 0, %s1007
                  %p1004 = scmp.ge.s32.totalorder %s1003, 1
                  %s1008 = sphi %s955, %s955
                  %s1009 = sphi %s981, %s981
                $region200: #{custom-call.2} parent=196 // loop_header_branch
                  %1006 = sbr.rel (%p1004) target = $region204
                $region201: #{custom-call.2} parent=196 // loop_body
                  %v1010 = vld [vmem:[%s1008] sm:$0x3]
                  %1011 = vst [vmem:[%s1009] sm:$0x3] %v1010
                $region202: #{custom-call.2} parent=196 // loop_footer
                  %s1007 = sadd.s32 1, %s1003
                $region203: #{custom-call.2} parent=196 // loop_footer_branch
                  %1002 = sbr.rel target = $region199
                $region204: #{custom-call.2} parent=196 // loop_exit
                  _
              $region197: #{custom-call.2} parent=181 // pred_fallthru
                _
            $region182: #{custom-call.2} parent=177 // pred_fallthru
              _
            // Predicated region
            $region183: #{custom-call.2} parent=177 // pred_check
              _
            $region184: #{custom-call.2} parent=177 // pred_check_branch
              %987 = sbr.rel (0) target = $region186
            $region185: #{custom-call.2} parent=177 // pred_region
              loop: start=0, step=1, limit=1
              $region187: #{custom-call.2} parent=185 // loop_pre_header
                _
              $region188: #{custom-call.2} parent=185 // loop_header
                %s990 = sphi 0, %s994
                %p991 = scmp.ge.s32.totalorder %s990, 1
                %s995 = sphi %s955, %s955
                %s996 = sphi %s981, %s981
              $region189: #{custom-call.2} parent=185 // loop_header_branch
                %993 = sbr.rel (%p991) target = $region193
              $region190: #{custom-call.2} parent=185 // loop_body
                %v997 = vld [vmem:[%s995] sm:$0x3]
                %998 = vst [vmem:[%s996] sm:$0x3] %v997
              $region191: #{custom-call.2} parent=185 // loop_footer
                %s994 = sadd.s32 1, %s990
              $region192: #{custom-call.2} parent=185 // loop_footer_branch
                %989 = sbr.rel target = $region188
              $region193: #{custom-call.2} parent=185 // loop_exit
                _
            $region186: #{custom-call.2} parent=177 // pred_fallthru
              _
          $region178: #{custom-call.2} parent=173 // pred_fallthru
            _
          %1012 = vnop
        $region174: #{custom-call.2} parent=155 // pred_fallthru
          _
        // Predicated region
        $region205: #{custom-call.2} parent=155 // pred_check
          %p1013 = pneg %p65
        $region206: #{custom-call.2} parent=155 // pred_check_branch
          %1015 = sbr.rel (%p1013) target = $region208
        $region207: #{custom-call.2} parent=155 // pred_region
          %s1016 = sshrl.u32 %s17, 3
          %s1017 = smul.addr %s1016, 2
          %s1018 = scalar_lea.vmem %s5, %s1017
          // Predicated region
          $region209: #{custom-call.2} parent=207 // pred_check
            _
          $region210: #{custom-call.2} parent=207 // pred_check_branch
            %1020 = sbr.rel (0) target = $region212
          $region211: #{custom-call.2} parent=207 // pred_region
            // Predicated region
            $region213: #{custom-call.2} parent=211 // pred_check
              _
            $region214: #{custom-call.2} parent=211 // pred_check_branch
              %1022 = sbr.rel target = $region216
            $region215: #{custom-call.2} parent=211 // pred_region
              // Predicated region
              $region228: #{custom-call.2} parent=215 // pred_check
                _
              $region229: #{custom-call.2} parent=215 // pred_check_branch
                %1037 = sbr.rel (0) target = $region231
              $region230: #{custom-call.2} parent=215 // pred_region
                loop: start=0, step=1, limit=1
                $region232: #{custom-call.2} parent=230 // loop_pre_header
                  _
                $region233: #{custom-call.2} parent=230 // loop_header
                  %s1040 = sphi 0, %s1044
                  %p1041 = scmp.ge.s32.totalorder %s1040, 1
                  %s1045 = sphi %s959, %s959
                  %s1046 = sphi %s1018, %s1018
                $region234: #{custom-call.2} parent=230 // loop_header_branch
                  %1043 = sbr.rel (%p1041) target = $region238
                $region235: #{custom-call.2} parent=230 // loop_body
                  %v1047 = vld [vmem:[%s1045] sm:$0x3]
                  %1048 = vst [vmem:[%s1046] sm:$0x3] %v1047
                $region236: #{custom-call.2} parent=230 // loop_footer
                  %s1044 = sadd.s32 1, %s1040
                $region237: #{custom-call.2} parent=230 // loop_footer_branch
                  %1039 = sbr.rel target = $region233
                $region238: #{custom-call.2} parent=230 // loop_exit
                  _
              $region231: #{custom-call.2} parent=215 // pred_fallthru
                _
            $region216: #{custom-call.2} parent=211 // pred_fallthru
              _
            // Predicated region
            $region217: #{custom-call.2} parent=211 // pred_check
              _
            $region218: #{custom-call.2} parent=211 // pred_check_branch
              %1024 = sbr.rel (0) target = $region220
            $region219: #{custom-call.2} parent=211 // pred_region
              loop: start=0, step=1, limit=1
              $region221: #{custom-call.2} parent=219 // loop_pre_header
                _
              $region222: #{custom-call.2} parent=219 // loop_header
                %s1027 = sphi 0, %s1031
                %p1028 = scmp.ge.s32.totalorder %s1027, 1
                %s1032 = sphi %s959, %s959
                %s1033 = sphi %s1018, %s1018
              $region223: #{custom-call.2} parent=219 // loop_header_branch
                %1030 = sbr.rel (%p1028) target = $region227
              $region224: #{custom-call.2} parent=219 // loop_body
                %v1034 = vld [vmem:[%s1032] sm:$0x3]
                %1035 = vst [vmem:[%s1033] sm:$0x3] %v1034
              $region225: #{custom-call.2} parent=219 // loop_footer
                %s1031 = sadd.s32 1, %s1027
              $region226: #{custom-call.2} parent=219 // loop_footer_branch
                %1026 = sbr.rel target = $region222
              $region227: #{custom-call.2} parent=219 // loop_exit
                _
            $region220: #{custom-call.2} parent=211 // pred_fallthru
              _
          $region212: #{custom-call.2} parent=207 // pred_fallthru
            _
          %1049 = vnop
        $region208: #{custom-call.2} parent=155 // pred_fallthru
          _
        %s1050 = smul.addr %s17, 8
        %s1051 = scalar_lea.vmem %s6, %s1050
        // Predicated region
        $region239: #{custom-call.2} parent=155 // pred_check
          _
        $region240: #{custom-call.2} parent=155 // pred_check_branch
          %1053 = sbr.rel (0) target = $region242
        $region241: #{custom-call.2} parent=155 // pred_region
          // Predicated region
          $region243: #{custom-call.2} parent=241 // pred_check
            _
          $region244: #{custom-call.2} parent=241 // pred_check_branch
            %1055 = sbr.rel (0) target = $region246
          $region245: #{custom-call.2} parent=241 // pred_region
            // Predicated region
            $region258: #{custom-call.2} parent=245 // pred_check
              _
            $region259: #{custom-call.2} parent=245 // pred_check_branch
              %1070 = sbr.rel (0) target = $region261
            $region260: #{custom-call.2} parent=245 // pred_region
              loop: start=0, step=1, limit=1
              $region262: #{custom-call.2} parent=260 // loop_pre_header
                _
              $region263: #{custom-call.2} parent=260 // loop_header
                %s1072 = sphi 0, %s1076
                %p1073 = scmp.ge.s32.totalorder %s1072, 1
                %s1077 = sphi %s963, %s963
                %s1078 = sphi %s1051, %s1051
              $region264: #{custom-call.2} parent=260 // loop_header_branch
                %1075 = sbr.rel (%p1073) target = $region268
              $region265: #{custom-call.2} parent=260 // loop_body
                %v1079 = vld [vmem:[%s1077] sm:$0xff]
                %1080 = vst [vmem:[%s1078] sm:$0xff] %v1079
              $region266: #{custom-call.2} parent=260 // loop_footer
                %s1076 = sadd.s32 1, %s1072
              $region267: #{custom-call.2} parent=260 // loop_footer_branch
                %1071 = sbr.rel target = $region263
              $region268: #{custom-call.2} parent=260 // loop_exit
                _
            $region261: #{custom-call.2} parent=245 // pred_fallthru
              _
            // Predicated region
            $region269: #{custom-call.2} parent=245 // pred_check
              _
            $region270: #{custom-call.2} parent=245 // pred_check_branch
              %1082 = sbr.rel target = $region272
            $region271: #{custom-call.2} parent=245 // pred_region
              _
            $region272: #{custom-call.2} parent=245 // pred_fallthru
              _
          $region246: #{custom-call.2} parent=241 // pred_fallthru
            _
          // Predicated region
          $region247: #{custom-call.2} parent=241 // pred_check
            _
          $region248: #{custom-call.2} parent=241 // pred_check_branch
            %1057 = sbr.rel target = $region250
          $region249: #{custom-call.2} parent=241 // pred_region
            loop: start=0, step=1, limit=1
            $region251: #{custom-call.2} parent=249 // loop_pre_header
              _
            $region252: #{custom-call.2} parent=249 // loop_header
              %s1060 = sphi 0, %s1064
              %p1061 = scmp.ge.s32.totalorder %s1060, 1
              %s1065 = sphi %s963, %s963
              %s1066 = sphi %s1051, %s1051
            $region253: #{custom-call.2} parent=249 // loop_header_branch
              %1063 = sbr.rel (%p1061) target = $region257
            $region254: #{custom-call.2} parent=249 // loop_body
              %v1067 = vld [vmem:[%s1065] sm:$0xff]
              %1068 = vst [vmem:[%s1066] sm:$0xff] %v1067
            $region255: #{custom-call.2} parent=249 // loop_footer
              %s1064 = sadd.s32 1, %s1060
            $region256: #{custom-call.2} parent=249 // loop_footer_branch
              %1059 = sbr.rel target = $region252
            $region257: #{custom-call.2} parent=249 // loop_exit
              _
          $region250: #{custom-call.2} parent=241 // pred_fallthru
            _
        $region242: #{custom-call.2} parent=155 // pred_fallthru
          _
        %1083 = vnop
        %s1084 = smul.addr %s17, 8
        %s1085 = scalar_lea.vmem %s7, %s1084
        // Predicated region
        $region273: #{custom-call.2} parent=155 // pred_check
          _
        $region274: #{custom-call.2} parent=155 // pred_check_branch
          %1087 = sbr.rel (0) target = $region276
        $region275: #{custom-call.2} parent=155 // pred_region
          // Predicated region
          $region277: #{custom-call.2} parent=275 // pred_check
            _
          $region278: #{custom-call.2} parent=275 // pred_check_branch
            %1089 = sbr.rel (0) target = $region280
          $region279: #{custom-call.2} parent=275 // pred_region
            // Predicated region
            $region292: #{custom-call.2} parent=279 // pred_check
              _
            $region293: #{custom-call.2} parent=279 // pred_check_branch
              %1104 = sbr.rel (0) target = $region295
            $region294: #{custom-call.2} parent=279 // pred_region
              loop: start=0, step=1, limit=1
              $region296: #{custom-call.2} parent=294 // loop_pre_header
                _
              $region297: #{custom-call.2} parent=294 // loop_header
                %s1106 = sphi 0, %s1110
                %p1107 = scmp.ge.s32.totalorder %s1106, 1
                %s1111 = sphi %s967, %s967
                %s1112 = sphi %s1085, %s1085
              $region298: #{custom-call.2} parent=294 // loop_header_branch
                %1109 = sbr.rel (%p1107) target = $region302
              $region299: #{custom-call.2} parent=294 // loop_body
                %v1113 = vld [vmem:[%s1111] sm:$0xff]
                %1114 = vst [vmem:[%s1112] sm:$0xff] %v1113
              $region300: #{custom-call.2} parent=294 // loop_footer
                %s1110 = sadd.s32 1, %s1106
              $region301: #{custom-call.2} parent=294 // loop_footer_branch
                %1105 = sbr.rel target = $region297
              $region302: #{custom-call.2} parent=294 // loop_exit
                _
            $region295: #{custom-call.2} parent=279 // pred_fallthru
              _
            // Predicated region
            $region303: #{custom-call.2} parent=279 // pred_check
              _
            $region304: #{custom-call.2} parent=279 // pred_check_branch
              %1116 = sbr.rel target = $region306
            $region305: #{custom-call.2} parent=279 // pred_region
              _
            $region306: #{custom-call.2} parent=279 // pred_fallthru
              _
          $region280: #{custom-call.2} parent=275 // pred_fallthru
            _
          // Predicated region
          $region281: #{custom-call.2} parent=275 // pred_check
            _
          $region282: #{custom-call.2} parent=275 // pred_check_branch
            %1091 = sbr.rel target = $region284
          $region283: #{custom-call.2} parent=275 // pred_region
            loop: start=0, step=1, limit=1
            $region285: #{custom-call.2} parent=283 // loop_pre_header
              _
            $region286: #{custom-call.2} parent=283 // loop_header
              %s1094 = sphi 0, %s1098
              %p1095 = scmp.ge.s32.totalorder %s1094, 1
              %s1099 = sphi %s967, %s967
              %s1100 = sphi %s1085, %s1085
            $region287: #{custom-call.2} parent=283 // loop_header_branch
              %1097 = sbr.rel (%p1095) target = $region291
            $region288: #{custom-call.2} parent=283 // loop_body
              %v1101 = vld [vmem:[%s1099] sm:$0xff]
              %1102 = vst [vmem:[%s1100] sm:$0xff] %v1101
            $region289: #{custom-call.2} parent=283 // loop_footer
              %s1098 = sadd.s32 1, %s1094
            $region290: #{custom-call.2} parent=283 // loop_footer_branch
              %1093 = sbr.rel target = $region286
            $region291: #{custom-call.2} parent=283 // loop_exit
              _
          $region284: #{custom-call.2} parent=275 // pred_fallthru
            _
        $region276: #{custom-call.2} parent=155 // pred_fallthru
          _
        %1117 = vnop
        %s1118 = smul.addr %s17, 8
        %s1119 = scalar_lea.vmem %s8, %s1118
        // Predicated region
        $region307: #{custom-call.2} parent=155 // pred_check
          _
        $region308: #{custom-call.2} parent=155 // pred_check_branch
          %1121 = sbr.rel (0) target = $region310
        $region309: #{custom-call.2} parent=155 // pred_region
          // Predicated region
          $region311: #{custom-call.2} parent=309 // pred_check
            _
          $region312: #{custom-call.2} parent=309 // pred_check_branch
            %1123 = sbr.rel (0) target = $region314
          $region313: #{custom-call.2} parent=309 // pred_region
            // Predicated region
            $region326: #{custom-call.2} parent=313 // pred_check
              _
            $region327: #{custom-call.2} parent=313 // pred_check_branch
              %1138 = sbr.rel (0) target = $region329
            $region328: #{custom-call.2} parent=313 // pred_region
              loop: start=0, step=1, limit=1
              $region330: #{custom-call.2} parent=328 // loop_pre_header
                _
              $region331: #{custom-call.2} parent=328 // loop_header
                %s1140 = sphi 0, %s1144
                %p1141 = scmp.ge.s32.totalorder %s1140, 1
                %s1145 = sphi %s971, %s971
                %s1146 = sphi %s1119, %s1119
              $region332: #{custom-call.2} parent=328 // loop_header_branch
                %1143 = sbr.rel (%p1141) target = $region336
              $region333: #{custom-call.2} parent=328 // loop_body
                %v1147 = vld [vmem:[%s1145] sm:$0xff]
                %1148 = vst [vmem:[%s1146] sm:$0xff] %v1147
              $region334: #{custom-call.2} parent=328 // loop_footer
                %s1144 = sadd.s32 1, %s1140
              $region335: #{custom-call.2} parent=328 // loop_footer_branch
                %1139 = sbr.rel target = $region331
              $region336: #{custom-call.2} parent=328 // loop_exit
                _
            $region329: #{custom-call.2} parent=313 // pred_fallthru
              _
            // Predicated region
            $region337: #{custom-call.2} parent=313 // pred_check
              _
            $region338: #{custom-call.2} parent=313 // pred_check_branch
              %1150 = sbr.rel target = $region340
            $region339: #{custom-call.2} parent=313 // pred_region
              _
            $region340: #{custom-call.2} parent=313 // pred_fallthru
              _
          $region314: #{custom-call.2} parent=309 // pred_fallthru
            _
          // Predicated region
          $region315: #{custom-call.2} parent=309 // pred_check
            _
          $region316: #{custom-call.2} parent=309 // pred_check_branch
            %1125 = sbr.rel target = $region318
          $region317: #{custom-call.2} parent=309 // pred_region
            loop: start=0, step=1, limit=1
            $region319: #{custom-call.2} parent=317 // loop_pre_header
              _
            $region320: #{custom-call.2} parent=317 // loop_header
              %s1128 = sphi 0, %s1132
              %p1129 = scmp.ge.s32.totalorder %s1128, 1
              %s1133 = sphi %s971, %s971
              %s1134 = sphi %s1119, %s1119
            $region321: #{custom-call.2} parent=317 // loop_header_branch
              %1131 = sbr.rel (%p1129) target = $region325
            $region322: #{custom-call.2} parent=317 // loop_body
              %v1135 = vld [vmem:[%s1133] sm:$0xff]
              %1136 = vst [vmem:[%s1134] sm:$0xff] %v1135
            $region323: #{custom-call.2} parent=317 // loop_footer
              %s1132 = sadd.s32 1, %s1128
            $region324: #{custom-call.2} parent=317 // loop_footer_branch
              %1127 = sbr.rel target = $region320
            $region325: #{custom-call.2} parent=317 // loop_exit
              _
          $region318: #{custom-call.2} parent=309 // pred_fallthru
            _
        $region310: #{custom-call.2} parent=155 // pred_fallthru
          _
        %1151 = vnop
        %s1152 = smul.addr %s17, 8
        %s1153 = scalar_lea.vmem %s9, %s1152
        // Predicated region
        $region341: #{custom-call.2} parent=155 // pred_check
          _
        $region342: #{custom-call.2} parent=155 // pred_check_branch
          %1155 = sbr.rel (0) target = $region344
        $region343: #{custom-call.2} parent=155 // pred_region
          // Predicated region
          $region345: #{custom-call.2} parent=343 // pred_check
            _
          $region346: #{custom-call.2} parent=343 // pred_check_branch
            %1157 = sbr.rel (0) target = $region348
          $region347: #{custom-call.2} parent=343 // pred_region
            // Predicated region
            $region360: #{custom-call.2} parent=347 // pred_check
              _
            $region361: #{custom-call.2} parent=347 // pred_check_branch
              %1172 = sbr.rel (0) target = $region363
            $region362: #{custom-call.2} parent=347 // pred_region
              loop: start=0, step=1, limit=1
              $region364: #{custom-call.2} parent=362 // loop_pre_header
                _
              $region365: #{custom-call.2} parent=362 // loop_header
                %s1174 = sphi 0, %s1178
                %p1175 = scmp.ge.s32.totalorder %s1174, 1
                %s1179 = sphi %s975, %s975
                %s1180 = sphi %s1153, %s1153
              $region366: #{custom-call.2} parent=362 // loop_header_branch
                %1177 = sbr.rel (%p1175) target = $region370
              $region367: #{custom-call.2} parent=362 // loop_body
                %v1181 = vld [vmem:[%s1179] sm:$0xff]
                %1182 = vst [vmem:[%s1180] sm:$0xff] %v1181
              $region368: #{custom-call.2} parent=362 // loop_footer
                %s1178 = sadd.s32 1, %s1174
              $region369: #{custom-call.2} parent=362 // loop_footer_branch
                %1173 = sbr.rel target = $region365
              $region370: #{custom-call.2} parent=362 // loop_exit
                _
            $region363: #{custom-call.2} parent=347 // pred_fallthru
              _
            // Predicated region
            $region371: #{custom-call.2} parent=347 // pred_check
              _
            $region372: #{custom-call.2} parent=347 // pred_check_branch
              %1184 = sbr.rel target = $region374
            $region373: #{custom-call.2} parent=347 // pred_region
              _
            $region374: #{custom-call.2} parent=347 // pred_fallthru
              _
          $region348: #{custom-call.2} parent=343 // pred_fallthru
            _
          // Predicated region
          $region349: #{custom-call.2} parent=343 // pred_check
            _
          $region350: #{custom-call.2} parent=343 // pred_check_branch
            %1159 = sbr.rel target = $region352
          $region351: #{custom-call.2} parent=343 // pred_region
            loop: start=0, step=1, limit=1
            $region353: #{custom-call.2} parent=351 // loop_pre_header
              _
            $region354: #{custom-call.2} parent=351 // loop_header
              %s1162 = sphi 0, %s1166
              %p1163 = scmp.ge.s32.totalorder %s1162, 1
              %s1167 = sphi %s975, %s975
              %s1168 = sphi %s1153, %s1153
            $region355: #{custom-call.2} parent=351 // loop_header_branch
              %1165 = sbr.rel (%p1163) target = $region359
            $region356: #{custom-call.2} parent=351 // loop_body
              %v1169 = vld [vmem:[%s1167] sm:$0xff]
              %1170 = vst [vmem:[%s1168] sm:$0xff] %v1169
            $region357: #{custom-call.2} parent=351 // loop_footer
              %s1166 = sadd.s32 1, %s1162
            $region358: #{custom-call.2} parent=351 // loop_footer_branch
              %1161 = sbr.rel target = $region354
            $region359: #{custom-call.2} parent=351 // loop_exit
              _
          $region352: #{custom-call.2} parent=343 // pred_fallthru
            _
        $region344: #{custom-call.2} parent=155 // pred_fallthru
          _
        %1185 = vnop
      $region156: #{custom-call.2} parent=5 // pred_fallthru
        _
      %p1186 = scmp.le.s32.totalorder 2, %s12
      // Predicated region
      $region375: #{custom-call.2} parent=5 // pred_check
        %p1187 = pneg %p1186
      $region376: #{custom-call.2} parent=5 // pred_check_branch
        %1189 = sbr.rel (%p1187) target = $region378
      $region377: #{custom-call.2} parent=5 // pred_region
        %s1190 = ssub.s32 %s12, 2
        // Predicated region
        $region379: #{custom-call.2} parent=377 // pred_check
          %p1191 = pneg %p43
        $region380: #{custom-call.2} parent=377 // pred_check_branch
          %1193 = sbr.rel (%p1191) target = $region382
        $region381: #{custom-call.2} parent=377 // pred_region
          %s1194 = sand.u32 %s28, 1
          %s1195 = sand.u32 %s28, 1
          %s1196 = smul.addr %s1195, 2
          %s1197 = scalar_lea.vmem [#allocation5], %s1196
        $region382: #{custom-call.2} parent=377 // pred_fallthru
          _
        // Predicated region
        $region383: #{custom-call.2} parent=377 // pred_check
          %p1198 = pneg %p71
        $region384: #{custom-call.2} parent=377 // pred_check_branch
          %1200 = sbr.rel (%p1198) target = $region386
        $region385: #{custom-call.2} parent=377 // pred_region
          %s1201 = sand.u32 %s56, 1
          %s1202 = sand.u32 %s56, 1
          %s1203 = smul.addr %s1202, 2
          %s1204 = scalar_lea.vmem [#allocation7], %s1203
        $region386: #{custom-call.2} parent=377 // pred_fallthru
          _
        %s1205 = sand.u32 %s18, 1
        %s1206 = sand.u32 %s18, 1
        %s1207 = smul.addr %s1206, 8
        %s1208 = scalar_lea.vmem [#allocation8], %s1207
        %s1209 = sand.u32 %s18, 1
        %s1210 = sand.u32 %s18, 1
        %s1211 = smul.addr %s1210, 8
        %s1212 = scalar_lea.vmem [#allocation9], %s1211
        %s1213 = sand.u32 %s18, 1
        %s1214 = sand.u32 %s18, 1
        %s1215 = smul.addr %s1214, 8
        %s1216 = scalar_lea.vmem [#allocation10], %s1215
        %s1217 = sand.u32 %s18, 1
        %s1218 = sand.u32 %s18, 1
        %s1219 = smul.addr %s1218, 8
        %s1220 = scalar_lea.vmem [#allocation11], %s1219
      $region378: #{custom-call.2} parent=5 // pred_fallthru
        _
    $region6: #{custom-call.2} parent=1 // loop_footer
      %s16 = sadd.s32 1, %s12
    $region7: #{custom-call.2} parent=1 // loop_footer_branch
      %11 = sbr.rel target = $region3
    $region8: #{custom-call.2} parent=1 // loop_exit
      _

// kernel: neg.1
$region0: #{neg.1}
  #allocation0 [shape = 's32[1]{0}', space=sflag, size = 0x4, scoped, tag = 'scoped memory for neg.1']
  %s0 = inlined_call_operand.vmem [shape: f32[2,16], index: 0, kind: input, shape index: {}]
  %s1 = inlined_call_operand.vmem [shape: f32[2,16], index: 1, kind: output, shape index: {}]
  %v2 = vld [vmem:[%s0] sm:$0x3]
  %3 = xla_tuple %v2
  %4 = xla_tuple %3
  %v5 = vxor.u32 %v2, 2147483648
  %6 = xla_tuple %v5
  %7 = vst [vmem:[%s1] sm:$0x3] %v5

// kernel: gmpool_masking_fc_forward.2
$region0: #{gmpool_masking_fc_forward.2}
  #allocation0 [shape = 'u32[]', space=smem, size = 0x4, offset = 0x4, fixed_abs, tag = 'smem constant byte address 0x4 - core index']
  #allocation1 [shape = 'u32[144,128]{1,0:T(1,128)}', space=vmem, size = 0x12000, scoped, tag = 'internal scratch']
  %s0 = inlined_call_operand.hbm [shape: bf16[2,16,128], index: 0, kind: input, shape index: {}, may-alias: {0,1}]
  %s1 = inlined_call_operand.hbm [shape: bf16[2,16,128], index: 1, kind: input, shape index: {}, may-alias: {0,1}]
  %s2 = inlined_call_operand.hbm [shape: bf16[128,128], index: 2, kind: input, shape index: {}]
  %s3 = inlined_call_operand.hbm [shape: f32[1,128], index: 3, kind: input, shape index: {}]
  %s4 = inlined_call_operand.hbm [shape: f32[1,128], index: 4, kind: input, shape index: {}]
  %s5 = inlined_call_operand.hbm [shape: f32[2,16,16], index: 5, kind: output, shape index: {}]
  %s6 = sld [smem:[#allocation0]]
  $region73: #{gmpool_masking_fc_forward.2} parent=0
    _
  %s8 = ssub.s32 1, %s6
  %s9 = scalar_select 0, %s8, %s6
  $region1: #{gmpool_masking_fc_forward.2} parent=0
    #allocation2 [shape = 'u8[4096]{0}', space=vmem, size = 0x1000, scoped, tag = 'input window, operand 0']
    #allocation3 [shape = 's32[2]{0}', space=sflag, size = 0x8, scoped, tag = 'scoped memory for gmpool_masking_fc_forward.2']
    #allocation4 [shape = 's32[2]{0}', space=sflag, size = 0x8, scoped, tag = 'scoped memory for gmpool_masking_fc_forward.2']
    #allocation5 [shape = 'u8[8192]{0}', space=vmem, size = 0x2000, scoped, tag = 'input window, operand 1']
    #allocation6 [shape = 's32[2]{0}', space=sflag, size = 0x8, scoped, tag = 'scoped memory for gmpool_masking_fc_forward.2']
    #allocation7 [shape = 'u8[32768]{0}', space=vmem, size = 0x8000, scoped, tag = 'input window, operand 2, single buffered']
    #allocation8 [shape = 'u8[512]{0}', space=vmem, size = 0x400, scoped, tag = 'input window, operand 3, single buffered']
    #allocation9 [shape = 's32[1]{0}', space=sflag, size = 0x4, scoped, tag = 'scoped memory for gmpool_masking_fc_forward.2']
    #allocation10 [shape = 'u8[512]{0}', space=vmem, size = 0x400, scoped, tag = 'input window, operand 4, single buffered']
    #allocation11 [shape = 'u8[8192]{0}', space=vmem, size = 0x2000, scoped, tag = 'output window, operand 0']
    %10 = vsyncpa [#allocation3], 0
    %s11 = scalar_lea.sflag [#allocation3], 1
    %12 = vsyncpa %s11, 0
    %13 = vsyncpa [#allocation6], 0
    %s14 = scalar_lea.sflag [#allocation6], 1
    %15 = vsyncpa %s14, 0
    %16 = vsyncpa [#allocation9], 0
    %17 = vsyncpa [#allocation4], 0
    %s18 = scalar_lea.sflag [#allocation4], 1
    %19 = vsyncpa %s18, 0
    loop: start=0, step=1, limit=6
    $region2: #{gmpool_masking_fc_forward.2} parent=1 // loop_pre_header
      _
    $region3: #{gmpool_masking_fc_forward.2} parent=1 // loop_header
      %s21 = sphi 0, %s25
      %p22 = scmp.ge.s32.totalorder %s21, 6
      %s28 = sphi 0, %s47
      %s29 = sphi 0, %s43
      %s30 = sphi 0, %s39
      %s31 = sphi 0, %s28
      %s32 = sphi 0, %s29
      %s33 = sphi 0, %s30
      %s34 = sphi 0, %s31
      %s35 = sphi 0, %s32
      %s36 = sphi 0, %s33
      %s52 = sphi 0, %s54
      %s55 = sphi 0, %s52
      %s56 = sphi 0, %s55
      %s72 = sphi 0, %s56
      %s80 = sphi 0, %s82
      %s83 = sphi 0, %s80
      %s84 = sphi 0, %s83
      %s100 = sphi 0, %s84
      %s104 = sphi 0, %s104
      %s106 = sphi 0, %s104
      %s107 = sphi 0, %s106
      %s121 = sphi 0, %s107
      %s125 = sphi 0, %s125
      %s127 = sphi 0, %s125
      %s128 = sphi 0, %s127
      %s142 = sphi 0, %s128
      %s146 = sphi 0, %s146
      %s148 = sphi 0, %s146
      %s149 = sphi 0, %s148
      %s163 = sphi 0, %s149
      %s173 = sphi 0, %s175
      %s176 = sphi 0, %s173
      %s177 = sphi 0, %s176
      %s193 = sphi 0, %s177
    $region4: #{gmpool_masking_fc_forward.2} parent=1 // loop_header_branch
      %24 = sbr.rel (%p22) target = $region8
    $region5: #{gmpool_masking_fc_forward.2} parent=1 // loop_body
      %s26 = ssub.s32 %s21, 1
      %s27 = ssub.s32 %s21, 2
      %s37 = sadd.s32 1, %s30
      %p38 = scmp.ge.s32.totalorder %s37, 2
      %s39 = scalar_select %p38, 0, %s37
      %s40 = sadd.s32 1, %s29
      %s41 = scalar_select %p38, %s40, %s29
      %p42 = scmp.ge.s32.totalorder %s41, 1
      %s43 = scalar_select %p42, 0, %s41
      %s44 = sadd.s32 1, %s28
      %s45 = scalar_select %p42, %s44, %s28
      %p46 = scmp.ge.s32.totalorder %s45, 2
      %s47 = scalar_select %p46, 0, %s45
      %s48 = ssub.s32 %s28, %s47
      %s49 = ssub.s32 %s30, %s39
      %s50 = sor.u32 %s48, %s49
      %p51 = scmp.eq.s32.totalorder %s50, 0
      %s53 = sadd.s32 %s52, 1
      %s54 = scalar_select %p51, %s52, %s53
      %p57 = pneg %p51
      %p58 = scmp.eq.s32.totalorder %s21, 3
      %p59 = por %p57, %p58
      %p60 = scmp.ne.s32.totalorder %s52, %s55
      %p61 = scmp.eq.s32.totalorder %s21, 0
      %p62 = por %p60, %p61
      %p63 = scmp.ne.s32.totalorder %s52, %s55
      %p64 = scmp.eq.s32.totalorder %s26, 3
      %p65 = por %p63, %p64
      %p66 = scmp.ne.s32.totalorder %s55, %s56
      %p67 = scmp.eq.s32.totalorder %s26, 0
      %p68 = por %p66, %p67
      %p69 = scmp.ne.s32.totalorder %s55, %s56
      %p70 = scmp.eq.s32.totalorder %s27, 3
      %p71 = por %p69, %p70
      %p73 = scmp.ne.s32.totalorder %s56, %s72
      %p74 = scmp.eq.s32.totalorder %s27, 0
      %p75 = por %p73, %p74
      %s76 = ssub.s32 %s28, %s47
      %s77 = ssub.s32 %s29, %s43
      %s78 = sor.u32 %s76, %s77
      %p79 = scmp.eq.s32.totalorder %s78, 0
      %s81 = sadd.s32 %s80, 1
      %s82 = scalar_select %p79, %s80, %s81
      %p85 = pneg %p79
      %p86 = scmp.eq.s32.totalorder %s21, 3
      %p87 = por %p85, %p86
      %p88 = scmp.ne.s32.totalorder %s80, %s83
      %p89 = scmp.eq.s32.totalorder %s21, 0
      %p90 = por %p88, %p89
      %p91 = scmp.ne.s32.totalorder %s80, %s83
      %p92 = scmp.eq.s32.totalorder %s26, 3
      %p93 = por %p91, %p92
      %p94 = scmp.ne.s32.totalorder %s83, %s84
      %p95 = scmp.eq.s32.totalorder %s26, 0
      %p96 = por %p94, %p95
      %p97 = scmp.ne.s32.totalorder %s83, %s84
      %p98 = scmp.eq.s32.totalorder %s27, 3
      %p99 = por %p97, %p98
      %p101 = scmp.ne.s32.totalorder %s84, %s100
      %p102 = scmp.eq.s32.totalorder %s27, 0
      %p103 = por %p101, %p102
      %s105 = sadd.s32 %s104, 1
      %p108 = scmp.eq.s32.totalorder %s21, 3
      %p109 = scmp.ne.s32.totalorder %s104, %s106
      %p110 = scmp.eq.s32.totalorder %s21, 0
      %p111 = por %p109, %p110
      %p112 = scmp.ne.s32.totalorder %s104, %s106
      %p113 = scmp.eq.s32.totalorder %s26, 3
      %p114 = por %p112, %p113
      %p115 = scmp.ne.s32.totalorder %s106, %s107
      %p116 = scmp.eq.s32.totalorder %s26, 0
      %p117 = por %p115, %p116
      %p118 = scmp.ne.s32.totalorder %s106, %s107
      %p119 = scmp.eq.s32.totalorder %s27, 3
      %p120 = por %p118, %p119
      %p122 = scmp.ne.s32.totalorder %s107, %s121
      %p123 = scmp.eq.s32.totalorder %s27, 0
      %p124 = por %p122, %p123
      %s126 = sadd.s32 %s125, 1
      %p129 = scmp.eq.s32.totalorder %s21, 3
      %p130 = scmp.ne.s32.totalorder %s125, %s127
      %p131 = scmp.eq.s32.totalorder %s21, 0
      %p132 = por %p130, %p131
      %p133 = scmp.ne.s32.totalorder %s125, %s127
      %p134 = scmp.eq.s32.totalorder %s26, 3
      %p135 = por %p133, %p134
      %p136 = scmp.ne.s32.totalorder %s127, %s128
      %p137 = scmp.eq.s32.totalorder %s26, 0
      %p138 = por %p136, %p137
      %p139 = scmp.ne.s32.totalorder %s127, %s128
      %p140 = scmp.eq.s32.totalorder %s27, 3
      %p141 = por %p139, %p140
      %p143 = scmp.ne.s32.totalorder %s128, %s142
      %p144 = scmp.eq.s32.totalorder %s27, 0
      %p145 = por %p143, %p144
      %s147 = sadd.s32 %s146, 1
      %p150 = scmp.eq.s32.totalorder %s21, 3
      %p151 = scmp.ne.s32.totalorder %s146, %s148
      %p152 = scmp.eq.s32.totalorder %s21, 0
      %p153 = por %p151, %p152
      %p154 = scmp.ne.s32.totalorder %s146, %s148
      %p155 = scmp.eq.s32.totalorder %s26, 3
      %p156 = por %p154, %p155
      %p157 = scmp.ne.s32.totalorder %s148, %s149
      %p158 = scmp.eq.s32.totalorder %s26, 0
      %p159 = por %p157, %p158
      %p160 = scmp.ne.s32.totalorder %s148, %s149
      %p161 = scmp.eq.s32.totalorder %s27, 3
      %p162 = por %p160, %p161
      %p164 = scmp.ne.s32.totalorder %s149, %s163
      %p165 = scmp.eq.s32.totalorder %s27, 0
      %p166 = por %p164, %p165
      %s167 = ssub.s32 %s28, %s47
      %s168 = ssub.s32 %s30, %s39
      %s169 = sor.u32 %s167, %s168
      %s170 = ssub.s32 %s29, %s43
      %s171 = sor.u32 %s169, %s170
      %p172 = scmp.eq.s32.totalorder %s171, 0
      %s174 = sadd.s32 %s173, 1
      %s175 = scalar_select %p172, %s173, %s174
      %p178 = pneg %p172
      %p179 = scmp.eq.s32.totalorder %s21, 3
      %p180 = por %p178, %p179
      %p181 = scmp.ne.s32.totalorder %s173, %s176
      %p182 = scmp.eq.s32.totalorder %s21, 0
      %p183 = por %p181, %p182
      %p184 = scmp.ne.s32.totalorder %s173, %s176
      %p185 = scmp.eq.s32.totalorder %s26, 3
      %p186 = por %p184, %p185
      %p187 = scmp.ne.s32.totalorder %s176, %s177
      %p188 = scmp.eq.s32.totalorder %s26, 0
      %p189 = por %p187, %p188
      %p190 = scmp.ne.s32.totalorder %s176, %s177
      %p191 = scmp.eq.s32.totalorder %s27, 3
      %p192 = por %p190, %p191
      %p194 = scmp.ne.s32.totalorder %s177, %s193
      %p195 = scmp.eq.s32.totalorder %s27, 0
      %p196 = por %p194, %p195
      %p197 = scmp.le.s32.totalorder 1, %s21
      %p198 = scmp.lt.s32.totalorder %s21, 5
      %p199 = pnand %p197, %p198
      %p200 = pneg %p199
      // Predicated region
      $region9: #{gmpool_masking_fc_forward.2} parent=5 // pred_check
        _
      $region10: #{gmpool_masking_fc_forward.2} parent=5 // pred_check_branch
        %202 = sbr.rel (%p199) target = $region12
      $region11: #{gmpool_masking_fc_forward.2} parent=5 // pred_region
        %s203 = ssub.s32 %s21, 1
        // Predicated region
        $region13: #{gmpool_masking_fc_forward.2} parent=11 // pred_check
          %p204 = pneg %p117
        $region14: #{gmpool_masking_fc_forward.2} parent=11 // pred_check_branch
          %206 = sbr.rel (%p204) target = $region16
        $region15: #{gmpool_masking_fc_forward.2} parent=11 // pred_region
          %s208 = ssub.s32 1024, 1024
          %209 = vsyncadd [#allocation6], %s208
          %s210 = sshll.u32 [#allocation7], 4
          %s211 = int_to_ptr.vmem [resolvable:$true] %s210
          %216 = dma.hbm_to_vmem [thread:$0]  %s2, 1024, %s211, [#allocation6], 64, 64, 4
        $region16: #{gmpool_masking_fc_forward.2} parent=11 // pred_fallthru
          _
        // Predicated region
        $region17: #{gmpool_masking_fc_forward.2} parent=11 // pred_check
          %p217 = pneg %p138
        $region18: #{gmpool_masking_fc_forward.2} parent=11 // pred_check_branch
          %219 = sbr.rel (%p217) target = $region20
        $region19: #{gmpool_masking_fc_forward.2} parent=11 // pred_region
          %s221 = ssub.s32 16, 16
          %222 = vsyncadd [#allocation9], %s221
          %s224 = sshll.u32 [#allocation8], 4
          %s225 = int_to_ptr.vmem [resolvable:$true] %s224
          %227 = dma.hbm_to_vmem [thread:$0]  %s3, 16, %s225, [#allocation9]
        $region20: #{gmpool_masking_fc_forward.2} parent=11 // pred_fallthru
          _
        // Predicated region
        $region21: #{gmpool_masking_fc_forward.2} parent=11 // pred_check
          %p228 = pneg %p159
        $region22: #{gmpool_masking_fc_forward.2} parent=11 // pred_check_branch
          %230 = sbr.rel (%p228) target = $region24
        $region23: #{gmpool_masking_fc_forward.2} parent=11 // pred_region
          %s232 = ssub.s32 16, 16
          %233 = vsyncadd [#allocation9], %s232
          %s235 = sshll.u32 [#allocation10], 4
          %s236 = int_to_ptr.vmem [resolvable:$true] %s235
          %238 = dma.hbm_to_vmem [thread:$0]  %s4, 16, %s236, [#allocation9]
        $region24: #{gmpool_masking_fc_forward.2} parent=11 // pred_fallthru
          _
      $region12: #{gmpool_masking_fc_forward.2} parent=5 // pred_fallthru
        _
      %p239 = scmp.lt.s32.totalorder %s21, 4
      // Predicated region
      $region25: #{gmpool_masking_fc_forward.2} parent=5 // pred_check
        %p240 = pneg %p239
      $region26: #{gmpool_masking_fc_forward.2} parent=5 // pred_check_branch
        %242 = sbr.rel (%p240) target = $region28
      $region27: #{gmpool_masking_fc_forward.2} parent=5 // pred_region
        // Predicated region
        $region29: #{gmpool_masking_fc_forward.2} parent=27 // pred_check
          %p243 = pneg %p62
        $region30: #{gmpool_masking_fc_forward.2} parent=27 // pred_check_branch
          %245 = sbr.rel (%p243) target = $region32
        $region31: #{gmpool_masking_fc_forward.2} parent=27 // pred_region
          %s246 = sand.u32 %s52, 1
          %s247 = scalar_lea.sflag [#allocation3], %s246
          %s248 = sand.u32 %s52, 1
          %s249 = smul.addr %s248, 4
          %s250 = scalar_lea.vmem [#allocation2], %s249
          %s252 = ssub.s32 64, 64
          %253 = vsyncadd %s247, %s252
          %s254 = smul.addr %s28, 2
          %s255 = sadd.s32 %s30, %s254
          %s256 = smul.addr %s255, 64
          %s257 = scalar_lea.hbm %s0, %s256
          %s259 = sshll.u32 %s250, 4
          %s260 = int_to_ptr.vmem [resolvable:$true] %s259
          %262 = dma.hbm_to_vmem [thread:$0]  %s257, 64, %s260, %s247
        $region32: #{gmpool_masking_fc_forward.2} parent=27 // pred_fallthru
          _
        // Predicated region
        $region33: #{gmpool_masking_fc_forward.2} parent=27 // pred_check
          %p263 = pneg %p90
        $region34: #{gmpool_masking_fc_forward.2} parent=27 // pred_check_branch
          %265 = sbr.rel (%p263) target = $region36
        $region35: #{gmpool_masking_fc_forward.2} parent=27 // pred_region
          %s266 = sand.u32 %s21, 1
          %s267 = scalar_lea.sflag [#allocation6], %s266
          %s268 = sand.u32 %s80, 1
          %s269 = smul.addr %s268, 8
          %s270 = scalar_lea.vmem [#allocation5], %s269
          %s271 = smul.u32 2, %s29
          %s273 = ssub.s32 128, 128
          %274 = vsyncadd %s267, %s273
          %s275 = smul.addr %s28, 2
          %s276 = sadd.s32 %s271, %s275
          %s277 = smul.addr %s276, 64
          %s278 = scalar_lea.hbm %s1, %s277
          %s279 = sshll.u32 %s270, 4
          %s280 = int_to_ptr.vmem [resolvable:$true] %s279
          %285 = dma.hbm_to_vmem [thread:$0]  %s278, 128, %s280, %s267, 64, 64, 4
        $region36: #{gmpool_masking_fc_forward.2} parent=27 // pred_fallthru
          _
      $region28: #{gmpool_masking_fc_forward.2} parent=5 // pred_fallthru
        _
      %p286 = scmp.le.s32.totalorder 1, %s21
      %p287 = scmp.lt.s32.totalorder %s21, 5
      %p288 = pnand %p286, %p287
      %p289 = pneg %p288
      // Predicated region
      $region37: #{gmpool_masking_fc_forward.2} parent=5 // pred_check
        _
      $region38: #{gmpool_masking_fc_forward.2} parent=5 // pred_check_branch
        %291 = sbr.rel (%p288) target = $region40
      $region39: #{gmpool_masking_fc_forward.2} parent=5 // pred_region
        %s292 = ssub.s32 %s21, 1
        %s293 = sand.u32 %s55, 1
        %s294 = scalar_lea.sflag [#allocation3], %s293
        %s295 = sand.u32 %s55, 1
        %s296 = smul.addr %s295, 4
        %s297 = scalar_lea.vmem [#allocation2], %s296
        // Predicated region
        $region41: #{gmpool_masking_fc_forward.2} parent=39 // pred_check
          %p298 = pneg %p68
        $region42: #{gmpool_masking_fc_forward.2} parent=39 // pred_check_branch
          %300 = sbr.rel (%p298) target = $region44
        $region43: #{gmpool_masking_fc_forward.2} parent=39 // pred_region
          %301 = dma.done %s294, 64
        $region44: #{gmpool_masking_fc_forward.2} parent=39 // pred_fallthru
          _
        %s302 = sand.u32 %s26, 1
        %s303 = scalar_lea.sflag [#allocation6], %s302
        %s304 = sand.u32 %s83, 1
        %s305 = smul.addr %s304, 8
        %s306 = scalar_lea.vmem [#allocation5], %s305
        // Predicated region
        $region45: #{gmpool_masking_fc_forward.2} parent=39 // pred_check
          %p307 = pneg %p96
        $region46: #{gmpool_masking_fc_forward.2} parent=39 // pred_check_branch
          %309 = sbr.rel (%p307) target = $region48
        $region47: #{gmpool_masking_fc_forward.2} parent=39 // pred_region
          %310 = dma.done %s303, 128
        $region48: #{gmpool_masking_fc_forward.2} parent=39 // pred_fallthru
          _
        // Predicated region
        $region49: #{gmpool_masking_fc_forward.2} parent=39 // pred_check
          %p311 = pneg %p117
        $region50: #{gmpool_masking_fc_forward.2} parent=39 // pred_check_branch
          %313 = sbr.rel (%p311) target = $region52
        $region51: #{gmpool_masking_fc_forward.2} parent=39 // pred_region
          %314 = dma.done [#allocation6], 1024
        $region52: #{gmpool_masking_fc_forward.2} parent=39 // pred_fallthru
          _
        // Predicated region
        $region53: #{gmpool_masking_fc_forward.2} parent=39 // pred_check
          %p315 = pneg %p138
        $region54: #{gmpool_masking_fc_forward.2} parent=39 // pred_check_branch
          %317 = sbr.rel (%p315) target = $region56
        $region55: #{gmpool_masking_fc_forward.2} parent=39 // pred_region
          %318 = dma.done [#allocation9], 16
        $region56: #{gmpool_masking_fc_forward.2} parent=39 // pred_fallthru
          _
        // Predicated region
        $region57: #{gmpool_masking_fc_forward.2} parent=39 // pred_check
          %p319 = pneg %p159
        $region58: #{gmpool_masking_fc_forward.2} parent=39 // pred_check_branch
          %321 = sbr.rel (%p319) target = $region60
        $region59: #{gmpool_masking_fc_forward.2} parent=39 // pred_region
          %322 = dma.done [#allocation9], 16
        $region60: #{gmpool_masking_fc_forward.2} parent=39 // pred_fallthru
          _
        %s323 = sand.u32 %s55, 1
        %s324 = scalar_lea.sflag [#allocation3], %s323
        %s325 = sand.u32 %s55, 1
        %s326 = smul.addr %s325, 4
        %s327 = scalar_lea.vmem [#allocation2], %s326
        %p328 = pneg %p68
        %p329 = pneg %p65
        %s330 = sand.u32 %s26, 1
        %s331 = scalar_lea.sflag [#allocation6], %s330
        %s332 = sand.u32 %s83, 1
        %s333 = smul.addr %s332, 8
        %s334 = scalar_lea.vmem [#allocation5], %s333
        %p335 = pneg %p96
        %p336 = pneg %p93
        %p337 = pneg %p117
        %p338 = pneg %p114
        %p339 = pneg %p138
        %p340 = pneg %p135
        %p341 = pneg %p159
        %p342 = pneg %p156
        %p343 = pneg %p189
        %p344 = pneg %p186
        %s345 = sand.u32 %s176, 1
        %s346 = scalar_lea.sflag [#allocation4], %s345
        %s347 = sand.u32 %s176, 1
        %s348 = smul.addr %s347, 8
        %s349 = scalar_lea.vmem [#allocation11], %s348
        %s350 = smul.u32 2, %s32
        %s353 = smul.u32 %s33, 8
        %s354 = smul.u32 %s32, 16
        %v355 = vld [vmem:[%s297] sm:$0xf]
        %v356 = vld [vmem:[%s306] sm:$0xf]
        %v357 = vld [vmem:[%s306 + $0x4] sm:$0xf]
        %v360 = vunpack.c.l.s4 1966171168
        %v361 = vunpack.c.0.s8 %v360
        %v362 = vlaneseq
        %v363 = vshrl.u32 %v362, 7
        %v364 = vsub.s32 %v361, %v363
        %v365 = vrot.slane %v355, %v364
        %v366 = vcombine.high %v365, %v365
        %v368 = vunpack.c.l.s4 1966171168
        %v369 = vunpack.c.0.s8 %v368
        %v370 = vlaneseq
        %v371 = vshrl.u32 %v370, 7
        %v372 = vsub.s32 %v369, %v371
        %v373 = vrot.slane %v365, %v372
        %v375 = vunpack.c.l.s4 1966171168
        %v376 = vunpack.c.0.s8 %v375
        %v377 = vlaneseq
        %v378 = vshrl.u32 %v377, 7
        %v379 = vsub.s32 %v376, %v378
        %v380 = vrot.slane %v366, %v379
        %v381 = vcombine.high %v373, %v373
        %v382 = vcombine.high %v380, %v380
        %v383 = vunpack.i.l.s16 %v373
        %v384 = vunpack.i.h.s16 %v373
        %v385 = vunpack.i.l.s16 %v380
        %v386 = vunpack.i.h.s16 %v380
        %v387 = vunpack.i.l.s16 %v381
        %v388 = vunpack.i.h.s16 %v381
        %v389 = vunpack.i.l.s16 %v382
        %v390 = vunpack.i.h.s16 %v382
        %v391 = vpack.i.b16 %v383, %v383
        %v392 = vpack.i.b16 %v384, %v384
        %v393 = vpack.i.b16 %v385, %v385
        %v394 = vpack.i.b16 %v386, %v386
        %v395 = vpack.i.b16 %v387, %v387
        %v396 = vpack.i.b16 %v388, %v388
        %v397 = vpack.i.b16 %v389, %v389
        %v398 = vpack.i.b16 %v390, %v390
        %v399 = vlaneseq
        %v400 = vshrl.u32 %v399, 7
        %v401 = vsub.s32 0, %v400
        %v402 = vrot.slane %v391, %v401
        %v403 = vlaneseq
        %v404 = vshrl.u32 %v403, 7
        %v405 = vsub.s32 0, %v404
        %v406 = vrot.slane %v392, %v405
        %v407 = vlaneseq
        %v408 = vshrl.u32 %v407, 7
        %v409 = vsub.s32 0, %v408
        %v410 = vrot.slane %v393, %v409
        %v411 = vlaneseq
        %v412 = vshrl.u32 %v411, 7
        %v413 = vsub.s32 0, %v412
        %v414 = vrot.slane %v394, %v413
        %v415 = vlaneseq
        %v416 = vshrl.u32 %v415, 7
        %v417 = vsub.s32 0, %v416
        %v418 = vrot.slane %v395, %v417
        %v419 = vlaneseq
        %v420 = vshrl.u32 %v419, 7
        %v421 = vsub.s32 0, %v420
        %v422 = vrot.slane %v396, %v421
        %v423 = vlaneseq
        %v424 = vshrl.u32 %v423, 7
        %v425 = vsub.s32 0, %v424
        %v426 = vrot.slane %v397, %v425
        %v427 = vlaneseq
        %v428 = vshrl.u32 %v427, 7
        %v429 = vsub.s32 0, %v428
        %v430 = vrot.slane %v398, %v429
        %v432 = vpack.i.b16 %v402, %v402
        %v434 = vlaneseq
        %v435 = vshrl.u32 %v434, 7
        %v436 = vsub.s32 0, %v435
        %v437 = vrot.slane %v432, %v436
        %v439 = vpack.i.b16 %v406, %v406
        %v441 = vlaneseq
        %v442 = vshrl.u32 %v441, 7
        %v443 = vsub.s32 0, %v442
        %v444 = vrot.slane %v439, %v443
        %v446 = vpack.i.b16 %v410, %v410
        %v448 = vlaneseq
        %v449 = vshrl.u32 %v448, 7
        %v450 = vsub.s32 0, %v449
        %v451 = vrot.slane %v446, %v450
        %v453 = vpack.i.b16 %v414, %v414
        %v455 = vlaneseq
        %v456 = vshrl.u32 %v455, 7
        %v457 = vsub.s32 0, %v456
        %v458 = vrot.slane %v453, %v457
        %v460 = vpack.i.b16 %v418, %v418
        %v462 = vlaneseq
        %v463 = vshrl.u32 %v462, 7
        %v464 = vsub.s32 0, %v463
        %v465 = vrot.slane %v460, %v464
        %v467 = vpack.i.b16 %v422, %v422
        %v469 = vlaneseq
        %v470 = vshrl.u32 %v469, 7
        %v471 = vsub.s32 0, %v470
        %v472 = vrot.slane %v467, %v471
        %v474 = vpack.i.b16 %v426, %v426
        %v476 = vlaneseq
        %v477 = vshrl.u32 %v476, 7
        %v478 = vsub.s32 0, %v477
        %v479 = vrot.slane %v474, %v478
        %v481 = vpack.i.b16 %v430, %v430
        %v483 = vlaneseq
        %v484 = vshrl.u32 %v483, 7
        %v485 = vsub.s32 0, %v484
        %v486 = vrot.slane %v481, %v485
        %v489 = vunpack.c.l.b16 %v356
        %v490 = vunpack.c.l.b16 %v357
        %v491 = vpack.c.b16 %v490, %v489
        %v493 = vsub.bf16 %v437, %v491
        %v494 = vsub.bf16 %v444, %v491
        %v495 = vsub.bf16 %v451, %v491
        %v496 = vsub.bf16 %v458, %v491
        %v497 = vsub.bf16 %v465, %v491
        %v498 = vsub.bf16 %v472, %v491
        %v499 = vsub.bf16 %v479, %v491
        %v500 = vsub.bf16 %v486, %v491
        %v501 = vmul.bf16 %v493, %v493
        %v502 = vmul.bf16 %v494, %v494
        %v503 = vmul.bf16 %v495, %v495
        %v504 = vmul.bf16 %v496, %v496
        %v505 = vmul.bf16 %v497, %v497
        %v506 = vmul.bf16 %v498, %v498
        %v507 = vmul.bf16 %v499, %v499
        %v508 = vmul.bf16 %v500, %v500
        %v509 = vadd.bf16 %v501, 814297225
        %v510 = vadd.bf16 %v502, 814297225
        %v511 = vadd.bf16 %v503, 814297225
        %v512 = vadd.bf16 %v504, 814297225
        %v513 = vadd.bf16 %v505, 814297225
        %v514 = vadd.bf16 %v506, 814297225
        %v515 = vadd.bf16 %v507, 814297225
        %v516 = vadd.bf16 %v508, 814297225
        %v517 = vrsqrt.bf16.pop %v509
        %v518 = vmul.bf16 %v509, %v517
        %vm520 = vcmp.eq.bf16.partialorder %v509, 2139127680
        %v521 = vsel %vm520, %v509, %v518
        %vm523 = vcmp.eq.bf16.partialorder %v509, 0
        %v524 = vand.u32 2147450879, 0
        %v525 = vand.u32 %v509, 2147516416
        %v526 = vor.u32 %v524, %v525
        %v527 = vsel %vm523, %v526, %v521
        %v528 = vrsqrt.bf16.pop %v510
        %v529 = vmul.bf16 %v510, %v528
        %vm531 = vcmp.eq.bf16.partialorder %v510, 2139127680
        %v532 = vsel %vm531, %v510, %v529
        %vm534 = vcmp.eq.bf16.partialorder %v510, 0
        %v535 = vand.u32 2147450879, 0
        %v536 = vand.u32 %v510, 2147516416
        %v537 = vor.u32 %v535, %v536
        %v538 = vsel %vm534, %v537, %v532
        %v539 = vrsqrt.bf16.pop %v511
        %v540 = vmul.bf16 %v511, %v539
        %vm542 = vcmp.eq.bf16.partialorder %v511, 2139127680
        %v543 = vsel %vm542, %v511, %v540
        %vm545 = vcmp.eq.bf16.partialorder %v511, 0
        %v546 = vand.u32 2147450879, 0
        %v547 = vand.u32 %v511, 2147516416
        %v548 = vor.u32 %v546, %v547
        %v549 = vsel %vm545, %v548, %v543
        %v550 = vrsqrt.bf16.pop %v512
        %v551 = vmul.bf16 %v512, %v550
        %vm553 = vcmp.eq.bf16.partialorder %v512, 2139127680
        %v554 = vsel %vm553, %v512, %v551
        %vm556 = vcmp.eq.bf16.partialorder %v512, 0
        %v557 = vand.u32 2147450879, 0
        %v558 = vand.u32 %v512, 2147516416
        %v559 = vor.u32 %v557, %v558
        %v560 = vsel %vm556, %v559, %v554
        %v561 = vrsqrt.bf16.pop %v513
        %v562 = vmul.bf16 %v513, %v561
        %vm564 = vcmp.eq.bf16.partialorder %v513, 2139127680
        %v565 = vsel %vm564, %v513, %v562
        %vm567 = vcmp.eq.bf16.partialorder %v513, 0
        %v568 = vand.u32 2147450879, 0
        %v569 = vand.u32 %v513, 2147516416
        %v570 = vor.u32 %v568, %v569
        %v571 = vsel %vm567, %v570, %v565
        %v572 = vrsqrt.bf16.pop %v514
        %v573 = vmul.bf16 %v514, %v572
        %vm575 = vcmp.eq.bf16.partialorder %v514, 2139127680
        %v576 = vsel %vm575, %v514, %v573
        %vm578 = vcmp.eq.bf16.partialorder %v514, 0
        %v579 = vand.u32 2147450879, 0
        %v580 = vand.u32 %v514, 2147516416
        %v581 = vor.u32 %v579, %v580
        %v582 = vsel %vm578, %v581, %v576
        %v583 = vrsqrt.bf16.pop %v515
        %v584 = vmul.bf16 %v515, %v583
        %vm586 = vcmp.eq.bf16.partialorder %v515, 2139127680
        %v587 = vsel %vm586, %v515, %v584
        %vm589 = vcmp.eq.bf16.partialorder %v515, 0
        %v590 = vand.u32 2147450879, 0
        %v591 = vand.u32 %v515, 2147516416
        %v592 = vor.u32 %v590, %v591
        %v593 = vsel %vm589, %v592, %v587
        %v594 = vrsqrt.bf16.pop %v516
        %v595 = vmul.bf16 %v516, %v594
        %vm597 = vcmp.eq.bf16.partialorder %v516, 2139127680
        %v598 = vsel %vm597, %v516, %v595
        %vm600 = vcmp.eq.bf16.partialorder %v516, 0
        %v601 = vand.u32 2147450879, 0
        %v602 = vand.u32 %v516, 2147516416
        %v603 = vor.u32 %v601, %v602
        %v604 = vsel %vm600, %v603, %v598
        %v605 = vld [vmem:[#allocation7] sm:$0xf]
        %v606 = vld [vmem:[#allocation7 + $0x4] sm:$0xf]
        %v607 = vld [vmem:[#allocation7 + $0x8] sm:$0xf]
        %v608 = vld [vmem:[#allocation7 + $0xc] sm:$0xf]
        %v609 = vld [vmem:[#allocation7 + $0x10] sm:$0xf]
        %v610 = vld [vmem:[#allocation7 + $0x14] sm:$0xf]
        %v611 = vld [vmem:[#allocation7 + $0x18] sm:$0xf]
        %v612 = vld [vmem:[#allocation7 + $0x1c] sm:$0xf]
        %v613 = vld [vmem:[#allocation7 + $0x20] sm:$0xf]
        %v614 = vld [vmem:[#allocation7 + $0x24] sm:$0xf]
        %v615 = vld [vmem:[#allocation7 + $0x28] sm:$0xf]
        %v616 = vld [vmem:[#allocation7 + $0x2c] sm:$0xf]
        %v617 = vld [vmem:[#allocation7 + $0x30] sm:$0xf]
        %v618 = vld [vmem:[#allocation7 + $0x34] sm:$0xf]
        %v619 = vld [vmem:[#allocation7 + $0x38] sm:$0xf]
        %v620 = vld [vmem:[#allocation7 + $0x3c] sm:$0xf]
        %v621 = vld [vmem:[#allocation8] sm:$0x1]
        %v623 = vlaneseq
        %v624 = vshrl.u32 %v623, 7
        %v625 = vsub.s32 0, %v624
        %v626 = vrot.slane %v621, %v625
        %v644 = vunpack.c.l.b16 %v605
        %v645 = vunpack.c.l.b16 %v606
        %v646 = vunpack.c.l.b16 %v607
        %v647 = vunpack.c.l.b16 %v608
        %v648 = vunpack.c.l.b16 %v609
        %v649 = vunpack.c.l.b16 %v610
        %v650 = vunpack.c.l.b16 %v611
        %v651 = vunpack.c.l.b16 %v612
        %v652 = vunpack.c.l.b16 %v613
        %v653 = vunpack.c.l.b16 %v614
        %v654 = vunpack.c.l.b16 %v615
        %v655 = vunpack.c.l.b16 %v616
        %v656 = vunpack.c.l.b16 %v617
        %v657 = vunpack.c.l.b16 %v618
        %v658 = vunpack.c.l.b16 %v619
        %v659 = vunpack.c.l.b16 %v620
        %v660 = vpack.c.b16 %v645, %v644
        %v661 = vpack.c.b16 %v647, %v646
        %v662 = vpack.c.b16 %v649, %v648
        %v663 = vpack.c.b16 %v651, %v650
        %v664 = vpack.c.b16 %v653, %v652
        %v665 = vpack.c.b16 %v655, %v654
        %v666 = vpack.c.b16 %v657, %v656
        %v667 = vpack.c.b16 %v659, %v658
        %676 = vmatprep.subr.bf16.mxu0 0
        %677 = vmatpush1.bf16.msra.mxu0 %v660
        %678 = vmatprep.subr.bf16.mxu0 0
        %679 = vmatpush1.bf16.msra.mxu0 %v661
        %680 = vmatprep.subr.bf16.mxu0 0
        %681 = vmatpush1.bf16.msra.mxu0 %v662
        %682 = vmatprep.subr.bf16.mxu0 0
        %683 = vmatpush1.bf16.msra.mxu0 %v663
        %684 = vmatprep.subr.bf16.mxu0 0
        %685 = vmatpush1.bf16.msra.mxu0 %v664
        %686 = vmatprep.subr.bf16.mxu0 0
        %687 = vmatpush1.bf16.msra.mxu0 %v665
        %688 = vmatprep.subr.bf16.mxu0 0
        %689 = vmatpush1.bf16.msra.mxu0 %v666
        %690 = vmatprep.subr.bf16.mxu0 0
        %691 = vmatpush1.bf16.msra.mxu0 %v667
        %692 = vmatprep.subr.bf16.mxu0 0
        %693 = vmatpush1.bf16.msra.mxu0 0
        %694 = vmatprep.subr.bf16.mxu0 0
        %695 = vmatpush1.bf16.msra.mxu0 0
        %696 = vmatprep.subr.bf16.mxu0 0
        %697 = vmatpush1.bf16.msra.mxu0 0
        %698 = vmatprep.subr.bf16.mxu0 0
        %699 = vmatpush1.bf16.msra.mxu0 0
        %700 = vmatprep.subr.bf16.mxu0 0
        %701 = vmatpush1.bf16.msra.mxu0 0
        %702 = vmatprep.subr.bf16.mxu0 0
        %703 = vmatpush1.bf16.msra.mxu0 0
        %704 = vmatprep.subr.bf16.mxu0 0
        %705 = vmatpush1.bf16.msra.mxu0 0
        %706 = vmatprep.subr.bf16.mxu0 0
        %707 = vmatpush1.bf16.msra.mxu0 0
        %708 = vmatprep.mubr.bf16.mxu0 0
        %709 = vmatmul.mubr.bf16.gmra.mrb[0].mxu0 %v527
        %v710 = vpop.f32.mrb[0].mxu0
        %v711 = vadd.f32 %v626, %v710
        %v712 = vpop.f32.mrb[0].mxu0
        %v713 = vpop.f32.mrb[0].mxu0
        %v714 = vadd.f32 %v626, %v713
        %v715 = vpop.f32.mrb[0].mxu0
        %716 = vmatprep.mubr.bf16.mxu0 0
        %717 = vmatmul.mubr.bf16.gmra.mrb[0].mxu0 %v538
        %v718 = vpop.f32.mrb[0].mxu0
        %v719 = vadd.f32 %v626, %v718
        %v720 = vpop.f32.mrb[0].mxu0
        %v721 = vpop.f32.mrb[0].mxu0
        %v722 = vadd.f32 %v626, %v721
        %v723 = vpop.f32.mrb[0].mxu0
        %724 = vmatprep.mubr.bf16.mxu0 0
        %725 = vmatmul.mubr.bf16.gmra.mrb[0].mxu0 %v549
        %v726 = vpop.f32.mrb[0].mxu0
        %v727 = vadd.f32 %v626, %v726
        %v728 = vpop.f32.mrb[0].mxu0
        %v729 = vpop.f32.mrb[0].mxu0
        %v730 = vadd.f32 %v626, %v729
        %v731 = vpop.f32.mrb[0].mxu0
        %732 = vmatprep.mubr.bf16.mxu0 0
        %733 = vmatmul.mubr.bf16.gmra.mrb[0].mxu0 %v560
        %v734 = vpop.f32.mrb[0].mxu0
        %v735 = vadd.f32 %v626, %v734
        %v736 = vpop.f32.mrb[0].mxu0
        %v737 = vpop.f32.mrb[0].mxu0
        %v738 = vadd.f32 %v626, %v737
        %v739 = vpop.f32.mrb[0].mxu0
        %740 = vmatprep.mubr.bf16.mxu0 0
        %741 = vmatmul.mubr.bf16.gmra.mrb[0].mxu0 %v571
        %v742 = vpop.f32.mrb[0].mxu0
        %v743 = vadd.f32 %v626, %v742
        %v744 = vpop.f32.mrb[0].mxu0
        %v745 = vpop.f32.mrb[0].mxu0
        %v746 = vadd.f32 %v626, %v745
        %v747 = vpop.f32.mrb[0].mxu0
        %748 = vmatprep.mubr.bf16.mxu0 0
        %749 = vmatmul.mubr.bf16.gmra.mrb[0].mxu0 %v582
        %v750 = vpop.f32.mrb[0].mxu0
        %v751 = vadd.f32 %v626, %v750
        %v752 = vpop.f32.mrb[0].mxu0
        %v753 = vpop.f32.mrb[0].mxu0
        %v754 = vadd.f32 %v626, %v753
        %v755 = vpop.f32.mrb[0].mxu0
        %756 = vmatprep.mubr.bf16.mxu0 0
        %757 = vmatmul.mubr.bf16.gmra.mrb[0].mxu0 %v593
        %v758 = vpop.f32.mrb[0].mxu0
        %v759 = vadd.f32 %v626, %v758
        %v760 = vpop.f32.mrb[0].mxu0
        %v761 = vpop.f32.mrb[0].mxu0
        %v762 = vadd.f32 %v626, %v761
        %v763 = vpop.f32.mrb[0].mxu0
        %764 = vmatprep.mubr.bf16.mxu0 0
        %765 = vmatmul.mubr.bf16.gmra.mrb[0].mxu0 %v604
        %v766 = vpop.f32.mrb[0].mxu0
        %v767 = vadd.f32 %v626, %v766
        %v768 = vpop.f32.mrb[0].mxu0
        %v769 = vpop.f32.mrb[0].mxu0
        %v770 = vadd.f32 %v626, %v769
        %v771 = vpop.f32.mrb[0].mxu0
        %772 = vdwg.mxu0
        %v773 = vmax.f32 %v711, 0.0
        %v774 = vmax.f32 %v714, 0.0
        %v775 = vmax.f32 %v719, 0.0
        %v776 = vmax.f32 %v722, 0.0
        %v777 = vmax.f32 %v727, 0.0
        %v778 = vmax.f32 %v730, 0.0
        %v779 = vmax.f32 %v735, 0.0
        %v780 = vmax.f32 %v738, 0.0
        %v781 = vmax.f32 %v743, 0.0
        %v782 = vmax.f32 %v746, 0.0
        %v783 = vmax.f32 %v751, 0.0
        %v784 = vmax.f32 %v754, 0.0
        %v785 = vmax.f32 %v759, 0.0
        %v786 = vmax.f32 %v762, 0.0
        %v787 = vmax.f32 %v767, 0.0
        %v788 = vmax.f32 %v770, 0.0
        %v789 = vld [vmem:[#allocation10] sm:$0x1]
        %v791 = vlaneseq
        %v792 = vshrl.u32 %v791, 7
        %v793 = vsub.s32 0, %v792
        %v794 = vrot.slane %v789, %v793
        %v796 = vmul.f32 %v773, %v794
        %v797 = vmul.f32 %v774, %v794
        %v798 = vmul.f32 %v775, %v794
        %v799 = vmul.f32 %v776, %v794
        %v800 = vmul.f32 %v777, %v794
        %v801 = vmul.f32 %v778, %v794
        %v802 = vmul.f32 %v779, %v794
        %v803 = vmul.f32 %v780, %v794
        %v804 = vmul.f32 %v781, %v794
        %v805 = vmul.f32 %v782, %v794
        %v806 = vmul.f32 %v783, %v794
        %v807 = vmul.f32 %v784, %v794
        %v808 = vmul.f32 %v785, %v794
        %v809 = vmul.f32 %v786, %v794
        %v810 = vmul.f32 %v787, %v794
        %v811 = vmul.f32 %v788, %v794
        %812 = vadd.xlane.f32.xlu0 %v796
        %v813 = vpop.xlane.xlu0 %812
        %814 = vadd.xlane.f32.xlu0 %v797
        %v815 = vpop.xlane.xlu0 %814
        %816 = vadd.xlane.f32.xlu0 %v798
        %v817 = vpop.xlane.xlu0 %816
        %818 = vadd.xlane.f32.xlu0 %v799
        %v819 = vpop.xlane.xlu0 %818
        %820 = vadd.xlane.f32.xlu0 %v800
        %v821 = vpop.xlane.xlu0 %820
        %822 = vadd.xlane.f32.xlu0 %v801
        %v823 = vpop.xlane.xlu0 %822
        %824 = vadd.xlane.f32.xlu0 %v802
        %v825 = vpop.xlane.xlu0 %824
        %826 = vadd.xlane.f32.xlu0 %v803
        %v827 = vpop.xlane.xlu0 %826
        %828 = vadd.xlane.f32.xlu0 %v804
        %v829 = vpop.xlane.xlu0 %828
        %830 = vadd.xlane.f32.xlu0 %v805
        %v831 = vpop.xlane.xlu0 %830
        %832 = vadd.xlane.f32.xlu0 %v806
        %v833 = vpop.xlane.xlu0 %832
        %834 = vadd.xlane.f32.xlu0 %v807
        %v835 = vpop.xlane.xlu0 %834
        %836 = vadd.xlane.f32.xlu0 %v808
        %v837 = vpop.xlane.xlu0 %836
        %838 = vadd.xlane.f32.xlu0 %v809
        %v839 = vpop.xlane.xlu0 %838
        %840 = vadd.xlane.f32.xlu0 %v810
        %v841 = vpop.xlane.xlu0 %840
        %842 = vadd.xlane.f32.xlu0 %v811
        %v843 = vpop.xlane.xlu0 %842
        %v844 = vxor.u32 %v813, 2147483648
        %v845 = vxor.u32 %v815, 2147483648
        %v846 = vxor.u32 %v817, 2147483648
        %v847 = vxor.u32 %v819, 2147483648
        %v848 = vxor.u32 %v821, 2147483648
        %v849 = vxor.u32 %v823, 2147483648
        %v850 = vxor.u32 %v825, 2147483648
        %v851 = vxor.u32 %v827, 2147483648
        %v852 = vxor.u32 %v829, 2147483648
        %v853 = vxor.u32 %v831, 2147483648
        %v854 = vxor.u32 %v833, 2147483648
        %v855 = vxor.u32 %v835, 2147483648
        %v856 = vxor.u32 %v837, 2147483648
        %v857 = vxor.u32 %v839, 2147483648
        %v858 = vxor.u32 %v841, 2147483648
        %v859 = vxor.u32 %v843, 2147483648
        %v860 = vmul.f32 %v844, 1.442695
        %v861 = vpow.pop %v860
        %v862 = vmul.f32 %v845, 1.442695
        %v863 = vpow.pop %v862
        %v864 = vmul.f32 %v846, 1.442695
        %v865 = vpow.pop %v864
        %v866 = vmul.f32 %v847, 1.442695
        %v867 = vpow.pop %v866
        %v868 = vmul.f32 %v848, 1.442695
        %v869 = vpow.pop %v868
        %v870 = vmul.f32 %v849, 1.442695
        %v871 = vpow.pop %v870
        %v872 = vmul.f32 %v850, 1.442695
        %v873 = vpow.pop %v872
        %v874 = vmul.f32 %v851, 1.442695
        %v875 = vpow.pop %v874
        %v876 = vmul.f32 %v852, 1.442695
        %v877 = vpow.pop %v876
        %v878 = vmul.f32 %v853, 1.442695
        %v879 = vpow.pop %v878
        %v880 = vmul.f32 %v854, 1.442695
        %v881 = vpow.pop %v880
        %v882 = vmul.f32 %v855, 1.442695
        %v883 = vpow.pop %v882
        %v884 = vmul.f32 %v856, 1.442695
        %v885 = vpow.pop %v884
        %v886 = vmul.f32 %v857, 1.442695
        %v887 = vpow.pop %v886
        %v888 = vmul.f32 %v858, 1.442695
        %v889 = vpow.pop %v888
        %v890 = vmul.f32 %v859, 1.442695
        %v891 = vpow.pop %v890
        %v892 = vadd.f32 %v861, 1.0
        %v893 = vadd.f32 %v863, 1.0
        %v894 = vadd.f32 %v865, 1.0
        %v895 = vadd.f32 %v867, 1.0
        %v896 = vadd.f32 %v869, 1.0
        %v897 = vadd.f32 %v871, 1.0
        %v898 = vadd.f32 %v873, 1.0
        %v899 = vadd.f32 %v875, 1.0
        %v900 = vadd.f32 %v877, 1.0
        %v901 = vadd.f32 %v879, 1.0
        %v902 = vadd.f32 %v881, 1.0
        %v903 = vadd.f32 %v883, 1.0
        %v904 = vadd.f32 %v885, 1.0
        %v905 = vadd.f32 %v887, 1.0
        %v906 = vadd.f32 %v889, 1.0
        %v907 = vadd.f32 %v891, 1.0
        %v908 = vrcp.pop %v892
        %v909 = vmul.f32 1.0, %v908
        %v910 = vrcp.pop %v893
        %v911 = vmul.f32 1.0, %v910
        %v912 = vrcp.pop %v894
        %v913 = vmul.f32 1.0, %v912
        %v914 = vrcp.pop %v895
        %v915 = vmul.f32 1.0, %v914
        %v916 = vrcp.pop %v896
        %v917 = vmul.f32 1.0, %v916
        %v918 = vrcp.pop %v897
        %v919 = vmul.f32 1.0, %v918
        %v920 = vrcp.pop %v898
        %v921 = vmul.f32 1.0, %v920
        %v922 = vrcp.pop %v899
        %v923 = vmul.f32 1.0, %v922
        %v924 = vrcp.pop %v900
        %v925 = vmul.f32 1.0, %v924
        %v926 = vrcp.pop %v901
        %v927 = vmul.f32 1.0, %v926
        %v928 = vrcp.pop %v902
        %v929 = vmul.f32 1.0, %v928
        %v930 = vrcp.pop %v903
        %v931 = vmul.f32 1.0, %v930
        %v932 = vrcp.pop %v904
        %v933 = vmul.f32 1.0, %v932
        %v934 = vrcp.pop %v905
        %v935 = vmul.f32 1.0, %v934
        %v936 = vrcp.pop %v906
        %v937 = vmul.f32 1.0, %v936
        %v938 = vrcp.pop %v907
        %v939 = vmul.f32 1.0, %v938
        %v940 = vlaneseq
        %v941 = vshrl.u32 %v940, 7
        %v942 = vstv %s353
        %v943 = vadd.s32 %v941, %v942
        %v944 = vlaneseq
        %v945 = vand.u32 %v944, 127
        %v946 = vstv %s354
        %v947 = vadd.s32 %v945, %v946
        %vm948 = vcmp.eq.s32.totalorder %v943, %v947
        %v965 = vlaneseq
        %v966 = vshrl.u32 %v965, 7
        %v967 = vsub.s32 %v945, %v966
        %v968 = vrot.slane %v909, %v967
        %v969 = vadd.s32 %v945, 4294967288
        %v970 = vlaneseq
        %v971 = vshrl.u32 %v970, 7
        %v972 = vsub.s32 %v969, %v971
        %v973 = vrot.slane %v911, %v972
        %vm974 = vcmask 130112
        %v975 = vsel %vm974, %v973, %v968
        %v976 = vlaneseq
        %v977 = vshrl.u32 %v976, 7
        %v978 = vsub.s32 %v945, %v977
        %v979 = vrot.slane %v913, %v978
        %v980 = vlaneseq
        %v981 = vshrl.u32 %v980, 7
        %v982 = vsub.s32 %v969, %v981
        %v983 = vrot.slane %v915, %v982
        %v984 = vsel %vm974, %v983, %v979
        %v985 = vlaneseq
        %v986 = vshrl.u32 %v985, 7
        %v987 = vsub.s32 %v945, %v986
        %v988 = vrot.slane %v917, %v987
        %v989 = vlaneseq
        %v990 = vshrl.u32 %v989, 7
        %v991 = vsub.s32 %v969, %v990
        %v992 = vrot.slane %v919, %v991
        %v993 = vsel %vm974, %v992, %v988
        %v994 = vlaneseq
        %v995 = vshrl.u32 %v994, 7
        %v996 = vsub.s32 %v945, %v995
        %v997 = vrot.slane %v921, %v996
        %v998 = vlaneseq
        %v999 = vshrl.u32 %v998, 7
        %v1000 = vsub.s32 %v969, %v999
        %v1001 = vrot.slane %v923, %v1000
        %v1002 = vsel %vm974, %v1001, %v997
        %v1003 = vlaneseq
        %v1004 = vshrl.u32 %v1003, 7
        %v1005 = vsub.s32 %v945, %v1004
        %v1006 = vrot.slane %v925, %v1005
        %v1007 = vlaneseq
        %v1008 = vshrl.u32 %v1007, 7
        %v1009 = vsub.s32 %v969, %v1008
        %v1010 = vrot.slane %v927, %v1009
        %v1011 = vsel %vm974, %v1010, %v1006
        %v1012 = vlaneseq
        %v1013 = vshrl.u32 %v1012, 7
        %v1014 = vsub.s32 %v945, %v1013
        %v1015 = vrot.slane %v929, %v1014
        %v1016 = vlaneseq
        %v1017 = vshrl.u32 %v1016, 7
        %v1018 = vsub.s32 %v969, %v1017
        %v1019 = vrot.slane %v931, %v1018
        %v1020 = vsel %vm974, %v1019, %v1015
        %v1021 = vlaneseq
        %v1022 = vshrl.u32 %v1021, 7
        %v1023 = vsub.s32 %v945, %v1022
        %v1024 = vrot.slane %v933, %v1023
        %v1025 = vlaneseq
        %v1026 = vshrl.u32 %v1025, 7
        %v1027 = vsub.s32 %v969, %v1026
        %v1028 = vrot.slane %v935, %v1027
        %v1029 = vsel %vm974, %v1028, %v1024
        %v1030 = vlaneseq
        %v1031 = vshrl.u32 %v1030, 7
        %v1032 = vsub.s32 %v945, %v1031
        %v1033 = vrot.slane %v937, %v1032
        %v1034 = vlaneseq
        %v1035 = vshrl.u32 %v1034, 7
        %v1036 = vsub.s32 %v969, %v1035
        %v1037 = vrot.slane %v939, %v1036
        %v1038 = vsel %vm974, %v1037, %v1033
        %vm1039 = vcmask 1041409
        %v1040 = vsel %vm1039, %v984, %v975
        %vm1041 = vcmask 1042434
        %v1042 = vsel %vm1041, %v993, %v1040
        %vm1043 = vcmask 1043459
        %v1044 = vsel %vm1043, %v1002, %v1042
        %vm1045 = vcmask 1044484
        %v1046 = vsel %vm1045, %v1011, %v1044
        %vm1047 = vcmask 1045509
        %v1048 = vsel %vm1047, %v1020, %v1046
        %vm1049 = vcmask 1046534
        %v1050 = vsel %vm1049, %v1029, %v1048
        %vm1051 = vcmask 1047559
        %v1052 = vsel %vm1051, %v1038, %v1050
        %v1054 = vsel %vm948, 1.0, %v1052
        %vm1055 = vcmask 130048
        %1056 = vst.msk [vmem:[%s349] sm:$0xff] %vm1055, %v1054
        %s1057 = sand.u32 %s176, 1
        %s1058 = scalar_lea.sflag [#allocation4], %s1057
        %s1059 = sand.u32 %s176, 1
        %s1060 = smul.addr %s1059, 8
        %s1061 = scalar_lea.vmem [#allocation11], %s1060
        // Predicated region
        $region61: #{gmpool_masking_fc_forward.2} parent=39 // pred_check
          %p1062 = pneg %p186
        $region62: #{gmpool_masking_fc_forward.2} parent=39 // pred_check_branch
          %1064 = sbr.rel (%p1062) target = $region64
        $region63: #{gmpool_masking_fc_forward.2} parent=39 // pred_region
          %s1066 = ssub.s32 128, 128
          %1067 = vsyncadd %s1058, %s1066
          %s1068 = sadd.s32 %s32, %s33
          %s1069 = smul.addr %s31, 2
          %s1070 = sadd.s32 %s1068, %s1069
          %s1071 = smul.addr %s1070, 128
          %s1072 = scalar_lea.hbm %s5, %s1071
          %s1074 = sshll.u32 %s1061, 4
          %s1075 = int_to_ptr.vmem [resolvable:$true] %s1074
          %1077 = dma.vmem_to_hbm [thread:$0]  %s1075, 128, %s1072, %s1058
        $region64: #{gmpool_masking_fc_forward.2} parent=39 // pred_fallthru
          _
      $region40: #{gmpool_masking_fc_forward.2} parent=5 // pred_fallthru
        _
      %p1078 = scmp.le.s32.totalorder 2, %s21
      // Predicated region
      $region65: #{gmpool_masking_fc_forward.2} parent=5 // pred_check
        %p1079 = pneg %p1078
      $region66: #{gmpool_masking_fc_forward.2} parent=5 // pred_check_branch
        %1081 = sbr.rel (%p1079) target = $region68
      $region67: #{gmpool_masking_fc_forward.2} parent=5 // pred_region
        %s1082 = ssub.s32 %s21, 2
        // Predicated region
        $region69: #{gmpool_masking_fc_forward.2} parent=67 // pred_check
          %p1083 = pneg %p192
        $region70: #{gmpool_masking_fc_forward.2} parent=67 // pred_check_branch
          %1085 = sbr.rel (%p1083) target = $region72
        $region71: #{gmpool_masking_fc_forward.2} parent=67 // pred_region
          %s1086 = sand.u32 %s177, 1
          %s1087 = scalar_lea.sflag [#allocation4], %s1086
          %s1088 = sand.u32 %s177, 1
          %s1089 = smul.addr %s1088, 8
          %s1090 = scalar_lea.vmem [#allocation11], %s1089
          %1091 = dma.done %s1087, 128
        $region72: #{gmpool_masking_fc_forward.2} parent=67 // pred_fallthru
          _
      $region68: #{gmpool_masking_fc_forward.2} parent=5 // pred_fallthru
        _
    $region6: #{gmpool_masking_fc_forward.2} parent=1 // loop_footer
      %s25 = sadd.s32 1, %s21
    $region7: #{gmpool_masking_fc_forward.2} parent=1 // loop_footer_branch
      %20 = sbr.rel target = $region3
    $region8: #{gmpool_masking_fc_forward.2} parent=1 // loop_exit
      _
    %1092 = vsyncpa [#allocation3], 1
    %s1093 = scalar_lea.sflag [#allocation3], 1
    %1094 = vsyncpa %s1093, 1
    %1095 = vsyncpa [#allocation6], 1
    %s1096 = scalar_lea.sflag [#allocation6], 1
    %1097 = vsyncpa %s1096, 1
    %1098 = vsyncpa [#allocation9], 1
    %1099 = vsyncpa [#allocation4], 1
    %s1100 = scalar_lea.sflag [#allocation4], 1
    %1101 = vsyncpa %s1100, 1

// kernel: gmpool_masking_fc_forward.3
$region0: #{gmpool_masking_fc_forward.3}
  #allocation0 [shape = 'u32[]', space=smem, size = 0x4, offset = 0x4, fixed_abs, tag = 'smem constant byte address 0x4 - core index']
  #allocation1 [shape = 'u32[144,128]{1,0:T(1,128)}', space=vmem, size = 0x12000, scoped, tag = 'internal scratch']
  %s0 = inlined_call_operand.hbm [shape: f32[2,16,128], index: 0, kind: input, shape index: {}]
  %s1 = inlined_call_operand.hbm [shape: f32[2,1,10,16], index: 1, kind: input, shape index: {}]
  %s2 = inlined_call_operand.hbm [shape: f32[2,1,10,128,128], index: 2, kind: output, shape index: {}]
  %s3 = sld [smem:[#allocation0]]
  $region49: #{gmpool_masking_fc_forward.3} parent=0
    _
  %s5 = ssub.s32 1, %s3
  %s6 = scalar_select 0, %s5, %s3
  $region1: #{gmpool_masking_fc_forward.3} parent=0
    #allocation2 [shape = 'u8[16384]{0}', space=vmem, size = 0x4000, scoped, tag = 'input window, operand 0']
    #allocation3 [shape = 's32[2]{0}', space=sflag, size = 0x8, scoped, tag = 'scoped memory for gmpool_masking_fc_forward.3']
    #allocation4 [shape = 's32[2]{0}', space=sflag, size = 0x8, scoped, tag = 'scoped memory for gmpool_masking_fc_forward.3']
    #allocation5 [shape = 'u8[16384]{0}', space=vmem, size = 0x4000, scoped, tag = 'input window, operand 1']
    #allocation6 [shape = 's32[2]{0}', space=sflag, size = 0x8, scoped, tag = 'scoped memory for gmpool_masking_fc_forward.3']
    #allocation7 [shape = 'u8[1310720]{0}', space=vmem, size = 0x140000, scoped, tag = 'output window, operand 0']
    %7 = vsyncpa [#allocation3], 0
    %s8 = scalar_lea.sflag [#allocation3], 1
    %9 = vsyncpa %s8, 0
    %10 = vsyncpa [#allocation6], 0
    %s11 = scalar_lea.sflag [#allocation6], 1
    %12 = vsyncpa %s11, 0
    %13 = vsyncpa [#allocation4], 0
    %s14 = scalar_lea.sflag [#allocation4], 1
    %15 = vsyncpa %s14, 0
    loop: start=0, step=1, limit=4
    $region2: #{gmpool_masking_fc_forward.3} parent=1 // loop_pre_header
      _
    $region3: #{gmpool_masking_fc_forward.3} parent=1 // loop_header
      %s17 = sphi 0, %s21
      %p18 = scmp.ge.s32.totalorder %s17, 4
      %s24 = sphi 0, %s36
      %s25 = sphi 0, %s32
      %s26 = sphi 0, %s24
      %s27 = sphi 0, %s25
      %s28 = sphi 0, %s26
      %s29 = sphi 0, %s27
      %s39 = sphi 0, %s41
      %s42 = sphi 0, %s39
      %s43 = sphi 0, %s42
      %s59 = sphi 0, %s43
      %s67 = sphi 0, %s69
      %s70 = sphi 0, %s67
      %s71 = sphi 0, %s70
      %s87 = sphi 0, %s71
      %s95 = sphi 0, %s97
      %s98 = sphi 0, %s95
      %s99 = sphi 0, %s98
      %s115 = sphi 0, %s99
    $region4: #{gmpool_masking_fc_forward.3} parent=1 // loop_header_branch
      %20 = sbr.rel (%p18) target = $region8
    $region5: #{gmpool_masking_fc_forward.3} parent=1 // loop_body
      %s22 = ssub.s32 %s17, 1
      %s23 = ssub.s32 %s17, 2
      %s30 = sadd.s32 1, %s25
      %p31 = scmp.ge.s32.totalorder %s30, 1
      %s32 = scalar_select %p31, 0, %s30
      %s33 = sadd.s32 1, %s24
      %s34 = scalar_select %p31, %s33, %s24
      %p35 = scmp.ge.s32.totalorder %s34, 2
      %s36 = scalar_select %p35, 0, %s34
      %s37 = ssub.s32 %s24, %s36
      %p38 = scmp.eq.s32.totalorder %s37, 0
      %s40 = sadd.s32 %s39, 1
      %s41 = scalar_select %p38, %s39, %s40
      %p44 = pneg %p38
      %p45 = scmp.eq.s32.totalorder %s17, 1
      %p46 = por %p44, %p45
      %p47 = scmp.ne.s32.totalorder %s39, %s42
      %p48 = scmp.eq.s32.totalorder %s17, 0
      %p49 = por %p47, %p48
      %p50 = scmp.ne.s32.totalorder %s39, %s42
      %p51 = scmp.eq.s32.totalorder %s22, 1
      %p52 = por %p50, %p51
      %p53 = scmp.ne.s32.totalorder %s42, %s43
      %p54 = scmp.eq.s32.totalorder %s22, 0
      %p55 = por %p53, %p54
      %p56 = scmp.ne.s32.totalorder %s42, %s43
      %p57 = scmp.eq.s32.totalorder %s23, 1
      %p58 = por %p56, %p57
      %p60 = scmp.ne.s32.totalorder %s43, %s59
      %p61 = scmp.eq.s32.totalorder %s23, 0
      %p62 = por %p60, %p61
      %s63 = ssub.s32 %s24, %s36
      %s64 = ssub.s32 %s25, %s32
      %s65 = sor.u32 %s63, %s64
      %p66 = scmp.eq.s32.totalorder %s65, 0
      %s68 = sadd.s32 %s67, 1
      %s69 = scalar_select %p66, %s67, %s68
      %p72 = pneg %p66
      %p73 = scmp.eq.s32.totalorder %s17, 1
      %p74 = por %p72, %p73
      %p75 = scmp.ne.s32.totalorder %s67, %s70
      %p76 = scmp.eq.s32.totalorder %s17, 0
      %p77 = por %p75, %p76
      %p78 = scmp.ne.s32.totalorder %s67, %s70
      %p79 = scmp.eq.s32.totalorder %s22, 1
      %p80 = por %p78, %p79
      %p81 = scmp.ne.s32.totalorder %s70, %s71
      %p82 = scmp.eq.s32.totalorder %s22, 0
      %p83 = por %p81, %p82
      %p84 = scmp.ne.s32.totalorder %s70, %s71
      %p85 = scmp.eq.s32.totalorder %s23, 1
      %p86 = por %p84, %p85
      %p88 = scmp.ne.s32.totalorder %s71, %s87
      %p89 = scmp.eq.s32.totalorder %s23, 0
      %p90 = por %p88, %p89
      %s91 = ssub.s32 %s24, %s36
      %s92 = ssub.s32 %s25, %s32
      %s93 = sor.u32 %s91, %s92
      %p94 = scmp.eq.s32.totalorder %s93, 0
      %s96 = sadd.s32 %s95, 1
      %s97 = scalar_select %p94, %s95, %s96
      %p100 = pneg %p94
      %p101 = scmp.eq.s32.totalorder %s17, 1
      %p102 = por %p100, %p101
      %p103 = scmp.ne.s32.totalorder %s95, %s98
      %p104 = scmp.eq.s32.totalorder %s17, 0
      %p105 = por %p103, %p104
      %p106 = scmp.ne.s32.totalorder %s95, %s98
      %p107 = scmp.eq.s32.totalorder %s22, 1
      %p108 = por %p106, %p107
      %p109 = scmp.ne.s32.totalorder %s98, %s99
      %p110 = scmp.eq.s32.totalorder %s22, 0
      %p111 = por %p109, %p110
      %p112 = scmp.ne.s32.totalorder %s98, %s99
      %p113 = scmp.eq.s32.totalorder %s23, 1
      %p114 = por %p112, %p113
      %p116 = scmp.ne.s32.totalorder %s99, %s115
      %p117 = scmp.eq.s32.totalorder %s23, 0
      %p118 = por %p116, %p117
      %p119 = scmp.le.s32.totalorder 1, %s17
      %p120 = scmp.lt.s32.totalorder %s17, 3
      %p121 = pnand %p119, %p120
      %p122 = pneg %p121
      // Predicated region
      $region9: #{gmpool_masking_fc_forward.3} parent=5 // pred_check
        _
      $region10: #{gmpool_masking_fc_forward.3} parent=5 // pred_check_branch
        %124 = sbr.rel (%p121) target = $region12
      $region11: #{gmpool_masking_fc_forward.3} parent=5 // pred_region
        %s125 = ssub.s32 %s17, 1
      $region12: #{gmpool_masking_fc_forward.3} parent=5 // pred_fallthru
        _
      %p126 = scmp.lt.s32.totalorder %s17, 2
      // Predicated region
      $region13: #{gmpool_masking_fc_forward.3} parent=5 // pred_check
        %p127 = pneg %p126
      $region14: #{gmpool_masking_fc_forward.3} parent=5 // pred_check_branch
        %129 = sbr.rel (%p127) target = $region16
      $region15: #{gmpool_masking_fc_forward.3} parent=5 // pred_region
        // Predicated region
        $region17: #{gmpool_masking_fc_forward.3} parent=15 // pred_check
          %p130 = pneg %p49
        $region18: #{gmpool_masking_fc_forward.3} parent=15 // pred_check_branch
          %132 = sbr.rel (%p130) target = $region20
        $region19: #{gmpool_masking_fc_forward.3} parent=15 // pred_region
          %s133 = sand.u32 %s39, 1
          %s134 = scalar_lea.sflag [#allocation3], %s133
          %s135 = sand.u32 %s39, 1
          %s136 = smul.addr %s135, 16
          %s137 = scalar_lea.vmem [#allocation2], %s136
          %s139 = ssub.s32 256, 256
          %140 = vsyncadd %s134, %s139
          %s141 = smul.addr %s24, 2
          %s142 = smul.addr %s141, 128
          %s143 = scalar_lea.hbm %s0, %s142
          %s144 = sshll.u32 %s137, 4
          %s145 = int_to_ptr.vmem [resolvable:$true] %s144
          %150 = dma.hbm_to_vmem [thread:$0]  %s143, 256, %s145, %s134, 128, 128, 8
        $region20: #{gmpool_masking_fc_forward.3} parent=15 // pred_fallthru
          _
        // Predicated region
        $region21: #{gmpool_masking_fc_forward.3} parent=15 // pred_check
          %p151 = pneg %p77
        $region22: #{gmpool_masking_fc_forward.3} parent=15 // pred_check_branch
          %153 = sbr.rel (%p151) target = $region24
        $region23: #{gmpool_masking_fc_forward.3} parent=15 // pred_region
          %s154 = sand.u32 %s67, 1
          %s155 = scalar_lea.sflag [#allocation6], %s154
          %s156 = sand.u32 %s67, 1
          %s157 = smul.addr %s156, 16
          %s158 = scalar_lea.vmem [#allocation5], %s157
          %s160 = ssub.s32 256, 256
          %161 = vsyncadd %s155, %s160
          %s162 = smul.addr %s25, 2
          %s163 = smul.addr %s24, 2
          %s164 = sadd.s32 %s162, %s163
          %s165 = smul.addr %s164, 128
          %s166 = scalar_lea.hbm %s1, %s165
          %s167 = sshll.u32 %s158, 4
          %s168 = int_to_ptr.vmem [resolvable:$true] %s167
          %173 = dma.hbm_to_vmem [thread:$0]  %s166, 256, %s168, %s155, 128, 128, 8
        $region24: #{gmpool_masking_fc_forward.3} parent=15 // pred_fallthru
          _
      $region16: #{gmpool_masking_fc_forward.3} parent=5 // pred_fallthru
        _
      %p174 = scmp.le.s32.totalorder 1, %s17
      %p175 = scmp.lt.s32.totalorder %s17, 3
      %p176 = pnand %p174, %p175
      %p177 = pneg %p176
      // Predicated region
      $region25: #{gmpool_masking_fc_forward.3} parent=5 // pred_check
        _
      $region26: #{gmpool_masking_fc_forward.3} parent=5 // pred_check_branch
        %179 = sbr.rel (%p176) target = $region28
      $region27: #{gmpool_masking_fc_forward.3} parent=5 // pred_region
        %s180 = ssub.s32 %s17, 1
        %s181 = sand.u32 %s42, 1
        %s182 = scalar_lea.sflag [#allocation3], %s181
        %s183 = sand.u32 %s42, 1
        %s184 = smul.addr %s183, 16
        %s185 = scalar_lea.vmem [#allocation2], %s184
        // Predicated region
        $region29: #{gmpool_masking_fc_forward.3} parent=27 // pred_check
          %p186 = pneg %p55
        $region30: #{gmpool_masking_fc_forward.3} parent=27 // pred_check_branch
          %188 = sbr.rel (%p186) target = $region32
        $region31: #{gmpool_masking_fc_forward.3} parent=27 // pred_region
          %189 = dma.done %s182, 256
        $region32: #{gmpool_masking_fc_forward.3} parent=27 // pred_fallthru
          _
        %s190 = sand.u32 %s70, 1
        %s191 = scalar_lea.sflag [#allocation6], %s190
        %s192 = sand.u32 %s70, 1
        %s193 = smul.addr %s192, 16
        %s194 = scalar_lea.vmem [#allocation5], %s193
        // Predicated region
        $region33: #{gmpool_masking_fc_forward.3} parent=27 // pred_check
          %p195 = pneg %p83
        $region34: #{gmpool_masking_fc_forward.3} parent=27 // pred_check_branch
          %197 = sbr.rel (%p195) target = $region36
        $region35: #{gmpool_masking_fc_forward.3} parent=27 // pred_region
          %198 = dma.done %s191, 256
        $region36: #{gmpool_masking_fc_forward.3} parent=27 // pred_fallthru
          _
        %s199 = sand.u32 %s42, 1
        %s200 = scalar_lea.sflag [#allocation3], %s199
        %s201 = sand.u32 %s42, 1
        %s202 = smul.addr %s201, 16
        %s203 = scalar_lea.vmem [#allocation2], %s202
        %p204 = pneg %p55
        %p205 = pneg %p52
        %s206 = sand.u32 %s70, 1
        %s207 = scalar_lea.sflag [#allocation6], %s206
        %s208 = sand.u32 %s70, 1
        %s209 = smul.addr %s208, 16
        %s210 = scalar_lea.vmem [#allocation5], %s209
        %p211 = pneg %p83
        %p212 = pneg %p80
        %p213 = pneg %p111
        %p214 = pneg %p108
        %s215 = sand.u32 %s98, 1
        %s216 = scalar_lea.sflag [#allocation4], %s215
        %s217 = sand.u32 %s98, 1
        %s218 = smul.addr %s217, 1280
        %s219 = scalar_lea.vmem [#allocation7], %s218
        %v221 = vld [vmem:[%s185] sm:$0xff]
        %v222 = vld [vmem:[%s185 + $0x8] sm:$0xff]
        %v223 = vld [vmem:[%s194] sm:$0xff]
        %v224 = vld [vmem:[%s194 + $0x8] sm:$0x3]
        %v225 = vlaneseq
        %v226 = vshrl.u32 %v225, 7
        %v227 = vsub.s32 0, %v226
        %v228 = vrot.slane %v223, %v227
        %230 = vbcast.lane.b32.xlu0 %v228, 256
        %v231 = vpop.permute.xlu0 %230
        %s233 = sor.u32 256, 8
        %234 = vbcast.lane.b32.xlu0 %v228, %s233
        %v235 = vpop.permute.xlu0 %234
        %v236 = vlaneseq
        %v237 = vshrl.u32 %v236, 7
        %v238 = vsub.s32 1, %v237
        %v239 = vrot.slane %v223, %v238
        %241 = vbcast.lane.b32.xlu0 %v239, 256
        %v242 = vpop.permute.xlu0 %241
        %s244 = sor.u32 256, 8
        %245 = vbcast.lane.b32.xlu0 %v239, %s244
        %v246 = vpop.permute.xlu0 %245
        %v247 = vlaneseq
        %v248 = vshrl.u32 %v247, 7
        %v249 = vsub.s32 2, %v248
        %v250 = vrot.slane %v223, %v249
        %252 = vbcast.lane.b32.xlu0 %v250, 256
        %v253 = vpop.permute.xlu0 %252
        %s255 = sor.u32 256, 8
        %256 = vbcast.lane.b32.xlu0 %v250, %s255
        %v257 = vpop.permute.xlu0 %256
        %v258 = vlaneseq
        %v259 = vshrl.u32 %v258, 7
        %v260 = vsub.s32 3, %v259
        %v261 = vrot.slane %v223, %v260
        %263 = vbcast.lane.b32.xlu0 %v261, 256
        %v264 = vpop.permute.xlu0 %263
        %s266 = sor.u32 256, 8
        %267 = vbcast.lane.b32.xlu0 %v261, %s266
        %v268 = vpop.permute.xlu0 %267
        %v269 = vlaneseq
        %v270 = vshrl.u32 %v269, 7
        %v271 = vsub.s32 4, %v270
        %v272 = vrot.slane %v223, %v271
        %274 = vbcast.lane.b32.xlu0 %v272, 256
        %v275 = vpop.permute.xlu0 %274
        %s277 = sor.u32 256, 8
        %278 = vbcast.lane.b32.xlu0 %v272, %s277
        %v279 = vpop.permute.xlu0 %278
        %v280 = vlaneseq
        %v281 = vshrl.u32 %v280, 7
        %v282 = vsub.s32 5, %v281
        %v283 = vrot.slane %v223, %v282
        %285 = vbcast.lane.b32.xlu0 %v283, 256
        %v286 = vpop.permute.xlu0 %285
        %s288 = sor.u32 256, 8
        %289 = vbcast.lane.b32.xlu0 %v283, %s288
        %v290 = vpop.permute.xlu0 %289
        %v291 = vlaneseq
        %v292 = vshrl.u32 %v291, 7
        %v293 = vsub.s32 6, %v292
        %v294 = vrot.slane %v223, %v293
        %296 = vbcast.lane.b32.xlu0 %v294, 256
        %v297 = vpop.permute.xlu0 %296
        %s299 = sor.u32 256, 8
        %300 = vbcast.lane.b32.xlu0 %v294, %s299
        %v301 = vpop.permute.xlu0 %300
        %v302 = vlaneseq
        %v303 = vshrl.u32 %v302, 7
        %v304 = vsub.s32 7, %v303
        %v305 = vrot.slane %v223, %v304
        %307 = vbcast.lane.b32.xlu0 %v305, 256
        %v308 = vpop.permute.xlu0 %307
        %s310 = sor.u32 256, 8
        %311 = vbcast.lane.b32.xlu0 %v305, %s310
        %v312 = vpop.permute.xlu0 %311
        %v313 = vlaneseq
        %v314 = vshrl.u32 %v313, 7
        %v315 = vsub.s32 0, %v314
        %v316 = vrot.slane %v224, %v315
        %318 = vbcast.lane.b32.xlu0 %v316, 256
        %v319 = vpop.permute.xlu0 %318
        %s321 = sor.u32 256, 8
        %322 = vbcast.lane.b32.xlu0 %v316, %s321
        %v323 = vpop.permute.xlu0 %322
        %v324 = vlaneseq
        %v325 = vshrl.u32 %v324, 7
        %v326 = vsub.s32 1, %v325
        %v327 = vrot.slane %v224, %v326
        %329 = vbcast.lane.b32.xlu0 %v327, 256
        %v330 = vpop.permute.xlu0 %329
        %s332 = sor.u32 256, 8
        %333 = vbcast.lane.b32.xlu0 %v327, %s332
        %v334 = vpop.permute.xlu0 %333
        %v335 = vmul.f32 %v231, %v221
        %v336 = vmul.f32 %v235, %v222
        %v337 = vmul.f32 %v242, %v221
        %v338 = vmul.f32 %v246, %v222
        %v339 = vmul.f32 %v253, %v221
        %v340 = vmul.f32 %v257, %v222
        %v341 = vmul.f32 %v264, %v221
        %v342 = vmul.f32 %v268, %v222
        %v343 = vmul.f32 %v275, %v221
        %v344 = vmul.f32 %v279, %v222
        %v345 = vmul.f32 %v286, %v221
        %v346 = vmul.f32 %v290, %v222
        %v347 = vmul.f32 %v297, %v221
        %v348 = vmul.f32 %v301, %v222
        %v349 = vmul.f32 %v308, %v221
        %v350 = vmul.f32 %v312, %v222
        %v351 = vmul.f32 %v319, %v221
        %v352 = vmul.f32 %v323, %v222
        %v353 = vmul.f32 %v330, %v221
        %v354 = vmul.f32 %v334, %v222
        %v355 = vadd.f32 %v335, %v336
        %v356 = vrot.slane %v355, 4
        %v357 = vadd.f32 %v355, %v356
        %v358 = vrot.slane %v357, 2
        %v359 = vadd.f32 %v357, %v358
        %v360 = vrot.slane %v359, 1
        %v361 = vadd.f32 %v359, %v360
        %v362 = vadd.f32 %v337, %v338
        %v363 = vrot.slane %v362, 4
        %v364 = vadd.f32 %v362, %v363
        %v365 = vrot.slane %v364, 2
        %v366 = vadd.f32 %v364, %v365
        %v367 = vrot.slane %v366, 1
        %v368 = vadd.f32 %v366, %v367
        %v369 = vadd.f32 %v339, %v340
        %v370 = vrot.slane %v369, 4
        %v371 = vadd.f32 %v369, %v370
        %v372 = vrot.slane %v371, 2
        %v373 = vadd.f32 %v371, %v372
        %v374 = vrot.slane %v373, 1
        %v375 = vadd.f32 %v373, %v374
        %v376 = vadd.f32 %v341, %v342
        %v377 = vrot.slane %v376, 4
        %v378 = vadd.f32 %v376, %v377
        %v379 = vrot.slane %v378, 2
        %v380 = vadd.f32 %v378, %v379
        %v381 = vrot.slane %v380, 1
        %v382 = vadd.f32 %v380, %v381
        %v383 = vadd.f32 %v343, %v344
        %v384 = vrot.slane %v383, 4
        %v385 = vadd.f32 %v383, %v384
        %v386 = vrot.slane %v385, 2
        %v387 = vadd.f32 %v385, %v386
        %v388 = vrot.slane %v387, 1
        %v389 = vadd.f32 %v387, %v388
        %v390 = vadd.f32 %v345, %v346
        %v391 = vrot.slane %v390, 4
        %v392 = vadd.f32 %v390, %v391
        %v393 = vrot.slane %v392, 2
        %v394 = vadd.f32 %v392, %v393
        %v395 = vrot.slane %v394, 1
        %v396 = vadd.f32 %v394, %v395
        %v397 = vadd.f32 %v347, %v348
        %v398 = vrot.slane %v397, 4
        %v399 = vadd.f32 %v397, %v398
        %v400 = vrot.slane %v399, 2
        %v401 = vadd.f32 %v399, %v400
        %v402 = vrot.slane %v401, 1
        %v403 = vadd.f32 %v401, %v402
        %v404 = vadd.f32 %v349, %v350
        %v405 = vrot.slane %v404, 4
        %v406 = vadd.f32 %v404, %v405
        %v407 = vrot.slane %v406, 2
        %v408 = vadd.f32 %v406, %v407
        %v409 = vrot.slane %v408, 1
        %v410 = vadd.f32 %v408, %v409
        %v411 = vadd.f32 %v351, %v352
        %v412 = vrot.slane %v411, 4
        %v413 = vadd.f32 %v411, %v412
        %v414 = vrot.slane %v413, 2
        %v415 = vadd.f32 %v413, %v414
        %v416 = vrot.slane %v415, 1
        %v417 = vadd.f32 %v415, %v416
        %v418 = vadd.f32 %v353, %v354
        %v419 = vrot.slane %v418, 4
        %v420 = vadd.f32 %v418, %v419
        %v421 = vrot.slane %v420, 2
        %v422 = vadd.f32 %v420, %v421
        %v423 = vrot.slane %v422, 1
        %v424 = vadd.f32 %v422, %v423
        %v425 = vrcp.pop 16.0
        %v426 = vmul.f32 %v361, %v425
        %v427 = vmul.f32 %v368, %v425
        %v428 = vmul.f32 %v375, %v425
        %v429 = vmul.f32 %v382, %v425
        %v430 = vmul.f32 %v389, %v425
        %v431 = vmul.f32 %v396, %v425
        %v432 = vmul.f32 %v403, %v425
        %v433 = vmul.f32 %v410, %v425
        %v434 = vmul.f32 %v417, %v425
        %v435 = vmul.f32 %v424, %v425
        %v436 = vsub.f32 %v335, %v426
        %v437 = vsub.f32 %v336, %v426
        %v438 = vsub.f32 %v337, %v427
        %v439 = vsub.f32 %v338, %v427
        %v440 = vsub.f32 %v339, %v428
        %v441 = vsub.f32 %v340, %v428
        %v442 = vsub.f32 %v341, %v429
        %v443 = vsub.f32 %v342, %v429
        %v444 = vsub.f32 %v343, %v430
        %v445 = vsub.f32 %v344, %v430
        %v446 = vsub.f32 %v345, %v431
        %v447 = vsub.f32 %v346, %v431
        %v448 = vsub.f32 %v347, %v432
        %v449 = vsub.f32 %v348, %v432
        %v450 = vsub.f32 %v349, %v433
        %v451 = vsub.f32 %v350, %v433
        %v452 = vsub.f32 %v351, %v434
        %v453 = vsub.f32 %v352, %v434
        %v454 = vsub.f32 %v353, %v435
        %v455 = vsub.f32 %v354, %v435
        %v456 = vmul.f32 %v436, %v436
        %v457 = vmul.f32 %v437, %v437
        %v458 = vmul.f32 %v438, %v438
        %v459 = vmul.f32 %v439, %v439
        %v460 = vmul.f32 %v440, %v440
        %v461 = vmul.f32 %v441, %v441
        %v462 = vmul.f32 %v442, %v442
        %v463 = vmul.f32 %v443, %v443
        %v464 = vmul.f32 %v444, %v444
        %v465 = vmul.f32 %v445, %v445
        %v466 = vmul.f32 %v446, %v446
        %v467 = vmul.f32 %v447, %v447
        %v468 = vmul.f32 %v448, %v448
        %v469 = vmul.f32 %v449, %v449
        %v470 = vmul.f32 %v450, %v450
        %v471 = vmul.f32 %v451, %v451
        %v472 = vmul.f32 %v452, %v452
        %v473 = vmul.f32 %v453, %v453
        %v474 = vmul.f32 %v454, %v454
        %v475 = vmul.f32 %v455, %v455
        %v476 = vadd.f32 %v456, %v457
        %v477 = vrot.slane %v476, 4
        %v478 = vadd.f32 %v476, %v477
        %v479 = vrot.slane %v478, 2
        %v480 = vadd.f32 %v478, %v479
        %v481 = vrot.slane %v480, 1
        %v482 = vadd.f32 %v480, %v481
        %v483 = vadd.f32 %v458, %v459
        %v484 = vrot.slane %v483, 4
        %v485 = vadd.f32 %v483, %v484
        %v486 = vrot.slane %v485, 2
        %v487 = vadd.f32 %v485, %v486
        %v488 = vrot.slane %v487, 1
        %v489 = vadd.f32 %v487, %v488
        %v490 = vadd.f32 %v460, %v461
        %v491 = vrot.slane %v490, 4
        %v492 = vadd.f32 %v490, %v491
        %v493 = vrot.slane %v492, 2
        %v494 = vadd.f32 %v492, %v493
        %v495 = vrot.slane %v494, 1
        %v496 = vadd.f32 %v494, %v495
        %v497 = vadd.f32 %v462, %v463
        %v498 = vrot.slane %v497, 4
        %v499 = vadd.f32 %v497, %v498
        %v500 = vrot.slane %v499, 2
        %v501 = vadd.f32 %v499, %v500
        %v502 = vrot.slane %v501, 1
        %v503 = vadd.f32 %v501, %v502
        %v504 = vadd.f32 %v464, %v465
        %v505 = vrot.slane %v504, 4
        %v506 = vadd.f32 %v504, %v505
        %v507 = vrot.slane %v506, 2
        %v508 = vadd.f32 %v506, %v507
        %v509 = vrot.slane %v508, 1
        %v510 = vadd.f32 %v508, %v509
        %v511 = vadd.f32 %v466, %v467
        %v512 = vrot.slane %v511, 4
        %v513 = vadd.f32 %v511, %v512
        %v514 = vrot.slane %v513, 2
        %v515 = vadd.f32 %v513, %v514
        %v516 = vrot.slane %v515, 1
        %v517 = vadd.f32 %v515, %v516
        %v518 = vadd.f32 %v468, %v469
        %v519 = vrot.slane %v518, 4
        %v520 = vadd.f32 %v518, %v519
        %v521 = vrot.slane %v520, 2
        %v522 = vadd.f32 %v520, %v521
        %v523 = vrot.slane %v522, 1
        %v524 = vadd.f32 %v522, %v523
        %v525 = vadd.f32 %v470, %v471
        %v526 = vrot.slane %v525, 4
        %v527 = vadd.f32 %v525, %v526
        %v528 = vrot.slane %v527, 2
        %v529 = vadd.f32 %v527, %v528
        %v530 = vrot.slane %v529, 1
        %v531 = vadd.f32 %v529, %v530
        %v532 = vadd.f32 %v472, %v473
        %v533 = vrot.slane %v532, 4
        %v534 = vadd.f32 %v532, %v533
        %v535 = vrot.slane %v534, 2
        %v536 = vadd.f32 %v534, %v535
        %v537 = vrot.slane %v536, 1
        %v538 = vadd.f32 %v536, %v537
        %v539 = vadd.f32 %v474, %v475
        %v540 = vrot.slane %v539, 4
        %v541 = vadd.f32 %v539, %v540
        %v542 = vrot.slane %v541, 2
        %v543 = vadd.f32 %v541, %v542
        %v544 = vrot.slane %v543, 1
        %v545 = vadd.f32 %v543, %v544
        %vm546 = vcmp.gt.f32.partialorder %v482, 0.0
        %vm547 = vcmp.gt.f32.partialorder %v489, 0.0
        %vm548 = vcmp.gt.f32.partialorder %v496, 0.0
        %vm549 = vcmp.gt.f32.partialorder %v503, 0.0
        %vm550 = vcmp.gt.f32.partialorder %v510, 0.0
        %vm551 = vcmp.gt.f32.partialorder %v517, 0.0
        %vm552 = vcmp.gt.f32.partialorder %v524, 0.0
        %vm553 = vcmp.gt.f32.partialorder %v531, 0.0
        %vm554 = vcmp.gt.f32.partialorder %v538, 0.0
        %vm555 = vcmp.gt.f32.partialorder %v545, 0.0
        %v556 = vrsqrt.pop %v482
        %v557 = vrsqrt.pop %v489
        %v558 = vrsqrt.pop %v496
        %v559 = vrsqrt.pop %v503
        %v560 = vrsqrt.pop %v510
        %v561 = vrsqrt.pop %v517
        %v562 = vrsqrt.pop %v524
        %v563 = vrsqrt.pop %v531
        %v564 = vrsqrt.pop %v538
        %v565 = vrsqrt.pop %v545
        %v566 = vsel %vm546, %v556, 0.0
        %v567 = vsel %vm547, %v557, 0.0
        %v568 = vsel %vm548, %v558, 0.0
        %v569 = vsel %vm549, %v559, 0.0
        %v570 = vsel %vm550, %v560, 0.0
        %v571 = vsel %vm551, %v561, 0.0
        %v572 = vsel %vm552, %v562, 0.0
        %v573 = vsel %vm553, %v563, 0.0
        %v574 = vsel %vm554, %v564, 0.0
        %v575 = vsel %vm555, %v565, 0.0
        %v576 = vmul.f32 %v436, %v566
        %v577 = vmul.f32 %v437, %v566
        %v578 = vmul.f32 %v438, %v567
        %v579 = vmul.f32 %v439, %v567
        %v580 = vmul.f32 %v440, %v568
        %v581 = vmul.f32 %v441, %v568
        %v582 = vmul.f32 %v442, %v569
        %v583 = vmul.f32 %v443, %v569
        %v584 = vmul.f32 %v444, %v570
        %v585 = vmul.f32 %v445, %v570
        %v586 = vmul.f32 %v446, %v571
        %v587 = vmul.f32 %v447, %v571
        %v588 = vmul.f32 %v448, %v572
        %v589 = vmul.f32 %v449, %v572
        %v590 = vmul.f32 %v450, %v573
        %v591 = vmul.f32 %v451, %v573
        %v592 = vmul.f32 %v452, %v574
        %v593 = vmul.f32 %v453, %v574
        %v594 = vmul.f32 %v454, %v575
        %v595 = vmul.f32 %v455, %v575
        %v596 = vpack.c.bf16 %v577, %v576
        %v597 = vpack.c.bf16 %v579, %v578
        %v598 = vpack.c.bf16 %v581, %v580
        %v599 = vpack.c.bf16 %v583, %v582
        %v600 = vpack.c.bf16 %v585, %v584
        %v601 = vpack.c.bf16 %v587, %v586
        %v602 = vpack.c.bf16 %v589, %v588
        %v603 = vpack.c.bf16 %v591, %v590
        %v604 = vpack.c.bf16 %v593, %v592
        %v605 = vpack.c.bf16 %v595, %v594
        %606 = vxpose.xlu0.c.b16.start [1/8] %v596, 128
        %607 = vxpose.xlu0.c.b16.cont [2/8] 0, 128
        %608 = vxpose.xlu0.c.b16.cont [3/8] 0, 128
        %609 = vxpose.xlu0.c.b16.cont [4/8] 0, 128
        %610 = vxpose.xlu0.c.b16.cont [5/8] 0, 128
        %611 = vxpose.xlu0.c.b16.cont [6/8] 0, 128
        %612 = vxpose.xlu0.c.b16.cont [7/8] 0, 128
        %613 = vxpose.xlu0.c.b16.end [8/8] 0, 128
        %v614 = vpop.trf.xlu0
        %v615 = vpop.trf.xlu0
        %v616 = vpop.trf.xlu0
        %v617 = vpop.trf.xlu0
        %v618 = vpop.trf.xlu0
        %v619 = vpop.trf.xlu0
        %v620 = vpop.trf.xlu0
        %v621 = vpop.trf.xlu0
        %vm622 = vcmask 130048
        %v624 = vsel %vm622, %v614, 0
        %v627 = vsel %vm622, %v615, 0
        %v630 = vsel %vm622, %v616, 0
        %v633 = vsel %vm622, %v617, 0
        %v636 = vsel %vm622, %v618, 0
        %v639 = vsel %vm622, %v619, 0
        %v642 = vsel %vm622, %v620, 0
        %v645 = vsel %vm622, %v621, 0
        %647 = vmatprep.subr.bf16.mxu0 0
        %648 = vmatpush1.bf16.msra.mxu0 %v596
        %649 = vmatprep.subr.bf16.mxu0 0
        %650 = vmatpush1.bf16.msra.mxu0 0
        %651 = vmatprep.subr.bf16.mxu0 0
        %652 = vmatpush1.bf16.msra.mxu0 0
        %653 = vmatprep.subr.bf16.mxu0 0
        %654 = vmatpush1.bf16.msra.mxu0 0
        %655 = vmatprep.subr.bf16.mxu0 0
        %656 = vmatpush1.bf16.msra.mxu0 0
        %657 = vmatprep.subr.bf16.mxu0 0
        %658 = vmatpush1.bf16.msra.mxu0 0
        %659 = vmatprep.subr.bf16.mxu0 0
        %660 = vmatpush1.bf16.msra.mxu0 0
        %661 = vmatprep.subr.bf16.mxu0 0
        %662 = vmatpush1.bf16.msra.mxu0 0
        %663 = vmatprep.subr.bf16.mxu0 0
        %664 = vmatpush1.bf16.msra.mxu0 0
        %665 = vmatprep.subr.bf16.mxu0 0
        %666 = vmatpush1.bf16.msra.mxu0 0
        %667 = vmatprep.subr.bf16.mxu0 0
        %668 = vmatpush1.bf16.msra.mxu0 0
        %669 = vmatprep.subr.bf16.mxu0 0
        %670 = vmatpush1.bf16.msra.mxu0 0
        %671 = vmatprep.subr.bf16.mxu0 0
        %672 = vmatpush1.bf16.msra.mxu0 0
        %673 = vmatprep.subr.bf16.mxu0 0
        %674 = vmatpush1.bf16.msra.mxu0 0
        %675 = vmatprep.subr.bf16.mxu0 0
        %676 = vmatpush1.bf16.msra.mxu0 0
        %677 = vmatprep.subr.bf16.mxu0 0
        %678 = vmatpush1.bf16.msra.mxu0 0
        %679 = vmatprep.mubr.bf16.mxu0 0
        %680 = vmatmul.mubr.bf16.gmra.mrb[0].mxu0 %v624
        %v681 = vpop.f32.mrb[0].mxu0
        %v682 = vadd.f32 0.0, %v681
        %v683 = vpop.f32.mrb[0].mxu0
        %v684 = vpop.f32.mrb[0].mxu0
        %v685 = vadd.f32 0.0, %v684
        %v686 = vpop.f32.mrb[0].mxu0
        %687 = vmatprep.mubr.bf16.mxu0 0
        %688 = vmatmul.mubr.bf16.gmra.mrb[0].mxu0 %v627
        %v689 = vpop.f32.mrb[0].mxu0
        %v690 = vadd.f32 0.0, %v689
        %v691 = vpop.f32.mrb[0].mxu0
        %v692 = vpop.f32.mrb[0].mxu0
        %v693 = vadd.f32 0.0, %v692
        %v694 = vpop.f32.mrb[0].mxu0
        %695 = vmatprep.mubr.bf16.mxu0 0
        %696 = vmatmul.mubr.bf16.gmra.mrb[0].mxu0 %v630
        %v697 = vpop.f32.mrb[0].mxu0
        %v698 = vadd.f32 0.0, %v697
        %v699 = vpop.f32.mrb[0].mxu0
        %v700 = vpop.f32.mrb[0].mxu0
        %v701 = vadd.f32 0.0, %v700
        %v702 = vpop.f32.mrb[0].mxu0
        %703 = vmatprep.mubr.bf16.mxu0 0
        %704 = vmatmul.mubr.bf16.gmra.mrb[0].mxu0 %v633
        %v705 = vpop.f32.mrb[0].mxu0
        %v706 = vadd.f32 0.0, %v705
        %v707 = vpop.f32.mrb[0].mxu0
        %v708 = vpop.f32.mrb[0].mxu0
        %v709 = vadd.f32 0.0, %v708
        %v710 = vpop.f32.mrb[0].mxu0
        %711 = vmatprep.mubr.bf16.mxu0 0
        %712 = vmatmul.mubr.bf16.gmra.mrb[0].mxu0 %v636
        %v713 = vpop.f32.mrb[0].mxu0
        %v714 = vadd.f32 0.0, %v713
        %v715 = vpop.f32.mrb[0].mxu0
        %v716 = vpop.f32.mrb[0].mxu0
        %v717 = vadd.f32 0.0, %v716
        %v718 = vpop.f32.mrb[0].mxu0
        %719 = vmatprep.mubr.bf16.mxu0 0
        %720 = vmatmul.mubr.bf16.gmra.mrb[0].mxu0 %v639
        %v721 = vpop.f32.mrb[0].mxu0
        %v722 = vadd.f32 0.0, %v721
        %v723 = vpop.f32.mrb[0].mxu0
        %v724 = vpop.f32.mrb[0].mxu0
        %v725 = vadd.f32 0.0, %v724
        %v726 = vpop.f32.mrb[0].mxu0
        %727 = vmatprep.mubr.bf16.mxu0 0
        %728 = vmatmul.mubr.bf16.gmra.mrb[0].mxu0 %v642
        %v729 = vpop.f32.mrb[0].mxu0
        %v730 = vadd.f32 0.0, %v729
        %v731 = vpop.f32.mrb[0].mxu0
        %v732 = vpop.f32.mrb[0].mxu0
        %v733 = vadd.f32 0.0, %v732
        %v734 = vpop.f32.mrb[0].mxu0
        %735 = vmatprep.mubr.bf16.mxu0 0
        %736 = vmatmul.mubr.bf16.gmra.mrb[0].mxu0 %v645
        %v737 = vpop.f32.mrb[0].mxu0
        %v738 = vadd.f32 0.0, %v737
        %v739 = vpop.f32.mrb[0].mxu0
        %v740 = vpop.f32.mrb[0].mxu0
        %v741 = vadd.f32 0.0, %v740
        %v742 = vpop.f32.mrb[0].mxu0
        %743 = vdwg.mxu0
        %744 = vxpose.xlu0.c.b16.start [1/8] %v597, 128
        %745 = vxpose.xlu0.c.b16.cont [2/8] 0, 128
        %746 = vxpose.xlu0.c.b16.cont [3/8] 0, 128
        %747 = vxpose.xlu0.c.b16.cont [4/8] 0, 128
        %748 = vxpose.xlu0.c.b16.cont [5/8] 0, 128
        %749 = vxpose.xlu0.c.b16.cont [6/8] 0, 128
        %750 = vxpose.xlu0.c.b16.cont [7/8] 0, 128
        %751 = vxpose.xlu0.c.b16.end [8/8] 0, 128
        %v752 = vpop.trf.xlu0
        %v753 = vpop.trf.xlu0
        %v754 = vpop.trf.xlu0
        %v755 = vpop.trf.xlu0
        %v756 = vpop.trf.xlu0
        %v757 = vpop.trf.xlu0
        %v758 = vpop.trf.xlu0
        %v759 = vpop.trf.xlu0
        %v761 = vsel %vm622, %v752, 0
        %v764 = vsel %vm622, %v753, 0
        %v767 = vsel %vm622, %v754, 0
        %v770 = vsel %vm622, %v755, 0
        %v773 = vsel %vm622, %v756, 0
        %v776 = vsel %vm622, %v757, 0
        %v779 = vsel %vm622, %v758, 0
        %v782 = vsel %vm622, %v759, 0
        %784 = vmatprep.subr.bf16.mxu0 0
        %785 = vmatpush1.bf16.msra.mxu0 %v597
        %786 = vmatprep.subr.bf16.mxu0 0
        %787 = vmatpush1.bf16.msra.mxu0 0
        %788 = vmatprep.subr.bf16.mxu0 0
        %789 = vmatpush1.bf16.msra.mxu0 0
        %790 = vmatprep.subr.bf16.mxu0 0
        %791 = vmatpush1.bf16.msra.mxu0 0
        %792 = vmatprep.subr.bf16.mxu0 0
        %793 = vmatpush1.bf16.msra.mxu0 0
        %794 = vmatprep.subr.bf16.mxu0 0
        %795 = vmatpush1.bf16.msra.mxu0 0
        %796 = vmatprep.subr.bf16.mxu0 0
        %797 = vmatpush1.bf16.msra.mxu0 0
        %798 = vmatprep.subr.bf16.mxu0 0
        %799 = vmatpush1.bf16.msra.mxu0 0
        %800 = vmatprep.subr.bf16.mxu0 0
        %801 = vmatpush1.bf16.msra.mxu0 0
        %802 = vmatprep.subr.bf16.mxu0 0
        %803 = vmatpush1.bf16.msra.mxu0 0
        %804 = vmatprep.subr.bf16.mxu0 0
        %805 = vmatpush1.bf16.msra.mxu0 0
        %806 = vmatprep.subr.bf16.mxu0 0
        %807 = vmatpush1.bf16.msra.mxu0 0
        %808 = vmatprep.subr.bf16.mxu0 0
        %809 = vmatpush1.bf16.msra.mxu0 0
        %810 = vmatprep.subr.bf16.mxu0 0
        %811 = vmatpush1.bf16.msra.mxu0 0
        %812 = vmatprep.subr.bf16.mxu0 0
        %813 = vmatpush1.bf16.msra.mxu0 0
        %814 = vmatprep.subr.bf16.mxu0 0
        %815 = vmatpush1.bf16.msra.mxu0 0
        %816 = vmatprep.mubr.bf16.mxu0 0
        %817 = vmatmul.mubr.bf16.gmra.mrb[0].mxu0 %v761
        %v818 = vpop.f32.mrb[0].mxu0
        %v819 = vadd.f32 0.0, %v818
        %v820 = vpop.f32.mrb[0].mxu0
        %v821 = vpop.f32.mrb[0].mxu0
        %v822 = vadd.f32 0.0, %v821
        %v823 = vpop.f32.mrb[0].mxu0
        %824 = vmatprep.mubr.bf16.mxu0 0
        %825 = vmatmul.mubr.bf16.gmra.mrb[0].mxu0 %v764
        %v826 = vpop.f32.mrb[0].mxu0
        %v827 = vadd.f32 0.0, %v826
        %v828 = vpop.f32.mrb[0].mxu0
        %v829 = vpop.f32.mrb[0].mxu0
        %v830 = vadd.f32 0.0, %v829
        %v831 = vpop.f32.mrb[0].mxu0
        %832 = vmatprep.mubr.bf16.mxu0 0
        %833 = vmatmul.mubr.bf16.gmra.mrb[0].mxu0 %v767
        %v834 = vpop.f32.mrb[0].mxu0
        %v835 = vadd.f32 0.0, %v834
        %v836 = vpop.f32.mrb[0].mxu0
        %v837 = vpop.f32.mrb[0].mxu0
        %v838 = vadd.f32 0.0, %v837
        %v839 = vpop.f32.mrb[0].mxu0
        %840 = vmatprep.mubr.bf16.mxu0 0
        %841 = vmatmul.mubr.bf16.gmra.mrb[0].mxu0 %v770
        %v842 = vpop.f32.mrb[0].mxu0
        %v843 = vadd.f32 0.0, %v842
        %v844 = vpop.f32.mrb[0].mxu0
        %v845 = vpop.f32.mrb[0].mxu0
        %v846 = vadd.f32 0.0, %v845
        %v847 = vpop.f32.mrb[0].mxu0
        %848 = vmatprep.mubr.bf16.mxu0 0
        %849 = vmatmul.mubr.bf16.gmra.mrb[0].mxu0 %v773
        %v850 = vpop.f32.mrb[0].mxu0
        %v851 = vadd.f32 0.0, %v850
        %v852 = vpop.f32.mrb[0].mxu0
        %v853 = vpop.f32.mrb[0].mxu0
        %v854 = vadd.f32 0.0, %v853
        %v855 = vpop.f32.mrb[0].mxu0
        %856 = vmatprep.mubr.bf16.mxu0 0
        %857 = vmatmul.mubr.bf16.gmra.mrb[0].mxu0 %v776
        %v858 = vpop.f32.mrb[0].mxu0
        %v859 = vadd.f32 0.0, %v858
        %v860 = vpop.f32.mrb[0].mxu0
        %v861 = vpop.f32.mrb[0].mxu0
        %v862 = vadd.f32 0.0, %v861
        %v863 = vpop.f32.mrb[0].mxu0
        %864 = vmatprep.mubr.bf16.mxu0 0
        %865 = vmatmul.mubr.bf16.gmra.mrb[0].mxu0 %v779
        %v866 = vpop.f32.mrb[0].mxu0
        %v867 = vadd.f32 0.0, %v866
        %v868 = vpop.f32.mrb[0].mxu0
        %v869 = vpop.f32.mrb[0].mxu0
        %v870 = vadd.f32 0.0, %v869
        %v871 = vpop.f32.mrb[0].mxu0
        %872 = vmatprep.mubr.bf16.mxu0 0
        %873 = vmatmul.mubr.bf16.gmra.mrb[0].mxu0 %v782
        %v874 = vpop.f32.mrb[0].mxu0
        %v875 = vadd.f32 0.0, %v874
        %v876 = vpop.f32.mrb[0].mxu0
        %v877 = vpop.f32.mrb[0].mxu0
        %v878 = vadd.f32 0.0, %v877
        %v879 = vpop.f32.mrb[0].mxu0
        %880 = vdwg.mxu0
        %881 = vxpose.xlu0.c.b16.start [1/8] %v598, 128
        %882 = vxpose.xlu0.c.b16.cont [2/8] 0, 128
        %883 = vxpose.xlu0.c.b16.cont [3/8] 0, 128
        %884 = vxpose.xlu0.c.b16.cont [4/8] 0, 128
        %885 = vxpose.xlu0.c.b16.cont [5/8] 0, 128
        %886 = vxpose.xlu0.c.b16.cont [6/8] 0, 128
        %887 = vxpose.xlu0.c.b16.cont [7/8] 0, 128
        %888 = vxpose.xlu0.c.b16.end [8/8] 0, 128
        %v889 = vpop.trf.xlu0
        %v890 = vpop.trf.xlu0
        %v891 = vpop.trf.xlu0
        %v892 = vpop.trf.xlu0
        %v893 = vpop.trf.xlu0
        %v894 = vpop.trf.xlu0
        %v895 = vpop.trf.xlu0
        %v896 = vpop.trf.xlu0
        %v898 = vsel %vm622, %v889, 0
        %v901 = vsel %vm622, %v890, 0
        %v904 = vsel %vm622, %v891, 0
        %v907 = vsel %vm622, %v892, 0
        %v910 = vsel %vm622, %v893, 0
        %v913 = vsel %vm622, %v894, 0
        %v916 = vsel %vm622, %v895, 0
        %v919 = vsel %vm622, %v896, 0
        %921 = vmatprep.subr.bf16.mxu0 0
        %922 = vmatpush1.bf16.msra.mxu0 %v598
        %923 = vmatprep.subr.bf16.mxu0 0
        %924 = vmatpush1.bf16.msra.mxu0 0
        %925 = vmatprep.subr.bf16.mxu0 0
        %926 = vmatpush1.bf16.msra.mxu0 0
        %927 = vmatprep.subr.bf16.mxu0 0
        %928 = vmatpush1.bf16.msra.mxu0 0
        %929 = vmatprep.subr.bf16.mxu0 0
        %930 = vmatpush1.bf16.msra.mxu0 0
        %931 = vmatprep.subr.bf16.mxu0 0
        %932 = vmatpush1.bf16.msra.mxu0 0
        %933 = vmatprep.subr.bf16.mxu0 0
        %934 = vmatpush1.bf16.msra.mxu0 0
        %935 = vmatprep.subr.bf16.mxu0 0
        %936 = vmatpush1.bf16.msra.mxu0 0
        %937 = vmatprep.subr.bf16.mxu0 0
        %938 = vmatpush1.bf16.msra.mxu0 0
        %939 = vmatprep.subr.bf16.mxu0 0
        %940 = vmatpush1.bf16.msra.mxu0 0
        %941 = vmatprep.subr.bf16.mxu0 0
        %942 = vmatpush1.bf16.msra.mxu0 0
        %943 = vmatprep.subr.bf16.mxu0 0
        %944 = vmatpush1.bf16.msra.mxu0 0
        %945 = vmatprep.subr.bf16.mxu0 0
        %946 = vmatpush1.bf16.msra.mxu0 0
        %947 = vmatprep.subr.bf16.mxu0 0
        %948 = vmatpush1.bf16.msra.mxu0 0
        %949 = vmatprep.subr.bf16.mxu0 0
        %950 = vmatpush1.bf16.msra.mxu0 0
        %951 = vmatprep.subr.bf16.mxu0 0
        %952 = vmatpush1.bf16.msra.mxu0 0
        %953 = vmatprep.mubr.bf16.mxu0 0
        %954 = vmatmul.mubr.bf16.gmra.mrb[0].mxu0 %v898
        %v955 = vpop.f32.mrb[0].mxu0
        %v956 = vadd.f32 0.0, %v955
        %v957 = vpop.f32.mrb[0].mxu0
        %v958 = vpop.f32.mrb[0].mxu0
        %v959 = vadd.f32 0.0, %v958
        %v960 = vpop.f32.mrb[0].mxu0
        %961 = vmatprep.mubr.bf16.mxu0 0
        %962 = vmatmul.mubr.bf16.gmra.mrb[0].mxu0 %v901
        %v963 = vpop.f32.mrb[0].mxu0
        %v964 = vadd.f32 0.0, %v963
        %v965 = vpop.f32.mrb[0].mxu0
        %v966 = vpop.f32.mrb[0].mxu0
        %v967 = vadd.f32 0.0, %v966
        %v968 = vpop.f32.mrb[0].mxu0
        %969 = vmatprep.mubr.bf16.mxu0 0
        %970 = vmatmul.mubr.bf16.gmra.mrb[0].mxu0 %v904
        %v971 = vpop.f32.mrb[0].mxu0
        %v972 = vadd.f32 0.0, %v971
        %v973 = vpop.f32.mrb[0].mxu0
        %v974 = vpop.f32.mrb[0].mxu0
        %v975 = vadd.f32 0.0, %v974
        %v976 = vpop.f32.mrb[0].mxu0
        %977 = vmatprep.mubr.bf16.mxu0 0
        %978 = vmatmul.mubr.bf16.gmra.mrb[0].mxu0 %v907
        %v979 = vpop.f32.mrb[0].mxu0
        %v980 = vadd.f32 0.0, %v979
        %v981 = vpop.f32.mrb[0].mxu0
        %v982 = vpop.f32.mrb[0].mxu0
        %v983 = vadd.f32 0.0, %v982
        %v984 = vpop.f32.mrb[0].mxu0
        %985 = vmatprep.mubr.bf16.mxu0 0
        %986 = vmatmul.mubr.bf16.gmra.mrb[0].mxu0 %v910
        %v987 = vpop.f32.mrb[0].mxu0
        %v988 = vadd.f32 0.0, %v987
        %v989 = vpop.f32.mrb[0].mxu0
        %v990 = vpop.f32.mrb[0].mxu0
        %v991 = vadd.f32 0.0, %v990
        %v992 = vpop.f32.mrb[0].mxu0
        %993 = vmatprep.mubr.bf16.mxu0 0
        %994 = vmatmul.mubr.bf16.gmra.mrb[0].mxu0 %v913
        %v995 = vpop.f32.mrb[0].mxu0
        %v996 = vadd.f32 0.0, %v995
        %v997 = vpop.f32.mrb[0].mxu0
        %v998 = vpop.f32.mrb[0].mxu0
        %v999 = vadd.f32 0.0, %v998
        %v1000 = vpop.f32.mrb[0].mxu0
        %1001 = vmatprep.mubr.bf16.mxu0 0
        %1002 = vmatmul.mubr.bf16.gmra.mrb[0].mxu0 %v916
        %v1003 = vpop.f32.mrb[0].mxu0
        %v1004 = vadd.f32 0.0, %v1003
        %v1005 = vpop.f32.mrb[0].mxu0
        %v1006 = vpop.f32.mrb[0].mxu0
        %v1007 = vadd.f32 0.0, %v1006
        %v1008 = vpop.f32.mrb[0].mxu0
        %1009 = vmatprep.mubr.bf16.mxu0 0
        %1010 = vmatmul.mubr.bf16.gmra.mrb[0].mxu0 %v919
        %v1011 = vpop.f32.mrb[0].mxu0
        %v1012 = vadd.f32 0.0, %v1011
        %v1013 = vpop.f32.mrb[0].mxu0
        %v1014 = vpop.f32.mrb[0].mxu0
        %v1015 = vadd.f32 0.0, %v1014
        %v1016 = vpop.f32.mrb[0].mxu0
        %1017 = vdwg.mxu0
        %1018 = vxpose.xlu0.c.b16.start [1/8] %v599, 128
        %1019 = vxpose.xlu0.c.b16.cont [2/8] 0, 128
        %1020 = vxpose.xlu0.c.b16.cont [3/8] 0, 128
        %1021 = vxpose.xlu0.c.b16.cont [4/8] 0, 128
        %1022 = vxpose.xlu0.c.b16.cont [5/8] 0, 128
        %1023 = vxpose.xlu0.c.b16.cont [6/8] 0, 128
        %1024 = vxpose.xlu0.c.b16.cont [7/8] 0, 128
        %1025 = vxpose.xlu0.c.b16.end [8/8] 0, 128
        %v1026 = vpop.trf.xlu0
        %v1027 = vpop.trf.xlu0
        %v1028 = vpop.trf.xlu0
        %v1029 = vpop.trf.xlu0
        %v1030 = vpop.trf.xlu0
        %v1031 = vpop.trf.xlu0
        %v1032 = vpop.trf.xlu0
        %v1033 = vpop.trf.xlu0
        %v1035 = vsel %vm622, %v1026, 0
        %v1038 = vsel %vm622, %v1027, 0
        %v1041 = vsel %vm622, %v1028, 0
        %v1044 = vsel %vm622, %v1029, 0
        %v1047 = vsel %vm622, %v1030, 0
        %v1050 = vsel %vm622, %v1031, 0
        %v1053 = vsel %vm622, %v1032, 0
        %v1056 = vsel %vm622, %v1033, 0
        %1058 = vmatprep.subr.bf16.mxu0 0
        %1059 = vmatpush1.bf16.msra.mxu0 %v599
        %1060 = vmatprep.subr.bf16.mxu0 0
        %1061 = vmatpush1.bf16.msra.mxu0 0
        %1062 = vmatprep.subr.bf16.mxu0 0
        %1063 = vmatpush1.bf16.msra.mxu0 0
        %1064 = vmatprep.subr.bf16.mxu0 0
        %1065 = vmatpush1.bf16.msra.mxu0 0
        %1066 = vmatprep.subr.bf16.mxu0 0
        %1067 = vmatpush1.bf16.msra.mxu0 0
        %1068 = vmatprep.subr.bf16.mxu0 0
        %1069 = vmatpush1.bf16.msra.mxu0 0
        %1070 = vmatprep.subr.bf16.mxu0 0
        %1071 = vmatpush1.bf16.msra.mxu0 0
        %1072 = vmatprep.subr.bf16.mxu0 0
        %1073 = vmatpush1.bf16.msra.mxu0 0
        %1074 = vmatprep.subr.bf16.mxu0 0
        %1075 = vmatpush1.bf16.msra.mxu0 0
        %1076 = vmatprep.subr.bf16.mxu0 0
        %1077 = vmatpush1.bf16.msra.mxu0 0
        %1078 = vmatprep.subr.bf16.mxu0 0
        %1079 = vmatpush1.bf16.msra.mxu0 0
        %1080 = vmatprep.subr.bf16.mxu0 0
        %1081 = vmatpush1.bf16.msra.mxu0 0
        %1082 = vmatprep.subr.bf16.mxu0 0
        %1083 = vmatpush1.bf16.msra.mxu0 0
        %1084 = vmatprep.subr.bf16.mxu0 0
        %1085 = vmatpush1.bf16.msra.mxu0 0
        %1086 = vmatprep.subr.bf16.mxu0 0
        %1087 = vmatpush1.bf16.msra.mxu0 0
        %1088 = vmatprep.subr.bf16.mxu0 0
        %1089 = vmatpush1.bf16.msra.mxu0 0
        %1090 = vmatprep.mubr.bf16.mxu0 0
        %1091 = vmatmul.mubr.bf16.gmra.mrb[0].mxu0 %v1035
        %v1092 = vpop.f32.mrb[0].mxu0
        %v1093 = vadd.f32 0.0, %v1092
        %v1094 = vpop.f32.mrb[0].mxu0
        %v1095 = vpop.f32.mrb[0].mxu0
        %v1096 = vadd.f32 0.0, %v1095
        %v1097 = vpop.f32.mrb[0].mxu0
        %1098 = vmatprep.mubr.bf16.mxu0 0
        %1099 = vmatmul.mubr.bf16.gmra.mrb[0].mxu0 %v1038
        %v1100 = vpop.f32.mrb[0].mxu0
        %v1101 = vadd.f32 0.0, %v1100
        %v1102 = vpop.f32.mrb[0].mxu0
        %v1103 = vpop.f32.mrb[0].mxu0
        %v1104 = vadd.f32 0.0, %v1103
        %v1105 = vpop.f32.mrb[0].mxu0
        %1106 = vmatprep.mubr.bf16.mxu0 0
        %1107 = vmatmul.mubr.bf16.gmra.mrb[0].mxu0 %v1041
        %v1108 = vpop.f32.mrb[0].mxu0
        %v1109 = vadd.f32 0.0, %v1108
        %v1110 = vpop.f32.mrb[0].mxu0
        %v1111 = vpop.f32.mrb[0].mxu0
        %v1112 = vadd.f32 0.0, %v1111
        %v1113 = vpop.f32.mrb[0].mxu0
        %1114 = vmatprep.mubr.bf16.mxu0 0
        %1115 = vmatmul.mubr.bf16.gmra.mrb[0].mxu0 %v1044
        %v1116 = vpop.f32.mrb[0].mxu0
        %v1117 = vadd.f32 0.0, %v1116
        %v1118 = vpop.f32.mrb[0].mxu0
        %v1119 = vpop.f32.mrb[0].mxu0
        %v1120 = vadd.f32 0.0, %v1119
        %v1121 = vpop.f32.mrb[0].mxu0
        %1122 = vmatprep.mubr.bf16.mxu0 0
        %1123 = vmatmul.mubr.bf16.gmra.mrb[0].mxu0 %v1047
        %v1124 = vpop.f32.mrb[0].mxu0
        %v1125 = vadd.f32 0.0, %v1124
        %v1126 = vpop.f32.mrb[0].mxu0
        %v1127 = vpop.f32.mrb[0].mxu0
        %v1128 = vadd.f32 0.0, %v1127
        %v1129 = vpop.f32.mrb[0].mxu0
        %1130 = vmatprep.mubr.bf16.mxu0 0
        %1131 = vmatmul.mubr.bf16.gmra.mrb[0].mxu0 %v1050
        %v1132 = vpop.f32.mrb[0].mxu0
        %v1133 = vadd.f32 0.0, %v1132
        %v1134 = vpop.f32.mrb[0].mxu0
        %v1135 = vpop.f32.mrb[0].mxu0
        %v1136 = vadd.f32 0.0, %v1135
        %v1137 = vpop.f32.mrb[0].mxu0
        %1138 = vmatprep.mubr.bf16.mxu0 0
        %1139 = vmatmul.mubr.bf16.gmra.mrb[0].mxu0 %v1053
        %v1140 = vpop.f32.mrb[0].mxu0
        %v1141 = vadd.f32 0.0, %v1140
        %v1142 = vpop.f32.mrb[0].mxu0
        %v1143 = vpop.f32.mrb[0].mxu0
        %v1144 = vadd.f32 0.0, %v1143
        %v1145 = vpop.f32.mrb[0].mxu0
        %1146 = vmatprep.mubr.bf16.mxu0 0
        %1147 = vmatmul.mubr.bf16.gmra.mrb[0].mxu0 %v1056
        %v1148 = vpop.f32.mrb[0].mxu0
        %v1149 = vadd.f32 0.0, %v1148
        %v1150 = vpop.f32.mrb[0].mxu0
        %v1151 = vpop.f32.mrb[0].mxu0
        %v1152 = vadd.f32 0.0, %v1151
        %v1153 = vpop.f32.mrb[0].mxu0
        %1154 = vdwg.mxu0
        %1155 = vxpose.xlu0.c.b16.start [1/8] %v600, 128
        %1156 = vxpose.xlu0.c.b16.cont [2/8] 0, 128
        %1157 = vxpose.xlu0.c.b16.cont [3/8] 0, 128
        %1158 = vxpose.xlu0.c.b16.cont [4/8] 0, 128
        %1159 = vxpose.xlu0.c.b16.cont [5/8] 0, 128
        %1160 = vxpose.xlu0.c.b16.cont [6/8] 0, 128
        %1161 = vxpose.xlu0.c.b16.cont [7/8] 0, 128
        %1162 = vxpose.xlu0.c.b16.end [8/8] 0, 128
        %v1163 = vpop.trf.xlu0
        %v1164 = vpop.trf.xlu0
        %v1165 = vpop.trf.xlu0
        %v1166 = vpop.trf.xlu0
        %v1167 = vpop.trf.xlu0
        %v1168 = vpop.trf.xlu0
        %v1169 = vpop.trf.xlu0
        %v1170 = vpop.trf.xlu0
        %v1172 = vsel %vm622, %v1163, 0
        %v1175 = vsel %vm622, %v1164, 0
        %v1178 = vsel %vm622, %v1165, 0
        %v1181 = vsel %vm622, %v1166, 0
        %v1184 = vsel %vm622, %v1167, 0
        %v1187 = vsel %vm622, %v1168, 0
        %v1190 = vsel %vm622, %v1169, 0
        %v1193 = vsel %vm622, %v1170, 0
        %1195 = vmatprep.subr.bf16.mxu0 0
        %1196 = vmatpush1.bf16.msra.mxu0 %v600
        %1197 = vmatprep.subr.bf16.mxu0 0
        %1198 = vmatpush1.bf16.msra.mxu0 0
        %1199 = vmatprep.subr.bf16.mxu0 0
        %1200 = vmatpush1.bf16.msra.mxu0 0
        %1201 = vmatprep.subr.bf16.mxu0 0
        %1202 = vmatpush1.bf16.msra.mxu0 0
        %1203 = vmatprep.subr.bf16.mxu0 0
        %1204 = vmatpush1.bf16.msra.mxu0 0
        %1205 = vmatprep.subr.bf16.mxu0 0
        %1206 = vmatpush1.bf16.msra.mxu0 0
        %1207 = vmatprep.subr.bf16.mxu0 0
        %1208 = vmatpush1.bf16.msra.mxu0 0
        %1209 = vmatprep.subr.bf16.mxu0 0
        %1210 = vmatpush1.bf16.msra.mxu0 0
        %1211 = vmatprep.subr.bf16.mxu0 0
        %1212 = vmatpush1.bf16.msra.mxu0 0
        %1213 = vmatprep.subr.bf16.mxu0 0
        %1214 = vmatpush1.bf16.msra.mxu0 0
        %1215 = vmatprep.subr.bf16.mxu0 0
        %1216 = vmatpush1.bf16.msra.mxu0 0
        %1217 = vmatprep.subr.bf16.mxu0 0
        %1218 = vmatpush1.bf16.msra.mxu0 0
        %1219 = vmatprep.subr.bf16.mxu0 0
        %1220 = vmatpush1.bf16.msra.mxu0 0
        %1221 = vmatprep.subr.bf16.mxu0 0
        %1222 = vmatpush1.bf16.msra.mxu0 0
        %1223 = vmatprep.subr.bf16.mxu0 0
        %1224 = vmatpush1.bf16.msra.mxu0 0
        %1225 = vmatprep.subr.bf16.mxu0 0
        %1226 = vmatpush1.bf16.msra.mxu0 0
        %1227 = vmatprep.mubr.bf16.mxu0 0
        %1228 = vmatmul.mubr.bf16.gmra.mrb[0].mxu0 %v1172
        %v1229 = vpop.f32.mrb[0].mxu0
        %v1230 = vadd.f32 0.0, %v1229
        %v1231 = vpop.f32.mrb[0].mxu0
        %v1232 = vpop.f32.mrb[0].mxu0
        %v1233 = vadd.f32 0.0, %v1232
        %v1234 = vpop.f32.mrb[0].mxu0
        %1235 = vmatprep.mubr.bf16.mxu0 0
        %1236 = vmatmul.mubr.bf16.gmra.mrb[0].mxu0 %v1175
        %v1237 = vpop.f32.mrb[0].mxu0
        %v1238 = vadd.f32 0.0, %v1237
        %v1239 = vpop.f32.mrb[0].mxu0
        %v1240 = vpop.f32.mrb[0].mxu0
        %v1241 = vadd.f32 0.0, %v1240
        %v1242 = vpop.f32.mrb[0].mxu0
        %1243 = vmatprep.mubr.bf16.mxu0 0
        %1244 = vmatmul.mubr.bf16.gmra.mrb[0].mxu0 %v1178
        %v1245 = vpop.f32.mrb[0].mxu0
        %v1246 = vadd.f32 0.0, %v1245
        %v1247 = vpop.f32.mrb[0].mxu0
        %v1248 = vpop.f32.mrb[0].mxu0
        %v1249 = vadd.f32 0.0, %v1248
        %v1250 = vpop.f32.mrb[0].mxu0
        %1251 = vmatprep.mubr.bf16.mxu0 0
        %1252 = vmatmul.mubr.bf16.gmra.mrb[0].mxu0 %v1181
        %v1253 = vpop.f32.mrb[0].mxu0
        %v1254 = vadd.f32 0.0, %v1253
        %v1255 = vpop.f32.mrb[0].mxu0
        %v1256 = vpop.f32.mrb[0].mxu0
        %v1257 = vadd.f32 0.0, %v1256
        %v1258 = vpop.f32.mrb[0].mxu0
        %1259 = vmatprep.mubr.bf16.mxu0 0
        %1260 = vmatmul.mubr.bf16.gmra.mrb[0].mxu0 %v1184
        %v1261 = vpop.f32.mrb[0].mxu0
        %v1262 = vadd.f32 0.0, %v1261
        %v1263 = vpop.f32.mrb[0].mxu0
        %v1264 = vpop.f32.mrb[0].mxu0
        %v1265 = vadd.f32 0.0, %v1264
        %v1266 = vpop.f32.mrb[0].mxu0
        %1267 = vmatprep.mubr.bf16.mxu0 0
        %1268 = vmatmul.mubr.bf16.gmra.mrb[0].mxu0 %v1187
        %v1269 = vpop.f32.mrb[0].mxu0
        %v1270 = vadd.f32 0.0, %v1269
        %v1271 = vpop.f32.mrb[0].mxu0
        %v1272 = vpop.f32.mrb[0].mxu0
        %v1273 = vadd.f32 0.0, %v1272
        %v1274 = vpop.f32.mrb[0].mxu0
        %1275 = vmatprep.mubr.bf16.mxu0 0
        %1276 = vmatmul.mubr.bf16.gmra.mrb[0].mxu0 %v1190
        %v1277 = vpop.f32.mrb[0].mxu0
        %v1278 = vadd.f32 0.0, %v1277
        %v1279 = vpop.f32.mrb[0].mxu0
        %v1280 = vpop.f32.mrb[0].mxu0
        %v1281 = vadd.f32 0.0, %v1280
        %v1282 = vpop.f32.mrb[0].mxu0
        %1283 = vmatprep.mubr.bf16.mxu0 0
        %1284 = vmatmul.mubr.bf16.gmra.mrb[0].mxu0 %v1193
        %v1285 = vpop.f32.mrb[0].mxu0
        %v1286 = vadd.f32 0.0, %v1285
        %v1287 = vpop.f32.mrb[0].mxu0
        %v1288 = vpop.f32.mrb[0].mxu0
        %v1289 = vadd.f32 0.0, %v1288
        %v1290 = vpop.f32.mrb[0].mxu0
        %1291 = vdwg.mxu0
        %1292 = vxpose.xlu0.c.b16.start [1/8] %v601, 128
        %1293 = vxpose.xlu0.c.b16.cont [2/8] 0, 128
        %1294 = vxpose.xlu0.c.b16.cont [3/8] 0, 128
        %1295 = vxpose.xlu0.c.b16.cont [4/8] 0, 128
        %1296 = vxpose.xlu0.c.b16.cont [5/8] 0, 128
        %1297 = vxpose.xlu0.c.b16.cont [6/8] 0, 128
        %1298 = vxpose.xlu0.c.b16.cont [7/8] 0, 128
        %1299 = vxpose.xlu0.c.b16.end [8/8] 0, 128
        %v1300 = vpop.trf.xlu0
        %v1301 = vpop.trf.xlu0
        %v1302 = vpop.trf.xlu0
        %v1303 = vpop.trf.xlu0
        %v1304 = vpop.trf.xlu0
        %v1305 = vpop.trf.xlu0
        %v1306 = vpop.trf.xlu0
        %v1307 = vpop.trf.xlu0
        %v1309 = vsel %vm622, %v1300, 0
        %v1312 = vsel %vm622, %v1301, 0
        %v1315 = vsel %vm622, %v1302, 0
        %v1318 = vsel %vm622, %v1303, 0
        %v1321 = vsel %vm622, %v1304, 0
        %v1324 = vsel %vm622, %v1305, 0
        %v1327 = vsel %vm622, %v1306, 0
        %v1330 = vsel %vm622, %v1307, 0
        %1332 = vmatprep.subr.bf16.mxu0 0
        %1333 = vmatpush1.bf16.msra.mxu0 %v601
        %1334 = vmatprep.subr.bf16.mxu0 0
        %1335 = vmatpush1.bf16.msra.mxu0 0
        %1336 = vmatprep.subr.bf16.mxu0 0
        %1337 = vmatpush1.bf16.msra.mxu0 0
        %1338 = vmatprep.subr.bf16.mxu0 0
        %1339 = vmatpush1.bf16.msra.mxu0 0
        %1340 = vmatprep.subr.bf16.mxu0 0
        %1341 = vmatpush1.bf16.msra.mxu0 0
        %1342 = vmatprep.subr.bf16.mxu0 0
        %1343 = vmatpush1.bf16.msra.mxu0 0
        %1344 = vmatprep.subr.bf16.mxu0 0
        %1345 = vmatpush1.bf16.msra.mxu0 0
        %1346 = vmatprep.subr.bf16.mxu0 0
        %1347 = vmatpush1.bf16.msra.mxu0 0
        %1348 = vmatprep.subr.bf16.mxu0 0
        %1349 = vmatpush1.bf16.msra.mxu0 0
        %1350 = vmatprep.subr.bf16.mxu0 0
        %1351 = vmatpush1.bf16.msra.mxu0 0
        %1352 = vmatprep.subr.bf16.mxu0 0
        %1353 = vmatpush1.bf16.msra.mxu0 0
        %1354 = vmatprep.subr.bf16.mxu0 0
        %1355 = vmatpush1.bf16.msra.mxu0 0
        %1356 = vmatprep.subr.bf16.mxu0 0
        %1357 = vmatpush1.bf16.msra.mxu0 0
        %1358 = vmatprep.subr.bf16.mxu0 0
        %1359 = vmatpush1.bf16.msra.mxu0 0
        %1360 = vmatprep.subr.bf16.mxu0 0
        %1361 = vmatpush1.bf16.msra.mxu0 0
        %1362 = vmatprep.subr.bf16.mxu0 0
        %1363 = vmatpush1.bf16.msra.mxu0 0
        %1364 = vmatprep.mubr.bf16.mxu0 0
        %1365 = vmatmul.mubr.bf16.gmra.mrb[0].mxu0 %v1309
        %v1366 = vpop.f32.mrb[0].mxu0
        %v1367 = vadd.f32 0.0, %v1366
        %v1368 = vpop.f32.mrb[0].mxu0
        %v1369 = vpop.f32.mrb[0].mxu0
        %v1370 = vadd.f32 0.0, %v1369
        %v1371 = vpop.f32.mrb[0].mxu0
        %1372 = vmatprep.mubr.bf16.mxu0 0
        %1373 = vmatmul.mubr.bf16.gmra.mrb[0].mxu0 %v1312
        %v1374 = vpop.f32.mrb[0].mxu0
        %v1375 = vadd.f32 0.0, %v1374
        %v1376 = vpop.f32.mrb[0].mxu0
        %v1377 = vpop.f32.mrb[0].mxu0
        %v1378 = vadd.f32 0.0, %v1377
        %v1379 = vpop.f32.mrb[0].mxu0
        %1380 = vmatprep.mubr.bf16.mxu0 0
        %1381 = vmatmul.mubr.bf16.gmra.mrb[0].mxu0 %v1315
        %v1382 = vpop.f32.mrb[0].mxu0
        %v1383 = vadd.f32 0.0, %v1382
        %v1384 = vpop.f32.mrb[0].mxu0
        %v1385 = vpop.f32.mrb[0].mxu0
        %v1386 = vadd.f32 0.0, %v1385
        %v1387 = vpop.f32.mrb[0].mxu0
        %1388 = vmatprep.mubr.bf16.mxu0 0
        %1389 = vmatmul.mubr.bf16.gmra.mrb[0].mxu0 %v1318
        %v1390 = vpop.f32.mrb[0].mxu0
        %v1391 = vadd.f32 0.0, %v1390
        %v1392 = vpop.f32.mrb[0].mxu0
        %v1393 = vpop.f32.mrb[0].mxu0
        %v1394 = vadd.f32 0.0, %v1393
        %v1395 = vpop.f32.mrb[0].mxu0
        %1396 = vmatprep.mubr.bf16.mxu0 0
        %1397 = vmatmul.mubr.bf16.gmra.mrb[0].mxu0 %v1321
        %v1398 = vpop.f32.mrb[0].mxu0
        %v1399 = vadd.f32 0.0, %v1398
        %v1400 = vpop.f32.mrb[0].mxu0
        %v1401 = vpop.f32.mrb[0].mxu0
        %v1402 = vadd.f32 0.0, %v1401
        %v1403 = vpop.f32.mrb[0].mxu0
        %1404 = vmatprep.mubr.bf16.mxu0 0
        %1405 = vmatmul.mubr.bf16.gmra.mrb[0].mxu0 %v1324
        %v1406 = vpop.f32.mrb[0].mxu0
        %v1407 = vadd.f32 0.0, %v1406
        %v1408 = vpop.f32.mrb[0].mxu0
        %v1409 = vpop.f32.mrb[0].mxu0
        %v1410 = vadd.f32 0.0, %v1409
        %v1411 = vpop.f32.mrb[0].mxu0
        %1412 = vmatprep.mubr.bf16.mxu0 0
        %1413 = vmatmul.mubr.bf16.gmra.mrb[0].mxu0 %v1327
        %v1414 = vpop.f32.mrb[0].mxu0
        %v1415 = vadd.f32 0.0, %v1414
        %v1416 = vpop.f32.mrb[0].mxu0
        %v1417 = vpop.f32.mrb[0].mxu0
        %v1418 = vadd.f32 0.0, %v1417
        %v1419 = vpop.f32.mrb[0].mxu0
        %1420 = vmatprep.mubr.bf16.mxu0 0
        %1421 = vmatmul.mubr.bf16.gmra.mrb[0].mxu0 %v1330
        %v1422 = vpop.f32.mrb[0].mxu0
        %v1423 = vadd.f32 0.0, %v1422
        %v1424 = vpop.f32.mrb[0].mxu0
        %v1425 = vpop.f32.mrb[0].mxu0
        %v1426 = vadd.f32 0.0, %v1425
        %v1427 = vpop.f32.mrb[0].mxu0
        %1428 = vdwg.mxu0
        %1429 = vxpose.xlu0.c.b16.start [1/8] %v602, 128
        %1430 = vxpose.xlu0.c.b16.cont [2/8] 0, 128
        %1431 = vxpose.xlu0.c.b16.cont [3/8] 0, 128
        %1432 = vxpose.xlu0.c.b16.cont [4/8] 0, 128
        %1433 = vxpose.xlu0.c.b16.cont [5/8] 0, 128
        %1434 = vxpose.xlu0.c.b16.cont [6/8] 0, 128
        %1435 = vxpose.xlu0.c.b16.cont [7/8] 0, 128
        %1436 = vxpose.xlu0.c.b16.end [8/8] 0, 128
        %v1437 = vpop.trf.xlu0
        %v1438 = vpop.trf.xlu0
        %v1439 = vpop.trf.xlu0
        %v1440 = vpop.trf.xlu0
        %v1441 = vpop.trf.xlu0
        %v1442 = vpop.trf.xlu0
        %v1443 = vpop.trf.xlu0
        %v1444 = vpop.trf.xlu0
        %v1446 = vsel %vm622, %v1437, 0
        %v1449 = vsel %vm622, %v1438, 0
        %v1452 = vsel %vm622, %v1439, 0
        %v1455 = vsel %vm622, %v1440, 0
        %v1458 = vsel %vm622, %v1441, 0
        %v1461 = vsel %vm622, %v1442, 0
        %v1464 = vsel %vm622, %v1443, 0
        %v1467 = vsel %vm622, %v1444, 0
        %1469 = vmatprep.subr.bf16.mxu0 0
        %1470 = vmatpush1.bf16.msra.mxu0 %v602
        %1471 = vmatprep.subr.bf16.mxu0 0
        %1472 = vmatpush1.bf16.msra.mxu0 0
        %1473 = vmatprep.subr.bf16.mxu0 0
        %1474 = vmatpush1.bf16.msra.mxu0 0
        %1475 = vmatprep.subr.bf16.mxu0 0
        %1476 = vmatpush1.bf16.msra.mxu0 0
        %1477 = vmatprep.subr.bf16.mxu0 0
        %1478 = vmatpush1.bf16.msra.mxu0 0
        %1479 = vmatprep.subr.bf16.mxu0 0
        %1480 = vmatpush1.bf16.msra.mxu0 0
        %1481 = vmatprep.subr.bf16.mxu0 0
        %1482 = vmatpush1.bf16.msra.mxu0 0
        %1483 = vmatprep.subr.bf16.mxu0 0
        %1484 = vmatpush1.bf16.msra.mxu0 0
        %1485 = vmatprep.subr.bf16.mxu0 0
        %1486 = vmatpush1.bf16.msra.mxu0 0
        %1487 = vmatprep.subr.bf16.mxu0 0
        %1488 = vmatpush1.bf16.msra.mxu0 0
        %1489 = vmatprep.subr.bf16.mxu0 0
        %1490 = vmatpush1.bf16.msra.mxu0 0
        %1491 = vmatprep.subr.bf16.mxu0 0
        %1492 = vmatpush1.bf16.msra.mxu0 0
        %1493 = vmatprep.subr.bf16.mxu0 0
        %1494 = vmatpush1.bf16.msra.mxu0 0
        %1495 = vmatprep.subr.bf16.mxu0 0
        %1496 = vmatpush1.bf16.msra.mxu0 0
        %1497 = vmatprep.subr.bf16.mxu0 0
        %1498 = vmatpush1.bf16.msra.mxu0 0
        %1499 = vmatprep.subr.bf16.mxu0 0
        %1500 = vmatpush1.bf16.msra.mxu0 0
        %1501 = vmatprep.mubr.bf16.mxu0 0
        %1502 = vmatmul.mubr.bf16.gmra.mrb[0].mxu0 %v1446
        %v1503 = vpop.f32.mrb[0].mxu0
        %v1504 = vadd.f32 0.0, %v1503
        %v1505 = vpop.f32.mrb[0].mxu0
        %v1506 = vpop.f32.mrb[0].mxu0
        %v1507 = vadd.f32 0.0, %v1506
        %v1508 = vpop.f32.mrb[0].mxu0
        %1509 = vmatprep.mubr.bf16.mxu0 0
        %1510 = vmatmul.mubr.bf16.gmra.mrb[0].mxu0 %v1449
        %v1511 = vpop.f32.mrb[0].mxu0
        %v1512 = vadd.f32 0.0, %v1511
        %v1513 = vpop.f32.mrb[0].mxu0
        %v1514 = vpop.f32.mrb[0].mxu0
        %v1515 = vadd.f32 0.0, %v1514
        %v1516 = vpop.f32.mrb[0].mxu0
        %1517 = vmatprep.mubr.bf16.mxu0 0
        %1518 = vmatmul.mubr.bf16.gmra.mrb[0].mxu0 %v1452
        %v1519 = vpop.f32.mrb[0].mxu0
        %v1520 = vadd.f32 0.0, %v1519
        %v1521 = vpop.f32.mrb[0].mxu0
        %v1522 = vpop.f32.mrb[0].mxu0
        %v1523 = vadd.f32 0.0, %v1522
        %v1524 = vpop.f32.mrb[0].mxu0
        %1525 = vmatprep.mubr.bf16.mxu0 0
        %1526 = vmatmul.mubr.bf16.gmra.mrb[0].mxu0 %v1455
        %v1527 = vpop.f32.mrb[0].mxu0
        %v1528 = vadd.f32 0.0, %v1527
        %v1529 = vpop.f32.mrb[0].mxu0
        %v1530 = vpop.f32.mrb[0].mxu0
        %v1531 = vadd.f32 0.0, %v1530
        %v1532 = vpop.f32.mrb[0].mxu0
        %1533 = vmatprep.mubr.bf16.mxu0 0
        %1534 = vmatmul.mubr.bf16.gmra.mrb[0].mxu0 %v1458
        %v1535 = vpop.f32.mrb[0].mxu0
        %v1536 = vadd.f32 0.0, %v1535
        %v1537 = vpop.f32.mrb[0].mxu0
        %v1538 = vpop.f32.mrb[0].mxu0
        %v1539 = vadd.f32 0.0, %v1538
        %v1540 = vpop.f32.mrb[0].mxu0
        %1541 = vmatprep.mubr.bf16.mxu0 0
        %1542 = vmatmul.mubr.bf16.gmra.mrb[0].mxu0 %v1461
        %v1543 = vpop.f32.mrb[0].mxu0
        %v1544 = vadd.f32 0.0, %v1543
        %v1545 = vpop.f32.mrb[0].mxu0
        %v1546 = vpop.f32.mrb[0].mxu0
        %v1547 = vadd.f32 0.0, %v1546
        %v1548 = vpop.f32.mrb[0].mxu0
        %1549 = vmatprep.mubr.bf16.mxu0 0
        %1550 = vmatmul.mubr.bf16.gmra.mrb[0].mxu0 %v1464
        %v1551 = vpop.f32.mrb[0].mxu0
        %v1552 = vadd.f32 0.0, %v1551
        %v1553 = vpop.f32.mrb[0].mxu0
        %v1554 = vpop.f32.mrb[0].mxu0
        %v1555 = vadd.f32 0.0, %v1554
        %v1556 = vpop.f32.mrb[0].mxu0
        %1557 = vmatprep.mubr.bf16.mxu0 0
        %1558 = vmatmul.mubr.bf16.gmra.mrb[0].mxu0 %v1467
        %v1559 = vpop.f32.mrb[0].mxu0
        %v1560 = vadd.f32 0.0, %v1559
        %v1561 = vpop.f32.mrb[0].mxu0
        %v1562 = vpop.f32.mrb[0].mxu0
        %v1563 = vadd.f32 0.0, %v1562
        %v1564 = vpop.f32.mrb[0].mxu0
        %1565 = vdwg.mxu0
        %1566 = vxpose.xlu0.c.b16.start [1/8] %v603, 128
        %1567 = vxpose.xlu0.c.b16.cont [2/8] 0, 128
        %1568 = vxpose.xlu0.c.b16.cont [3/8] 0, 128
        %1569 = vxpose.xlu0.c.b16.cont [4/8] 0, 128
        %1570 = vxpose.xlu0.c.b16.cont [5/8] 0, 128
        %1571 = vxpose.xlu0.c.b16.cont [6/8] 0, 128
        %1572 = vxpose.xlu0.c.b16.cont [7/8] 0, 128
        %1573 = vxpose.xlu0.c.b16.end [8/8] 0, 128
        %v1574 = vpop.trf.xlu0
        %v1575 = vpop.trf.xlu0
        %v1576 = vpop.trf.xlu0
        %v1577 = vpop.trf.xlu0
        %v1578 = vpop.trf.xlu0
        %v1579 = vpop.trf.xlu0
        %v1580 = vpop.trf.xlu0
        %v1581 = vpop.trf.xlu0
        %v1583 = vsel %vm622, %v1574, 0
        %v1586 = vsel %vm622, %v1575, 0
        %v1589 = vsel %vm622, %v1576, 0
        %v1592 = vsel %vm622, %v1577, 0
        %v1595 = vsel %vm622, %v1578, 0
        %v1598 = vsel %vm622, %v1579, 0
        %v1601 = vsel %vm622, %v1580, 0
        %v1604 = vsel %vm622, %v1581, 0
        %1606 = vmatprep.subr.bf16.mxu0 0
        %1607 = vmatpush1.bf16.msra.mxu0 %v603
        %1608 = vmatprep.subr.bf16.mxu0 0
        %1609 = vmatpush1.bf16.msra.mxu0 0
        %1610 = vmatprep.subr.bf16.mxu0 0
        %1611 = vmatpush1.bf16.msra.mxu0 0
        %1612 = vmatprep.subr.bf16.mxu0 0
        %1613 = vmatpush1.bf16.msra.mxu0 0
        %1614 = vmatprep.subr.bf16.mxu0 0
        %1615 = vmatpush1.bf16.msra.mxu0 0
        %1616 = vmatprep.subr.bf16.mxu0 0
        %1617 = vmatpush1.bf16.msra.mxu0 0
        %1618 = vmatprep.subr.bf16.mxu0 0
        %1619 = vmatpush1.bf16.msra.mxu0 0
        %1620 = vmatprep.subr.bf16.mxu0 0
        %1621 = vmatpush1.bf16.msra.mxu0 0
        %1622 = vmatprep.subr.bf16.mxu0 0
        %1623 = vmatpush1.bf16.msra.mxu0 0
        %1624 = vmatprep.subr.bf16.mxu0 0
        %1625 = vmatpush1.bf16.msra.mxu0 0
        %1626 = vmatprep.subr.bf16.mxu0 0
        %1627 = vmatpush1.bf16.msra.mxu0 0
        %1628 = vmatprep.subr.bf16.mxu0 0
        %1629 = vmatpush1.bf16.msra.mxu0 0
        %1630 = vmatprep.subr.bf16.mxu0 0
        %1631 = vmatpush1.bf16.msra.mxu0 0
        %1632 = vmatprep.subr.bf16.mxu0 0
        %1633 = vmatpush1.bf16.msra.mxu0 0
        %1634 = vmatprep.subr.bf16.mxu0 0
        %1635 = vmatpush1.bf16.msra.mxu0 0
        %1636 = vmatprep.subr.bf16.mxu0 0
        %1637 = vmatpush1.bf16.msra.mxu0 0
        %1638 = vmatprep.mubr.bf16.mxu0 0
        %1639 = vmatmul.mubr.bf16.gmra.mrb[0].mxu0 %v1583
        %v1640 = vpop.f32.mrb[0].mxu0
        %v1641 = vadd.f32 0.0, %v1640
        %v1642 = vpop.f32.mrb[0].mxu0
        %v1643 = vpop.f32.mrb[0].mxu0
        %v1644 = vadd.f32 0.0, %v1643
        %v1645 = vpop.f32.mrb[0].mxu0
        %1646 = vmatprep.mubr.bf16.mxu0 0
        %1647 = vmatmul.mubr.bf16.gmra.mrb[0].mxu0 %v1586
        %v1648 = vpop.f32.mrb[0].mxu0
        %v1649 = vadd.f32 0.0, %v1648
        %v1650 = vpop.f32.mrb[0].mxu0
        %v1651 = vpop.f32.mrb[0].mxu0
        %v1652 = vadd.f32 0.0, %v1651
        %v1653 = vpop.f32.mrb[0].mxu0
        %1654 = vmatprep.mubr.bf16.mxu0 0
        %1655 = vmatmul.mubr.bf16.gmra.mrb[0].mxu0 %v1589
        %v1656 = vpop.f32.mrb[0].mxu0
        %v1657 = vadd.f32 0.0, %v1656
        %v1658 = vpop.f32.mrb[0].mxu0
        %v1659 = vpop.f32.mrb[0].mxu0
        %v1660 = vadd.f32 0.0, %v1659
        %v1661 = vpop.f32.mrb[0].mxu0
        %1662 = vmatprep.mubr.bf16.mxu0 0
        %1663 = vmatmul.mubr.bf16.gmra.mrb[0].mxu0 %v1592
        %v1664 = vpop.f32.mrb[0].mxu0
        %v1665 = vadd.f32 0.0, %v1664
        %v1666 = vpop.f32.mrb[0].mxu0
        %v1667 = vpop.f32.mrb[0].mxu0
        %v1668 = vadd.f32 0.0, %v1667
        %v1669 = vpop.f32.mrb[0].mxu0
        %1670 = vmatprep.mubr.bf16.mxu0 0
        %1671 = vmatmul.mubr.bf16.gmra.mrb[0].mxu0 %v1595
        %v1672 = vpop.f32.mrb[0].mxu0
        %v1673 = vadd.f32 0.0, %v1672
        %v1674 = vpop.f32.mrb[0].mxu0
        %v1675 = vpop.f32.mrb[0].mxu0
        %v1676 = vadd.f32 0.0, %v1675
        %v1677 = vpop.f32.mrb[0].mxu0
        %1678 = vmatprep.mubr.bf16.mxu0 0
        %1679 = vmatmul.mubr.bf16.gmra.mrb[0].mxu0 %v1598
        %v1680 = vpop.f32.mrb[0].mxu0
        %v1681 = vadd.f32 0.0, %v1680
        %v1682 = vpop.f32.mrb[0].mxu0
        %v1683 = vpop.f32.mrb[0].mxu0
        %v1684 = vadd.f32 0.0, %v1683
        %v1685 = vpop.f32.mrb[0].mxu0
        %1686 = vmatprep.mubr.bf16.mxu0 0
        %1687 = vmatmul.mubr.bf16.gmra.mrb[0].mxu0 %v1601
        %v1688 = vpop.f32.mrb[0].mxu0
        %v1689 = vadd.f32 0.0, %v1688
        %v1690 = vpop.f32.mrb[0].mxu0
        %v1691 = vpop.f32.mrb[0].mxu0
        %v1692 = vadd.f32 0.0, %v1691
        %v1693 = vpop.f32.mrb[0].mxu0
        %1694 = vmatprep.mubr.bf16.mxu0 0
        %1695 = vmatmul.mubr.bf16.gmra.mrb[0].mxu0 %v1604
        %v1696 = vpop.f32.mrb[0].mxu0
        %v1697 = vadd.f32 0.0, %v1696
        %v1698 = vpop.f32.mrb[0].mxu0
        %v1699 = vpop.f32.mrb[0].mxu0
        %v1700 = vadd.f32 0.0, %v1699
        %v1701 = vpop.f32.mrb[0].mxu0
        %1702 = vdwg.mxu0
        %1703 = vxpose.xlu0.c.b16.start [1/8] %v604, 128
        %1704 = vxpose.xlu0.c.b16.cont [2/8] 0, 128
        %1705 = vxpose.xlu0.c.b16.cont [3/8] 0, 128
        %1706 = vxpose.xlu0.c.b16.cont [4/8] 0, 128
        %1707 = vxpose.xlu0.c.b16.cont [5/8] 0, 128
        %1708 = vxpose.xlu0.c.b16.cont [6/8] 0, 128
        %1709 = vxpose.xlu0.c.b16.cont [7/8] 0, 128
        %1710 = vxpose.xlu0.c.b16.end [8/8] 0, 128
        %v1711 = vpop.trf.xlu0
        %v1712 = vpop.trf.xlu0
        %v1713 = vpop.trf.xlu0
        %v1714 = vpop.trf.xlu0
        %v1715 = vpop.trf.xlu0
        %v1716 = vpop.trf.xlu0
        %v1717 = vpop.trf.xlu0
        %v1718 = vpop.trf.xlu0
        %v1720 = vsel %vm622, %v1711, 0
        %v1723 = vsel %vm622, %v1712, 0
        %v1726 = vsel %vm622, %v1713, 0
        %v1729 = vsel %vm622, %v1714, 0
        %v1732 = vsel %vm622, %v1715, 0
        %v1735 = vsel %vm622, %v1716, 0
        %v1738 = vsel %vm622, %v1717, 0
        %v1741 = vsel %vm622, %v1718, 0
        %1743 = vmatprep.subr.bf16.mxu0 0
        %1744 = vmatpush1.bf16.msra.mxu0 %v604
        %1745 = vmatprep.subr.bf16.mxu0 0
        %1746 = vmatpush1.bf16.msra.mxu0 0
        %1747 = vmatprep.subr.bf16.mxu0 0
        %1748 = vmatpush1.bf16.msra.mxu0 0
        %1749 = vmatprep.subr.bf16.mxu0 0
        %1750 = vmatpush1.bf16.msra.mxu0 0
        %1751 = vmatprep.subr.bf16.mxu0 0
        %1752 = vmatpush1.bf16.msra.mxu0 0
        %1753 = vmatprep.subr.bf16.mxu0 0
        %1754 = vmatpush1.bf16.msra.mxu0 0
        %1755 = vmatprep.subr.bf16.mxu0 0
        %1756 = vmatpush1.bf16.msra.mxu0 0
        %1757 = vmatprep.subr.bf16.mxu0 0
        %1758 = vmatpush1.bf16.msra.mxu0 0
        %1759 = vmatprep.subr.bf16.mxu0 0
        %1760 = vmatpush1.bf16.msra.mxu0 0
        %1761 = vmatprep.subr.bf16.mxu0 0
        %1762 = vmatpush1.bf16.msra.mxu0 0
        %1763 = vmatprep.subr.bf16.mxu0 0
        %1764 = vmatpush1.bf16.msra.mxu0 0
        %1765 = vmatprep.subr.bf16.mxu0 0
        %1766 = vmatpush1.bf16.msra.mxu0 0
        %1767 = vmatprep.subr.bf16.mxu0 0
        %1768 = vmatpush1.bf16.msra.mxu0 0
        %1769 = vmatprep.subr.bf16.mxu0 0
        %1770 = vmatpush1.bf16.msra.mxu0 0
        %1771 = vmatprep.subr.bf16.mxu0 0
        %1772 = vmatpush1.bf16.msra.mxu0 0
        %1773 = vmatprep.subr.bf16.mxu0 0
        %1774 = vmatpush1.bf16.msra.mxu0 0
        %1775 = vmatprep.mubr.bf16.mxu0 0
        %1776 = vmatmul.mubr.bf16.gmra.mrb[0].mxu0 %v1720
        %v1777 = vpop.f32.mrb[0].mxu0
        %v1778 = vadd.f32 0.0, %v1777
        %v1779 = vpop.f32.mrb[0].mxu0
        %v1780 = vpop.f32.mrb[0].mxu0
        %v1781 = vadd.f32 0.0, %v1780
        %v1782 = vpop.f32.mrb[0].mxu0
        %1783 = vmatprep.mubr.bf16.mxu0 0
        %1784 = vmatmul.mubr.bf16.gmra.mrb[0].mxu0 %v1723
        %v1785 = vpop.f32.mrb[0].mxu0
        %v1786 = vadd.f32 0.0, %v1785
        %v1787 = vpop.f32.mrb[0].mxu0
        %v1788 = vpop.f32.mrb[0].mxu0
        %v1789 = vadd.f32 0.0, %v1788
        %v1790 = vpop.f32.mrb[0].mxu0
        %1791 = vmatprep.mubr.bf16.mxu0 0
        %1792 = vmatmul.mubr.bf16.gmra.mrb[0].mxu0 %v1726
        %v1793 = vpop.f32.mrb[0].mxu0
        %v1794 = vadd.f32 0.0, %v1793
        %v1795 = vpop.f32.mrb[0].mxu0
        %v1796 = vpop.f32.mrb[0].mxu0
        %v1797 = vadd.f32 0.0, %v1796
        %v1798 = vpop.f32.mrb[0].mxu0
        %1799 = vmatprep.mubr.bf16.mxu0 0
        %1800 = vmatmul.mubr.bf16.gmra.mrb[0].mxu0 %v1729
        %v1801 = vpop.f32.mrb[0].mxu0
        %v1802 = vadd.f32 0.0, %v1801
        %v1803 = vpop.f32.mrb[0].mxu0
        %v1804 = vpop.f32.mrb[0].mxu0
        %v1805 = vadd.f32 0.0, %v1804
        %v1806 = vpop.f32.mrb[0].mxu0
        %1807 = vmatprep.mubr.bf16.mxu0 0
        %1808 = vmatmul.mubr.bf16.gmra.mrb[0].mxu0 %v1732
        %v1809 = vpop.f32.mrb[0].mxu0
        %v1810 = vadd.f32 0.0, %v1809
        %v1811 = vpop.f32.mrb[0].mxu0
        %v1812 = vpop.f32.mrb[0].mxu0
        %v1813 = vadd.f32 0.0, %v1812
        %v1814 = vpop.f32.mrb[0].mxu0
        %1815 = vmatprep.mubr.bf16.mxu0 0
        %1816 = vmatmul.mubr.bf16.gmra.mrb[0].mxu0 %v1735
        %v1817 = vpop.f32.mrb[0].mxu0
        %v1818 = vadd.f32 0.0, %v1817
        %v1819 = vpop.f32.mrb[0].mxu0
        %v1820 = vpop.f32.mrb[0].mxu0
        %v1821 = vadd.f32 0.0, %v1820
        %v1822 = vpop.f32.mrb[0].mxu0
        %1823 = vmatprep.mubr.bf16.mxu0 0
        %1824 = vmatmul.mubr.bf16.gmra.mrb[0].mxu0 %v1738
        %v1825 = vpop.f32.mrb[0].mxu0
        %v1826 = vadd.f32 0.0, %v1825
        %v1827 = vpop.f32.mrb[0].mxu0
        %v1828 = vpop.f32.mrb[0].mxu0
        %v1829 = vadd.f32 0.0, %v1828
        %v1830 = vpop.f32.mrb[0].mxu0
        %1831 = vmatprep.mubr.bf16.mxu0 0
        %1832 = vmatmul.mubr.bf16.gmra.mrb[0].mxu0 %v1741
        %v1833 = vpop.f32.mrb[0].mxu0
        %v1834 = vadd.f32 0.0, %v1833
        %v1835 = vpop.f32.mrb[0].mxu0
        %v1836 = vpop.f32.mrb[0].mxu0
        %v1837 = vadd.f32 0.0, %v1836
        %v1838 = vpop.f32.mrb[0].mxu0
        %1839 = vdwg.mxu0
        %1840 = vxpose.xlu0.c.b16.start [1/8] %v605, 128
        %1841 = vxpose.xlu0.c.b16.cont [2/8] 0, 128
        %1842 = vxpose.xlu0.c.b16.cont [3/8] 0, 128
        %1843 = vxpose.xlu0.c.b16.cont [4/8] 0, 128
        %1844 = vxpose.xlu0.c.b16.cont [5/8] 0, 128
        %1845 = vxpose.xlu0.c.b16.cont [6/8] 0, 128
        %1846 = vxpose.xlu0.c.b16.cont [7/8] 0, 128
        %1847 = vxpose.xlu0.c.b16.end [8/8] 0, 128
        %v1848 = vpop.trf.xlu0
        %v1849 = vpop.trf.xlu0
        %v1850 = vpop.trf.xlu0
        %v1851 = vpop.trf.xlu0
        %v1852 = vpop.trf.xlu0
        %v1853 = vpop.trf.xlu0
        %v1854 = vpop.trf.xlu0
        %v1855 = vpop.trf.xlu0
        %v1857 = vsel %vm622, %v1848, 0
        %v1860 = vsel %vm622, %v1849, 0
        %v1863 = vsel %vm622, %v1850, 0
        %v1866 = vsel %vm622, %v1851, 0
        %v1869 = vsel %vm622, %v1852, 0
        %v1872 = vsel %vm622, %v1853, 0
        %v1875 = vsel %vm622, %v1854, 0
        %v1878 = vsel %vm622, %v1855, 0
        %1880 = vmatprep.subr.bf16.mxu0 0
        %1881 = vmatpush1.bf16.msra.mxu0 %v605
        %1882 = vmatprep.subr.bf16.mxu0 0
        %1883 = vmatpush1.bf16.msra.mxu0 0
        %1884 = vmatprep.subr.bf16.mxu0 0
        %1885 = vmatpush1.bf16.msra.mxu0 0
        %1886 = vmatprep.subr.bf16.mxu0 0
        %1887 = vmatpush1.bf16.msra.mxu0 0
        %1888 = vmatprep.subr.bf16.mxu0 0
        %1889 = vmatpush1.bf16.msra.mxu0 0
        %1890 = vmatprep.subr.bf16.mxu0 0
        %1891 = vmatpush1.bf16.msra.mxu0 0
        %1892 = vmatprep.subr.bf16.mxu0 0
        %1893 = vmatpush1.bf16.msra.mxu0 0
        %1894 = vmatprep.subr.bf16.mxu0 0
        %1895 = vmatpush1.bf16.msra.mxu0 0
        %1896 = vmatprep.subr.bf16.mxu0 0
        %1897 = vmatpush1.bf16.msra.mxu0 0
        %1898 = vmatprep.subr.bf16.mxu0 0
        %1899 = vmatpush1.bf16.msra.mxu0 0
        %1900 = vmatprep.subr.bf16.mxu0 0
        %1901 = vmatpush1.bf16.msra.mxu0 0
        %1902 = vmatprep.subr.bf16.mxu0 0
        %1903 = vmatpush1.bf16.msra.mxu0 0
        %1904 = vmatprep.subr.bf16.mxu0 0
        %1905 = vmatpush1.bf16.msra.mxu0 0
        %1906 = vmatprep.subr.bf16.mxu0 0
        %1907 = vmatpush1.bf16.msra.mxu0 0
        %1908 = vmatprep.subr.bf16.mxu0 0
        %1909 = vmatpush1.bf16.msra.mxu0 0
        %1910 = vmatprep.subr.bf16.mxu0 0
        %1911 = vmatpush1.bf16.msra.mxu0 0
        %1912 = vmatprep.mubr.bf16.mxu0 0
        %1913 = vmatmul.mubr.bf16.gmra.mrb[0].mxu0 %v1857
        %v1914 = vpop.f32.mrb[0].mxu0
        %v1915 = vadd.f32 0.0, %v1914
        %v1916 = vpop.f32.mrb[0].mxu0
        %v1917 = vpop.f32.mrb[0].mxu0
        %v1918 = vadd.f32 0.0, %v1917
        %v1919 = vpop.f32.mrb[0].mxu0
        %1920 = vmatprep.mubr.bf16.mxu0 0
        %1921 = vmatmul.mubr.bf16.gmra.mrb[0].mxu0 %v1860
        %v1922 = vpop.f32.mrb[0].mxu0
        %v1923 = vadd.f32 0.0, %v1922
        %v1924 = vpop.f32.mrb[0].mxu0
        %v1925 = vpop.f32.mrb[0].mxu0
        %v1926 = vadd.f32 0.0, %v1925
        %v1927 = vpop.f32.mrb[0].mxu0
        %1928 = vmatprep.mubr.bf16.mxu0 0
        %1929 = vmatmul.mubr.bf16.gmra.mrb[0].mxu0 %v1863
        %v1930 = vpop.f32.mrb[0].mxu0
        %v1931 = vadd.f32 0.0, %v1930
        %v1932 = vpop.f32.mrb[0].mxu0
        %v1933 = vpop.f32.mrb[0].mxu0
        %v1934 = vadd.f32 0.0, %v1933
        %v1935 = vpop.f32.mrb[0].mxu0
        %1936 = vmatprep.mubr.bf16.mxu0 0
        %1937 = vmatmul.mubr.bf16.gmra.mrb[0].mxu0 %v1866
        %v1938 = vpop.f32.mrb[0].mxu0
        %v1939 = vadd.f32 0.0, %v1938
        %v1940 = vpop.f32.mrb[0].mxu0
        %v1941 = vpop.f32.mrb[0].mxu0
        %v1942 = vadd.f32 0.0, %v1941
        %v1943 = vpop.f32.mrb[0].mxu0
        %1944 = vmatprep.mubr.bf16.mxu0 0
        %1945 = vmatmul.mubr.bf16.gmra.mrb[0].mxu0 %v1869
        %v1946 = vpop.f32.mrb[0].mxu0
        %v1947 = vadd.f32 0.0, %v1946
        %v1948 = vpop.f32.mrb[0].mxu0
        %v1949 = vpop.f32.mrb[0].mxu0
        %v1950 = vadd.f32 0.0, %v1949
        %v1951 = vpop.f32.mrb[0].mxu0
        %1952 = vmatprep.mubr.bf16.mxu0 0
        %1953 = vmatmul.mubr.bf16.gmra.mrb[0].mxu0 %v1872
        %v1954 = vpop.f32.mrb[0].mxu0
        %v1955 = vadd.f32 0.0, %v1954
        %v1956 = vpop.f32.mrb[0].mxu0
        %v1957 = vpop.f32.mrb[0].mxu0
        %v1958 = vadd.f32 0.0, %v1957
        %v1959 = vpop.f32.mrb[0].mxu0
        %1960 = vmatprep.mubr.bf16.mxu0 0
        %1961 = vmatmul.mubr.bf16.gmra.mrb[0].mxu0 %v1875
        %v1962 = vpop.f32.mrb[0].mxu0
        %v1963 = vadd.f32 0.0, %v1962
        %v1964 = vpop.f32.mrb[0].mxu0
        %v1965 = vpop.f32.mrb[0].mxu0
        %v1966 = vadd.f32 0.0, %v1965
        %v1967 = vpop.f32.mrb[0].mxu0
        %1968 = vmatprep.mubr.bf16.mxu0 0
        %1969 = vmatmul.mubr.bf16.gmra.mrb[0].mxu0 %v1878
        %v1970 = vpop.f32.mrb[0].mxu0
        %v1971 = vadd.f32 0.0, %v1970
        %v1972 = vpop.f32.mrb[0].mxu0
        %v1973 = vpop.f32.mrb[0].mxu0
        %v1974 = vadd.f32 0.0, %v1973
        %v1975 = vpop.f32.mrb[0].mxu0
        %1976 = vdwg.mxu0
        %v1977 = vmax.f32 %v682, -1.0
        %v1978 = vmax.f32 %v685, -1.0
        %v1979 = vmax.f32 %v690, -1.0
        %v1980 = vmax.f32 %v693, -1.0
        %v1981 = vmax.f32 %v698, -1.0
        %v1982 = vmax.f32 %v701, -1.0
        %v1983 = vmax.f32 %v706, -1.0
        %v1984 = vmax.f32 %v709, -1.0
        %v1985 = vmax.f32 %v714, -1.0
        %v1986 = vmax.f32 %v717, -1.0
        %v1987 = vmax.f32 %v722, -1.0
        %v1988 = vmax.f32 %v725, -1.0
        %v1989 = vmax.f32 %v730, -1.0
        %v1990 = vmax.f32 %v733, -1.0
        %v1991 = vmax.f32 %v738, -1.0
        %v1992 = vmax.f32 %v741, -1.0
        %v1993 = vmax.f32 %v819, -1.0
        %v1994 = vmax.f32 %v822, -1.0
        %v1995 = vmax.f32 %v827, -1.0
        %v1996 = vmax.f32 %v830, -1.0
        %v1997 = vmax.f32 %v835, -1.0
        %v1998 = vmax.f32 %v838, -1.0
        %v1999 = vmax.f32 %v843, -1.0
        %v2000 = vmax.f32 %v846, -1.0
        %v2001 = vmax.f32 %v851, -1.0
        %v2002 = vmax.f32 %v854, -1.0
        %v2003 = vmax.f32 %v859, -1.0
        %v2004 = vmax.f32 %v862, -1.0
        %v2005 = vmax.f32 %v867, -1.0
        %v2006 = vmax.f32 %v870, -1.0
        %v2007 = vmax.f32 %v875, -1.0
        %v2008 = vmax.f32 %v878, -1.0
        %v2009 = vmax.f32 %v956, -1.0
        %v2010 = vmax.f32 %v959, -1.0
        %v2011 = vmax.f32 %v964, -1.0
        %v2012 = vmax.f32 %v967, -1.0
        %v2013 = vmax.f32 %v972, -1.0
        %v2014 = vmax.f32 %v975, -1.0
        %v2015 = vmax.f32 %v980, -1.0
        %v2016 = vmax.f32 %v983, -1.0
        %v2017 = vmax.f32 %v988, -1.0
        %v2018 = vmax.f32 %v991, -1.0
        %v2019 = vmax.f32 %v996, -1.0
        %v2020 = vmax.f32 %v999, -1.0
        %v2021 = vmax.f32 %v1004, -1.0
        %v2022 = vmax.f32 %v1007, -1.0
        %v2023 = vmax.f32 %v1012, -1.0
        %v2024 = vmax.f32 %v1015, -1.0
        %v2025 = vmax.f32 %v1093, -1.0
        %v2026 = vmax.f32 %v1096, -1.0
        %v2027 = vmax.f32 %v1101, -1.0
        %v2028 = vmax.f32 %v1104, -1.0
        %v2029 = vmax.f32 %v1109, -1.0
        %v2030 = vmax.f32 %v1112, -1.0
        %v2031 = vmax.f32 %v1117, -1.0
        %v2032 = vmax.f32 %v1120, -1.0
        %v2033 = vmax.f32 %v1125, -1.0
        %v2034 = vmax.f32 %v1128, -1.0
        %v2035 = vmax.f32 %v1133, -1.0
        %v2036 = vmax.f32 %v1136, -1.0
        %v2037 = vmax.f32 %v1141, -1.0
        %v2038 = vmax.f32 %v1144, -1.0
        %v2039 = vmax.f32 %v1149, -1.0
        %v2040 = vmax.f32 %v1152, -1.0
        %v2041 = vmax.f32 %v1230, -1.0
        %v2042 = vmax.f32 %v1233, -1.0
        %v2043 = vmax.f32 %v1238, -1.0
        %v2044 = vmax.f32 %v1241, -1.0
        %v2045 = vmax.f32 %v1246, -1.0
        %v2046 = vmax.f32 %v1249, -1.0
        %v2047 = vmax.f32 %v1254, -1.0
        %v2048 = vmax.f32 %v1257, -1.0
        %v2049 = vmax.f32 %v1262, -1.0
        %v2050 = vmax.f32 %v1265, -1.0
        %v2051 = vmax.f32 %v1270, -1.0
        %v2052 = vmax.f32 %v1273, -1.0
        %v2053 = vmax.f32 %v1278, -1.0
        %v2054 = vmax.f32 %v1281, -1.0
        %v2055 = vmax.f32 %v1286, -1.0
        %v2056 = vmax.f32 %v1289, -1.0
        %v2057 = vmax.f32 %v1367, -1.0
        %v2058 = vmax.f32 %v1370, -1.0
        %v2059 = vmax.f32 %v1375, -1.0
        %v2060 = vmax.f32 %v1378, -1.0
        %v2061 = vmax.f32 %v1383, -1.0
        %v2062 = vmax.f32 %v1386, -1.0
        %v2063 = vmax.f32 %v1391, -1.0
        %v2064 = vmax.f32 %v1394, -1.0
        %v2065 = vmax.f32 %v1399, -1.0
        %v2066 = vmax.f32 %v1402, -1.0
        %v2067 = vmax.f32 %v1407, -1.0
        %v2068 = vmax.f32 %v1410, -1.0
        %v2069 = vmax.f32 %v1415, -1.0
        %v2070 = vmax.f32 %v1418, -1.0
        %v2071 = vmax.f32 %v1423, -1.0
        %v2072 = vmax.f32 %v1426, -1.0
        %v2073 = vmax.f32 %v1504, -1.0
        %v2074 = vmax.f32 %v1507, -1.0
        %v2075 = vmax.f32 %v1512, -1.0
        %v2076 = vmax.f32 %v1515, -1.0
        %v2077 = vmax.f32 %v1520, -1.0
        %v2078 = vmax.f32 %v1523, -1.0
        %v2079 = vmax.f32 %v1528, -1.0
        %v2080 = vmax.f32 %v1531, -1.0
        %v2081 = vmax.f32 %v1536, -1.0
        %v2082 = vmax.f32 %v1539, -1.0
        %v2083 = vmax.f32 %v1544, -1.0
        %v2084 = vmax.f32 %v1547, -1.0
        %v2085 = vmax.f32 %v1552, -1.0
        %v2086 = vmax.f32 %v1555, -1.0
        %v2087 = vmax.f32 %v1560, -1.0
        %v2088 = vmax.f32 %v1563, -1.0
        %v2089 = vmax.f32 %v1641, -1.0
        %v2090 = vmax.f32 %v1644, -1.0
        %v2091 = vmax.f32 %v1649, -1.0
        %v2092 = vmax.f32 %v1652, -1.0
        %v2093 = vmax.f32 %v1657, -1.0
        %v2094 = vmax.f32 %v1660, -1.0
        %v2095 = vmax.f32 %v1665, -1.0
        %v2096 = vmax.f32 %v1668, -1.0
        %v2097 = vmax.f32 %v1673, -1.0
        %v2098 = vmax.f32 %v1676, -1.0
        %v2099 = vmax.f32 %v1681, -1.0
        %v2100 = vmax.f32 %v1684, -1.0
        %v2101 = vmax.f32 %v1689, -1.0
        %v2102 = vmax.f32 %v1692, -1.0
        %v2103 = vmax.f32 %v1697, -1.0
        %v2104 = vmax.f32 %v1700, -1.0
        %v2105 = vmax.f32 %v1778, -1.0
        %v2106 = vmax.f32 %v1781, -1.0
        %v2107 = vmax.f32 %v1786, -1.0
        %v2108 = vmax.f32 %v1789, -1.0
        %v2109 = vmax.f32 %v1794, -1.0
        %v2110 = vmax.f32 %v1797, -1.0
        %v2111 = vmax.f32 %v1802, -1.0
        %v2112 = vmax.f32 %v1805, -1.0
        %v2113 = vmax.f32 %v1810, -1.0
        %v2114 = vmax.f32 %v1813, -1.0
        %v2115 = vmax.f32 %v1818, -1.0
        %v2116 = vmax.f32 %v1821, -1.0
        %v2117 = vmax.f32 %v1826, -1.0
        %v2118 = vmax.f32 %v1829, -1.0
        %v2119 = vmax.f32 %v1834, -1.0
        %v2120 = vmax.f32 %v1837, -1.0
        %v2121 = vmax.f32 %v1915, -1.0
        %v2122 = vmax.f32 %v1918, -1.0
        %v2123 = vmax.f32 %v1923, -1.0
        %v2124 = vmax.f32 %v1926, -1.0
        %v2125 = vmax.f32 %v1931, -1.0
        %v2126 = vmax.f32 %v1934, -1.0
        %v2127 = vmax.f32 %v1939, -1.0
        %v2128 = vmax.f32 %v1942, -1.0
        %v2129 = vmax.f32 %v1947, -1.0
        %v2130 = vmax.f32 %v1950, -1.0
        %v2131 = vmax.f32 %v1955, -1.0
        %v2132 = vmax.f32 %v1958, -1.0
        %v2133 = vmax.f32 %v1963, -1.0
        %v2134 = vmax.f32 %v1966, -1.0
        %v2135 = vmax.f32 %v1971, -1.0
        %v2136 = vmax.f32 %v1974, -1.0
        %v2137 = vmin.f32 %v1977, 1.0
        %v2138 = vmin.f32 %v1978, 1.0
        %v2139 = vmin.f32 %v1979, 1.0
        %v2140 = vmin.f32 %v1980, 1.0
        %v2141 = vmin.f32 %v1981, 1.0
        %v2142 = vmin.f32 %v1982, 1.0
        %v2143 = vmin.f32 %v1983, 1.0
        %v2144 = vmin.f32 %v1984, 1.0
        %v2145 = vmin.f32 %v1985, 1.0
        %v2146 = vmin.f32 %v1986, 1.0
        %v2147 = vmin.f32 %v1987, 1.0
        %v2148 = vmin.f32 %v1988, 1.0
        %v2149 = vmin.f32 %v1989, 1.0
        %v2150 = vmin.f32 %v1990, 1.0
        %v2151 = vmin.f32 %v1991, 1.0
        %v2152 = vmin.f32 %v1992, 1.0
        %v2153 = vmin.f32 %v1993, 1.0
        %v2154 = vmin.f32 %v1994, 1.0
        %v2155 = vmin.f32 %v1995, 1.0
        %v2156 = vmin.f32 %v1996, 1.0
        %v2157 = vmin.f32 %v1997, 1.0
        %v2158 = vmin.f32 %v1998, 1.0
        %v2159 = vmin.f32 %v1999, 1.0
        %v2160 = vmin.f32 %v2000, 1.0
        %v2161 = vmin.f32 %v2001, 1.0
        %v2162 = vmin.f32 %v2002, 1.0
        %v2163 = vmin.f32 %v2003, 1.0
        %v2164 = vmin.f32 %v2004, 1.0
        %v2165 = vmin.f32 %v2005, 1.0
        %v2166 = vmin.f32 %v2006, 1.0
        %v2167 = vmin.f32 %v2007, 1.0
        %v2168 = vmin.f32 %v2008, 1.0
        %v2169 = vmin.f32 %v2009, 1.0
        %v2170 = vmin.f32 %v2010, 1.0
        %v2171 = vmin.f32 %v2011, 1.0
        %v2172 = vmin.f32 %v2012, 1.0
        %v2173 = vmin.f32 %v2013, 1.0
        %v2174 = vmin.f32 %v2014, 1.0
        %v2175 = vmin.f32 %v2015, 1.0
        %v2176 = vmin.f32 %v2016, 1.0
        %v2177 = vmin.f32 %v2017, 1.0
        %v2178 = vmin.f32 %v2018, 1.0
        %v2179 = vmin.f32 %v2019, 1.0
        %v2180 = vmin.f32 %v2020, 1.0
        %v2181 = vmin.f32 %v2021, 1.0
        %v2182 = vmin.f32 %v2022, 1.0
        %v2183 = vmin.f32 %v2023, 1.0
        %v2184 = vmin.f32 %v2024, 1.0
        %v2185 = vmin.f32 %v2025, 1.0
        %v2186 = vmin.f32 %v2026, 1.0
        %v2187 = vmin.f32 %v2027, 1.0
        %v2188 = vmin.f32 %v2028, 1.0
        %v2189 = vmin.f32 %v2029, 1.0
        %v2190 = vmin.f32 %v2030, 1.0
        %v2191 = vmin.f32 %v2031, 1.0
        %v2192 = vmin.f32 %v2032, 1.0
        %v2193 = vmin.f32 %v2033, 1.0
        %v2194 = vmin.f32 %v2034, 1.0
        %v2195 = vmin.f32 %v2035, 1.0
        %v2196 = vmin.f32 %v2036, 1.0
        %v2197 = vmin.f32 %v2037, 1.0
        %v2198 = vmin.f32 %v2038, 1.0
        %v2199 = vmin.f32 %v2039, 1.0
        %v2200 = vmin.f32 %v2040, 1.0
        %v2201 = vmin.f32 %v2041, 1.0
        %v2202 = vmin.f32 %v2042, 1.0
        %v2203 = vmin.f32 %v2043, 1.0
        %v2204 = vmin.f32 %v2044, 1.0
        %v2205 = vmin.f32 %v2045, 1.0
        %v2206 = vmin.f32 %v2046, 1.0
        %v2207 = vmin.f32 %v2047, 1.0
        %v2208 = vmin.f32 %v2048, 1.0
        %v2209 = vmin.f32 %v2049, 1.0
        %v2210 = vmin.f32 %v2050, 1.0
        %v2211 = vmin.f32 %v2051, 1.0
        %v2212 = vmin.f32 %v2052, 1.0
        %v2213 = vmin.f32 %v2053, 1.0
        %v2214 = vmin.f32 %v2054, 1.0
        %v2215 = vmin.f32 %v2055, 1.0
        %v2216 = vmin.f32 %v2056, 1.0
        %v2217 = vmin.f32 %v2057, 1.0
        %v2218 = vmin.f32 %v2058, 1.0
        %v2219 = vmin.f32 %v2059, 1.0
        %v2220 = vmin.f32 %v2060, 1.0
        %v2221 = vmin.f32 %v2061, 1.0
        %v2222 = vmin.f32 %v2062, 1.0
        %v2223 = vmin.f32 %v2063, 1.0
        %v2224 = vmin.f32 %v2064, 1.0
        %v2225 = vmin.f32 %v2065, 1.0
        %v2226 = vmin.f32 %v2066, 1.0
        %v2227 = vmin.f32 %v2067, 1.0
        %v2228 = vmin.f32 %v2068, 1.0
        %v2229 = vmin.f32 %v2069, 1.0
        %v2230 = vmin.f32 %v2070, 1.0
        %v2231 = vmin.f32 %v2071, 1.0
        %v2232 = vmin.f32 %v2072, 1.0
        %v2233 = vmin.f32 %v2073, 1.0
        %v2234 = vmin.f32 %v2074, 1.0
        %v2235 = vmin.f32 %v2075, 1.0
        %v2236 = vmin.f32 %v2076, 1.0
        %v2237 = vmin.f32 %v2077, 1.0
        %v2238 = vmin.f32 %v2078, 1.0
        %v2239 = vmin.f32 %v2079, 1.0
        %v2240 = vmin.f32 %v2080, 1.0
        %v2241 = vmin.f32 %v2081, 1.0
        %v2242 = vmin.f32 %v2082, 1.0
        %v2243 = vmin.f32 %v2083, 1.0
        %v2244 = vmin.f32 %v2084, 1.0
        %v2245 = vmin.f32 %v2085, 1.0
        %v2246 = vmin.f32 %v2086, 1.0
        %v2247 = vmin.f32 %v2087, 1.0
        %v2248 = vmin.f32 %v2088, 1.0
        %v2249 = vmin.f32 %v2089, 1.0
        %v2250 = vmin.f32 %v2090, 1.0
        %v2251 = vmin.f32 %v2091, 1.0
        %v2252 = vmin.f32 %v2092, 1.0
        %v2253 = vmin.f32 %v2093, 1.0
        %v2254 = vmin.f32 %v2094, 1.0
        %v2255 = vmin.f32 %v2095, 1.0
        %v2256 = vmin.f32 %v2096, 1.0
        %v2257 = vmin.f32 %v2097, 1.0
        %v2258 = vmin.f32 %v2098, 1.0
        %v2259 = vmin.f32 %v2099, 1.0
        %v2260 = vmin.f32 %v2100, 1.0
        %v2261 = vmin.f32 %v2101, 1.0
        %v2262 = vmin.f32 %v2102, 1.0
        %v2263 = vmin.f32 %v2103, 1.0
        %v2264 = vmin.f32 %v2104, 1.0
        %v2265 = vmin.f32 %v2105, 1.0
        %v2266 = vmin.f32 %v2106, 1.0
        %v2267 = vmin.f32 %v2107, 1.0
        %v2268 = vmin.f32 %v2108, 1.0
        %v2269 = vmin.f32 %v2109, 1.0
        %v2270 = vmin.f32 %v2110, 1.0
        %v2271 = vmin.f32 %v2111, 1.0
        %v2272 = vmin.f32 %v2112, 1.0
        %v2273 = vmin.f32 %v2113, 1.0
        %v2274 = vmin.f32 %v2114, 1.0
        %v2275 = vmin.f32 %v2115, 1.0
        %v2276 = vmin.f32 %v2116, 1.0
        %v2277 = vmin.f32 %v2117, 1.0
        %v2278 = vmin.f32 %v2118, 1.0
        %v2279 = vmin.f32 %v2119, 1.0
        %v2280 = vmin.f32 %v2120, 1.0
        %v2281 = vmin.f32 %v2121, 1.0
        %v2282 = vmin.f32 %v2122, 1.0
        %v2283 = vmin.f32 %v2123, 1.0
        %v2284 = vmin.f32 %v2124, 1.0
        %v2285 = vmin.f32 %v2125, 1.0
        %v2286 = vmin.f32 %v2126, 1.0
        %v2287 = vmin.f32 %v2127, 1.0
        %v2288 = vmin.f32 %v2128, 1.0
        %v2289 = vmin.f32 %v2129, 1.0
        %v2290 = vmin.f32 %v2130, 1.0
        %v2291 = vmin.f32 %v2131, 1.0
        %v2292 = vmin.f32 %v2132, 1.0
        %v2293 = vmin.f32 %v2133, 1.0
        %v2294 = vmin.f32 %v2134, 1.0
        %v2295 = vmin.f32 %v2135, 1.0
        %v2296 = vmin.f32 %v2136, 1.0
        %2297 = vst [vmem:[%s219] sm:$0xff] %v2137
        %2298 = vst [vmem:[%s219 + $0x8] sm:$0xff] %v2138
        %2299 = vst [vmem:[%s219 + $0x10] sm:$0xff] %v2139
        %2300 = vst [vmem:[%s219 + $0x18] sm:$0xff] %v2140
        %2301 = vst [vmem:[%s219 + $0x20] sm:$0xff] %v2141
        %2302 = vst [vmem:[%s219 + $0x28] sm:$0xff] %v2142
        %2303 = vst [vmem:[%s219 + $0x30] sm:$0xff] %v2143
        %2304 = vst [vmem:[%s219 + $0x38] sm:$0xff] %v2144
        %2305 = vst [vmem:[%s219 + $0x40] sm:$0xff] %v2145
        %2306 = vst [vmem:[%s219 + $0x48] sm:$0xff] %v2146
        %2307 = vst [vmem:[%s219 + $0x50] sm:$0xff] %v2147
        %2308 = vst [vmem:[%s219 + $0x58] sm:$0xff] %v2148
        %2309 = vst [vmem:[%s219 + $0x60] sm:$0xff] %v2149
        %2310 = vst [vmem:[%s219 + $0x68] sm:$0xff] %v2150
        %2311 = vst [vmem:[%s219 + $0x70] sm:$0xff] %v2151
        %2312 = vst [vmem:[%s219 + $0x78] sm:$0xff] %v2152
        %2313 = vst [vmem:[%s219 + $0x80] sm:$0xff] %v2153
        %2314 = vst [vmem:[%s219 + $0x88] sm:$0xff] %v2154
        %2315 = vst [vmem:[%s219 + $0x90] sm:$0xff] %v2155
        %2316 = vst [vmem:[%s219 + $0x98] sm:$0xff] %v2156
        %2317 = vst [vmem:[%s219 + $0xa0] sm:$0xff] %v2157
        %2318 = vst [vmem:[%s219 + $0xa8] sm:$0xff] %v2158
        %2319 = vst [vmem:[%s219 + $0xb0] sm:$0xff] %v2159
        %2320 = vst [vmem:[%s219 + $0xb8] sm:$0xff] %v2160
        %2321 = vst [vmem:[%s219 + $0xc0] sm:$0xff] %v2161
        %2322 = vst [vmem:[%s219 + $0xc8] sm:$0xff] %v2162
        %2323 = vst [vmem:[%s219 + $0xd0] sm:$0xff] %v2163
        %2324 = vst [vmem:[%s219 + $0xd8] sm:$0xff] %v2164
        %2325 = vst [vmem:[%s219 + $0xe0] sm:$0xff] %v2165
        %2326 = vst [vmem:[%s219 + $0xe8] sm:$0xff] %v2166
        %2327 = vst [vmem:[%s219 + $0xf0] sm:$0xff] %v2167
        %2328 = vst [vmem:[%s219 + $0xf8] sm:$0xff] %v2168
        %2329 = vst [vmem:[%s219 + $0x100] sm:$0xff] %v2169
        %2330 = vst [vmem:[%s219 + $0x108] sm:$0xff] %v2170
        %2331 = vst [vmem:[%s219 + $0x110] sm:$0xff] %v2171
        %2332 = vst [vmem:[%s219 + $0x118] sm:$0xff] %v2172
        %2333 = vst [vmem:[%s219 + $0x120] sm:$0xff] %v2173
        %2334 = vst [vmem:[%s219 + $0x128] sm:$0xff] %v2174
        %2335 = vst [vmem:[%s219 + $0x130] sm:$0xff] %v2175
        %2336 = vst [vmem:[%s219 + $0x138] sm:$0xff] %v2176
        %2337 = vst [vmem:[%s219 + $0x140] sm:$0xff] %v2177
        %2338 = vst [vmem:[%s219 + $0x148] sm:$0xff] %v2178
        %2339 = vst [vmem:[%s219 + $0x150] sm:$0xff] %v2179
        %2340 = vst [vmem:[%s219 + $0x158] sm:$0xff] %v2180
        %2341 = vst [vmem:[%s219 + $0x160] sm:$0xff] %v2181
        %2342 = vst [vmem:[%s219 + $0x168] sm:$0xff] %v2182
        %2343 = vst [vmem:[%s219 + $0x170] sm:$0xff] %v2183
        %2344 = vst [vmem:[%s219 + $0x178] sm:$0xff] %v2184
        %2345 = vst [vmem:[%s219 + $0x180] sm:$0xff] %v2185
        %2346 = vst [vmem:[%s219 + $0x188] sm:$0xff] %v2186
        %2347 = vst [vmem:[%s219 + $0x190] sm:$0xff] %v2187
        %2348 = vst [vmem:[%s219 + $0x198] sm:$0xff] %v2188
        %2349 = vst [vmem:[%s219 + $0x1a0] sm:$0xff] %v2189
        %2350 = vst [vmem:[%s219 + $0x1a8] sm:$0xff] %v2190
        %2351 = vst [vmem:[%s219 + $0x1b0] sm:$0xff] %v2191
        %2352 = vst [vmem:[%s219 + $0x1b8] sm:$0xff] %v2192
        %2353 = vst [vmem:[%s219 + $0x1c0] sm:$0xff] %v2193
        %2354 = vst [vmem:[%s219 + $0x1c8] sm:$0xff] %v2194
        %2355 = vst [vmem:[%s219 + $0x1d0] sm:$0xff] %v2195
        %2356 = vst [vmem:[%s219 + $0x1d8] sm:$0xff] %v2196
        %2357 = vst [vmem:[%s219 + $0x1e0] sm:$0xff] %v2197
        %2358 = vst [vmem:[%s219 + $0x1e8] sm:$0xff] %v2198
        %2359 = vst [vmem:[%s219 + $0x1f0] sm:$0xff] %v2199
        %2360 = vst [vmem:[%s219 + $0x1f8] sm:$0xff] %v2200
        %2361 = vst [vmem:[%s219 + $0x200] sm:$0xff] %v2201
        %2362 = vst [vmem:[%s219 + $0x208] sm:$0xff] %v2202
        %2363 = vst [vmem:[%s219 + $0x210] sm:$0xff] %v2203
        %2364 = vst [vmem:[%s219 + $0x218] sm:$0xff] %v2204
        %2365 = vst [vmem:[%s219 + $0x220] sm:$0xff] %v2205
        %2366 = vst [vmem:[%s219 + $0x228] sm:$0xff] %v2206
        %2367 = vst [vmem:[%s219 + $0x230] sm:$0xff] %v2207
        %2368 = vst [vmem:[%s219 + $0x238] sm:$0xff] %v2208
        %2369 = vst [vmem:[%s219 + $0x240] sm:$0xff] %v2209
        %2370 = vst [vmem:[%s219 + $0x248] sm:$0xff] %v2210
        %2371 = vst [vmem:[%s219 + $0x250] sm:$0xff] %v2211
        %2372 = vst [vmem:[%s219 + $0x258] sm:$0xff] %v2212
        %2373 = vst [vmem:[%s219 + $0x260] sm:$0xff] %v2213
        %2374 = vst [vmem:[%s219 + $0x268] sm:$0xff] %v2214
        %2375 = vst [vmem:[%s219 + $0x270] sm:$0xff] %v2215
        %2376 = vst [vmem:[%s219 + $0x278] sm:$0xff] %v2216
        %2377 = vst [vmem:[%s219 + $0x280] sm:$0xff] %v2217
        %2378 = vst [vmem:[%s219 + $0x288] sm:$0xff] %v2218
        %2379 = vst [vmem:[%s219 + $0x290] sm:$0xff] %v2219
        %2380 = vst [vmem:[%s219 + $0x298] sm:$0xff] %v2220
        %2381 = vst [vmem:[%s219 + $0x2a0] sm:$0xff] %v2221
        %2382 = vst [vmem:[%s219 + $0x2a8] sm:$0xff] %v2222
        %2383 = vst [vmem:[%s219 + $0x2b0] sm:$0xff] %v2223
        %2384 = vst [vmem:[%s219 + $0x2b8] sm:$0xff] %v2224
        %2385 = vst [vmem:[%s219 + $0x2c0] sm:$0xff] %v2225
        %2386 = vst [vmem:[%s219 + $0x2c8] sm:$0xff] %v2226
        %2387 = vst [vmem:[%s219 + $0x2d0] sm:$0xff] %v2227
        %2388 = vst [vmem:[%s219 + $0x2d8] sm:$0xff] %v2228
        %2389 = vst [vmem:[%s219 + $0x2e0] sm:$0xff] %v2229
        %2390 = vst [vmem:[%s219 + $0x2e8] sm:$0xff] %v2230
        %2391 = vst [vmem:[%s219 + $0x2f0] sm:$0xff] %v2231
        %2392 = vst [vmem:[%s219 + $0x2f8] sm:$0xff] %v2232
        %2393 = vst [vmem:[%s219 + $0x300] sm:$0xff] %v2233
        %2394 = vst [vmem:[%s219 + $0x308] sm:$0xff] %v2234
        %2395 = vst [vmem:[%s219 + $0x310] sm:$0xff] %v2235
        %2396 = vst [vmem:[%s219 + $0x318] sm:$0xff] %v2236
        %2397 = vst [vmem:[%s219 + $0x320] sm:$0xff] %v2237
        %2398 = vst [vmem:[%s219 + $0x328] sm:$0xff] %v2238
        %2399 = vst [vmem:[%s219 + $0x330] sm:$0xff] %v2239
        %2400 = vst [vmem:[%s219 + $0x338] sm:$0xff] %v2240
        %2401 = vst [vmem:[%s219 + $0x340] sm:$0xff] %v2241
        %2402 = vst [vmem:[%s219 + $0x348] sm:$0xff] %v2242
        %2403 = vst [vmem:[%s219 + $0x350] sm:$0xff] %v2243
        %2404 = vst [vmem:[%s219 + $0x358] sm:$0xff] %v2244
        %2405 = vst [vmem:[%s219 + $0x360] sm:$0xff] %v2245
        %2406 = vst [vmem:[%s219 + $0x368] sm:$0xff] %v2246
        %2407 = vst [vmem:[%s219 + $0x370] sm:$0xff] %v2247
        %2408 = vst [vmem:[%s219 + $0x378] sm:$0xff] %v2248
        %2409 = vst [vmem:[%s219 + $0x380] sm:$0xff] %v2249
        %2410 = vst [vmem:[%s219 + $0x388] sm:$0xff] %v2250
        %2411 = vst [vmem:[%s219 + $0x390] sm:$0xff] %v2251
        %2412 = vst [vmem:[%s219 + $0x398] sm:$0xff] %v2252
        %2413 = vst [vmem:[%s219 + $0x3a0] sm:$0xff] %v2253
        %2414 = vst [vmem:[%s219 + $0x3a8] sm:$0xff] %v2254
        %2415 = vst [vmem:[%s219 + $0x3b0] sm:$0xff] %v2255
        %2416 = vst [vmem:[%s219 + $0x3b8] sm:$0xff] %v2256
        %2417 = vst [vmem:[%s219 + $0x3c0] sm:$0xff] %v2257
        %2418 = vst [vmem:[%s219 + $0x3c8] sm:$0xff] %v2258
        %2419 = vst [vmem:[%s219 + $0x3d0] sm:$0xff] %v2259
        %2420 = vst [vmem:[%s219 + $0x3d8] sm:$0xff] %v2260
        %2421 = vst [vmem:[%s219 + $0x3e0] sm:$0xff] %v2261
        %2422 = vst [vmem:[%s219 + $0x3e8] sm:$0xff] %v2262
        %2423 = vst [vmem:[%s219 + $0x3f0] sm:$0xff] %v2263
        %2424 = vst [vmem:[%s219 + $0x3f8] sm:$0xff] %v2264
        %2425 = vst [vmem:[%s219 + $0x400] sm:$0xff] %v2265
        %2426 = vst [vmem:[%s219 + $0x408] sm:$0xff] %v2266
        %2427 = vst [vmem:[%s219 + $0x410] sm:$0xff] %v2267
        %2428 = vst [vmem:[%s219 + $0x418] sm:$0xff] %v2268
        %2429 = vst [vmem:[%s219 + $0x420] sm:$0xff] %v2269
        %2430 = vst [vmem:[%s219 + $0x428] sm:$0xff] %v2270
        %2431 = vst [vmem:[%s219 + $0x430] sm:$0xff] %v2271
        %2432 = vst [vmem:[%s219 + $0x438] sm:$0xff] %v2272
        %2433 = vst [vmem:[%s219 + $0x440] sm:$0xff] %v2273
        %2434 = vst [vmem:[%s219 + $0x448] sm:$0xff] %v2274
        %2435 = vst [vmem:[%s219 + $0x450] sm:$0xff] %v2275
        %2436 = vst [vmem:[%s219 + $0x458] sm:$0xff] %v2276
        %2437 = vst [vmem:[%s219 + $0x460] sm:$0xff] %v2277
        %2438 = vst [vmem:[%s219 + $0x468] sm:$0xff] %v2278
        %2439 = vst [vmem:[%s219 + $0x470] sm:$0xff] %v2279
        %2440 = vst [vmem:[%s219 + $0x478] sm:$0xff] %v2280
        %2441 = vst [vmem:[%s219 + $0x480] sm:$0xff] %v2281
        %2442 = vst [vmem:[%s219 + $0x488] sm:$0xff] %v2282
        %2443 = vst [vmem:[%s219 + $0x490] sm:$0xff] %v2283
        %2444 = vst [vmem:[%s219 + $0x498] sm:$0xff] %v2284
        %2445 = vst [vmem:[%s219 + $0x4a0] sm:$0xff] %v2285
        %2446 = vst [vmem:[%s219 + $0x4a8] sm:$0xff] %v2286
        %2447 = vst [vmem:[%s219 + $0x4b0] sm:$0xff] %v2287
        %2448 = vst [vmem:[%s219 + $0x4b8] sm:$0xff] %v2288
        %2449 = vst [vmem:[%s219 + $0x4c0] sm:$0xff] %v2289
        %2450 = vst [vmem:[%s219 + $0x4c8] sm:$0xff] %v2290
        %2451 = vst [vmem:[%s219 + $0x4d0] sm:$0xff] %v2291
        %2452 = vst [vmem:[%s219 + $0x4d8] sm:$0xff] %v2292
        %2453 = vst [vmem:[%s219 + $0x4e0] sm:$0xff] %v2293
        %2454 = vst [vmem:[%s219 + $0x4e8] sm:$0xff] %v2294
        %2455 = vst [vmem:[%s219 + $0x4f0] sm:$0xff] %v2295
        %2456 = vst [vmem:[%s219 + $0x4f8] sm:$0xff] %v2296
        %s2457 = sand.u32 %s98, 1
        %s2458 = scalar_lea.sflag [#allocation4], %s2457
        %s2459 = sand.u32 %s98, 1
        %s2460 = smul.addr %s2459, 1280
        %s2461 = scalar_lea.vmem [#allocation7], %s2460
        // Predicated region
        $region37: #{gmpool_masking_fc_forward.3} parent=27 // pred_check
          %p2462 = pneg %p108
        $region38: #{gmpool_masking_fc_forward.3} parent=27 // pred_check_branch
          %2464 = sbr.rel (%p2462) target = $region40
        $region39: #{gmpool_masking_fc_forward.3} parent=27 // pred_region
          %s2466 = ssub.s32 20480, 20480
          %2467 = vsyncadd %s2458, %s2466
          %s2468 = smul.addr %s27, 160
          %s2469 = smul.addr %s26, 160
          %s2470 = sadd.s32 %s2468, %s2469
          %s2471 = smul.addr %s2470, 128
          %s2472 = scalar_lea.hbm %s2, %s2471
          %s2473 = sshll.u32 %s2461, 4
          %s2474 = int_to_ptr.vmem [resolvable:$true] %s2473
          %2479 = dma.vmem_to_hbm [thread:$0]  %s2474, 20480, %s2472, %s2458, 128, 128, 8
        $region40: #{gmpool_masking_fc_forward.3} parent=27 // pred_fallthru
          _
      $region28: #{gmpool_masking_fc_forward.3} parent=5 // pred_fallthru
        _
      %p2480 = scmp.le.s32.totalorder 2, %s17
      // Predicated region
      $region41: #{gmpool_masking_fc_forward.3} parent=5 // pred_check
        %p2481 = pneg %p2480
      $region42: #{gmpool_masking_fc_forward.3} parent=5 // pred_check_branch
        %2483 = sbr.rel (%p2481) target = $region44
      $region43: #{gmpool_masking_fc_forward.3} parent=5 // pred_region
        %s2484 = ssub.s32 %s17, 2
        // Predicated region
        $region45: #{gmpool_masking_fc_forward.3} parent=43 // pred_check
          %p2485 = pneg %p114
        $region46: #{gmpool_masking_fc_forward.3} parent=43 // pred_check_branch
          %2487 = sbr.rel (%p2485) target = $region48
        $region47: #{gmpool_masking_fc_forward.3} parent=43 // pred_region
          %s2488 = sand.u32 %s99, 1
          %s2489 = scalar_lea.sflag [#allocation4], %s2488
          %s2490 = sand.u32 %s99, 1
          %s2491 = smul.addr %s2490, 1280
          %s2492 = scalar_lea.vmem [#allocation7], %s2491
          %2493 = dma.done %s2489, 20480
        $region48: #{gmpool_masking_fc_forward.3} parent=43 // pred_fallthru
          _
      $region44: #{gmpool_masking_fc_forward.3} parent=5 // pred_fallthru
        _
    $region6: #{gmpool_masking_fc_forward.3} parent=1 // loop_footer
      %s21 = sadd.s32 1, %s17
    $region7: #{gmpool_masking_fc_forward.3} parent=1 // loop_footer_branch
      %16 = sbr.rel target = $region3
    $region8: #{gmpool_masking_fc_forward.3} parent=1 // loop_exit
      _
    %2494 = vsyncpa [#allocation3], 1
    %s2495 = scalar_lea.sflag [#allocation3], 1
    %2496 = vsyncpa %s2495, 1
    %2497 = vsyncpa [#allocation6], 1
    %s2498 = scalar_lea.sflag [#allocation6], 1
    %2499 = vsyncpa %s2498, 1
    %2500 = vsyncpa [#allocation4], 1
    %s2501 = scalar_lea.sflag [#allocation4], 1
    %2502 = vsyncpa %s2501, 1

</llo_original>
